<compile_context>
chip_gen: v7x
topology: tpu7x:2x2x1
jax: 0.10.0
libtpu: 0.0.40
codegen_flags: <defaults>
</compile_context>

<pallas_src>
import functools

import jax
import jax.numpy as jnp
import numpy as np
from jax.experimental import pallas as pl
from jax.experimental.pallas import tpu as pltpu

EPS = 1e-5  # torch.nn.LayerNorm default eps


# ----------------------------- in-kernel helpers -----------------------------

def _layernorm(x, gamma, beta):
    # biased variance over last dim, matching torch.nn.LayerNorm
    mu = jnp.mean(x, axis=-1, keepdims=True)
    var = jnp.mean((x - mu) ** 2, axis=-1, keepdims=True)
    return (x - mu) * jax.lax.rsqrt(var + EPS) * gamma + beta


def _gelu_exact(x):
    # exact (erf-based) GELU = torch.nn.GELU() default.
    # TODO(synk): if the bundle dump shows the VALU slot saturated at production
    # shapes, switch to the tanh approximation (rides the otherwise-idle EUP slot).
    return 0.5 * x * (1.0 + jax.lax.erf(x * (2.0 ** -0.5)))


# --------------------------------- fused kernel -------------------------------

def vit_encoder_kernel(x_ref,
                       wq_ref, wk_ref, wv_ref, wo_ref,
                       w1_ref, b1_ref, w2_ref,
                       vecs_ref, fln_ref,
                       o_ref, xres_ref,
                       *, heads, dim_head, block_b, n_tok):
    """One (batch-block, layer) grid step: pre-LN MHA + residual, pre-LN MLP + residual.
    The f32 residual stream of the whole (block_b * N, D) token block is carried across
    layers in VMEM scratch; per-layer weights are streamed once per batch block."""
    layer = pl.program_id(1)
    m_rows = block_b * n_tok

    # Layer 0: pull this batch block's tokens into the resident f32 residual stream.
    @pl.when(layer == 0)
    def _():
        xres_ref[...] = x_ref[...].reshape(m_rows, -1).astype(jnp.float32)

    x = xres_ref[...]                       # (Bt*N, D) f32 residual stream
    cdt = wq_ref.dtype                      # matmul input dtype (f32, or bf16 on v6e/v7x)

    # Packed per-layer vectors: rows = [ln1_g, ln1_b, attn_out_bias, ln2_g, ln2_b, ff_b2]
    vecs = vecs_ref[...]                    # (6, D)
    ln1_g, ln1_b, bo = vecs[0:1], vecs[1:2], vecs[2:3]
    ln2_g, ln2_b, b2 = vecs[3:4], vecs[4:5], vecs[5:6]

    # ------------------------- attention sub-block (pre-LN) -------------------------
    xn = _layernorm(x, ln1_g, ln1_b).astype(cdt)                        # (Bt*N, D)
    q = jnp.dot(xn, wq_ref[...], preferred_element_type=jnp.float32)   # scale pre-folded
    k = jnp.dot(xn, wk_ref[...], preferred_element_type=jnp.float32)
    v = jnp.dot(xn, wv_ref[...], preferred_element_type=jnp.float32)

    # (Bt*N, H*dh) -> (H*Bt, N, dh): split the minor dim, head-major 3-D einshape,
    # then a majors-only regroup (element order unchanged).
    def to_batched_heads(t):
        t = pltpu.einshape("mhd->hmd", t.reshape(m_rows, heads, dim_head))
        return t.reshape(heads * block_b, n_tok, dim_head).astype(cdt)

    qh = to_batched_heads(q)
    kh = to_batched_heads(k)
    vh = to_batched_heads(v)

    # TODO(synk): tile this with an online-softmax loop for long sequences (VMEM bound).
    s = jnp.einsum("gqd,gkd->gqk", qh, kh,
                   preferred_element_type=jnp.float32)                 # (H*Bt, N, N)
    s_max = jnp.max(s, axis=-1, keepdims=True)
    e = jnp.exp(s - s_max)
    denom = jnp.sum(e, axis=-1, keepdims=True)
    ctx = jnp.einsum("gqk,gkd->gqd", e.astype(cdt), vh,
                     preferred_element_type=jnp.float32)               # (H*Bt, N, dh)
    # Deferred softmax normalization.  Exact reciprocal for strict numerics; switch to
    # approx=True (EUP vrcp) at production tolerances.
    ctx = ctx * pl.reciprocal(denom, approx=False)

    # Back to token-major (Bt*N, H*dh) and output projection.
    ctx = ctx.reshape(heads, m_rows, dim_head)
    ctx = pltpu.einshape("hmd->mhd", ctx).reshape(m_rows, heads * dim_head)
    proj = jnp.dot(ctx.astype(cdt), wo_ref[...], preferred_element_type=jnp.float32)
    x = x + proj + bo                                                  # residual

    # ------------------------ feed-forward sub-block (pre-LN) -----------------------
    xn2 = _layernorm(x, ln2_g, ln2_b).astype(cdt)
    h = jnp.dot(xn2, w1_ref[...], preferred_element_type=jnp.float32) + b1_ref[...]
    h = _gelu_exact(h).astype(cdt)
    y = jnp.dot(h, w2_ref[...], preferred_element_type=jnp.float32) + b2
    x = x + y                                                          # residual

    xres_ref[...] = x                       # carry to next layer (same batch block)

    # Last layer: final LayerNorm; output block flushes to HBM when the batch block advances.
    @pl.when(layer == pl.num_programs(1) - 1)
    def _():
        fg, fb = fln_ref[0:1], fln_ref[1:2]
        o_ref[...] = _layernorm(x, fg, fb).reshape(block_b, n_tok, -1).astype(o_ref.dtype)


# ------------------------------ pallas wrapper --------------------------------

def _vmem_limit_bytes():
    # Leave headroom below physical VMEM (critical on v7x, which has only 64 MiB/TC).
    try:
        cap = int(pltpu.get_tpu_info().vmem_capacity_bytes)
        return int(min(cap * 3 // 4, 112 * 1024 * 1024))
    except Exception:
        return 48 * 1024 * 1024


def transformer_forward(x, prepared, *, heads, dim_head, block_b=4):
    """Matches Transformer.forward: depth x (Attention + res, FF + res), final LN."""
    B, N, D = x.shape
    depth = prepared["wq"].shape[0]
    inner = heads * dim_head
    mlp_dim = prepared["w1"].shape[-1]

    # Largest divisor of B not exceeding block_b: each grid step processes bt batch
    # elements, so each per-layer weight DMA is reused bt times and the big matmuls see
    # bt*N rows (target >= 256 rows on v6e/v7x, >= 128 on v5e at production shapes).
    bt = max(d for d in range(1, min(block_b, B) + 1) if B % d == 0)

    def layer_spec(*shape):
        # per-layer stacked weight: leading depth dim squeezed, indexed by layer axis
        n = len(shape)
        return pl.BlockSpec((pl.Squeezed(),) + tuple(shape),
                            lambda b, l, n=n: (l,) + (0,) * n)

    def token_spec():
        # per-batch-block tokens: resident across the whole depth ("arbitrary") axis
        return pl.BlockSpec((bt, N, D), lambda b, l: (b, 0, 0))

    # Advisory cost estimate so XLA schedules/overlaps the surrounding program well.
    flops_layer_per_elem = (2 * N * D * 3 * inner               # q/k/v projections
                            + 2 * heads * N * N * dim_head * 2  # scores + context
                            + 2 * N * inner * D                 # output projection
                            + 2 * N * D * mlp_dim * 2)          # feed-forward
    weight_bytes = sum(int(prepared[k].nbytes) for k in
                       ("wq", "wk", "wv", "wo", "w1", "b1", "w2", "vecs"))
    cost = pl.CostEstimate(
        flops=int(depth * B * flops_layer_per_elem),
        transcendentals=int(depth * B * (heads * N * N + N * mlp_dim)),
        bytes_accessed=int((B // bt) * weight_bytes
                           + 2 * B * N * D * x.dtype.itemsize),
    )

    kern = functools.partial(vit_encoder_kernel, heads=heads, dim_head=dim_head,
                             block_b=bt, n_tok=N)
    return pl.pallas_call(
        kern,
        out_shape=jax.ShapeDtypeStruct((B, N, D), x.dtype),
        grid=(B // bt, depth),
        in_specs=[
            token_spec(),
            layer_spec(D, inner), layer_spec(D, inner), layer_spec(D, inner),  # wq wk wv
            layer_spec(inner, D),                                              # wo
            layer_spec(D, mlp_dim), layer_spec(1, mlp_dim),                    # w1, b1
            layer_spec(mlp_dim, D),                                            # w2
            layer_spec(6, D),                                                  # packed LN/bias vectors
            pl.BlockSpec((2, D), lambda b, l: (0, 0)),                         # final LN gamma/beta
        ],
        out_specs=token_spec(),
        scratch_shapes=[pltpu.VMEM((bt * N, D), jnp.float32)],   # resident residual stream
        compiler_params=pltpu.CompilerParams(
            dimension_semantics=("parallel", "arbitrary"),
            vmem_limit_bytes=_vmem_limit_bytes(),
        ),
        cost_estimate=cost,
    )(x,
      prepared["wq"], prepared["wk"], prepared["wv"], prepared["wo"],
      prepared["w1"], prepared["b1"], prepared["w2"],
      prepared["vecs"], prepared["final_ln"])


# --------------------- parameter prep (wrapper-side layout plumbing) -----------------

def prepare_params(params, *, heads, dim_head, weight_dtype=jnp.float32):
    """Stack per-layer weights along a leading depth axis, split the fused qkv weight,
    fold the 1/sqrt(dim_head) scale into wq, pack small per-layer vectors, and
    optionally cast matmul weights (weight_dtype=jnp.bfloat16 recommended on v6e/v7x)."""
    inner = heads * dim_head
    scale = dim_head ** -0.5
    layers = params["layers"]

    def stack(fn):
        return jnp.stack([fn(layer) for layer in layers], axis=0)

    wqkv = stack(lambda lyr: lyr["attn"]["wqkv"])                    # (depth, D, 3*inner)

    # Pack the small per-layer (1, D) vectors into one (depth, 6, D) tensor:
    # rows = [ln1_g, ln1_b, attn_out_bias, ln2_g, ln2_b, ff_out_bias]
    vecs = jnp.stack([
        jnp.concatenate([lyr["attn"]["g"], lyr["attn"]["b"], lyr["attn"]["bout"],
                         lyr["ff"]["g"], lyr["ff"]["b"], lyr["ff"]["b2"]], axis=0)
        for lyr in layers], axis=0)

    return dict(
        wq=(wqkv[..., :inner] * scale).astype(weight_dtype),
        wk=wqkv[..., inner:2 * inner].astype(weight_dtype),
        wv=wqkv[..., 2 * inner:].astype(weight_dtype),
        wo=stack(lambda lyr: lyr["attn"]["wout"]).astype(weight_dtype),
        w1=stack(lambda lyr: lyr["ff"]["w1"]).astype(weight_dtype),
        b1=stack(lambda lyr: lyr["ff"]["b1"]),                       # (depth, 1, mlp)
        w2=stack(lambda lyr: lyr["ff"]["w2"]).astype(weight_dtype),
        vecs=vecs,                                                   # (depth, 6, D)
        final_ln=jnp.concatenate([params["final_g"], params["final_b"]], axis=0),  # (2, D)
    )


# -------------------------- deterministic param init --------------------------

def init_params(key, dim, depth, heads, dim_head, mlp_dim):
    inner = heads * dim_head
    layers = []
    for _ in range(depth):
        key, k1, k2, k3, k4, k5, k6 = jax.random.split(key, 7)
        attn = dict(
            g=jnp.ones((1, dim), jnp.float32),          # LayerNorm weight (ones)
            b=jnp.zeros((1, dim), jnp.float32),         # LayerNorm bias (zeros)
            wqkv=jax.random.normal(k1, (dim, 3 * inner), jnp.float32) * 0.02,
            wout=jax.random.normal(k2, (inner, dim), jnp.float32) * 0.02,
            bout=jax.random.normal(k3, (1, dim), jnp.float32) * 0.02,
        )
        ff = dict(
            g=jnp.ones((1, dim), jnp.float32),
            b=jnp.zeros((1, dim), jnp.float32),
            w1=jax.random.normal(k4, (dim, mlp_dim), jnp.float32) * 0.02,
            b1=jax.random.normal(k5, (1, mlp_dim), jnp.float32) * 0.02,
            w2=jax.random.normal(k6, (mlp_dim, dim), jnp.float32) * 0.02,
            b2=jnp.zeros((1, dim), jnp.float32),
        )
        layers.append(dict(attn=attn, ff=ff))
    return dict(
        layers=layers,
        final_g=jnp.ones((1, dim), jnp.float32),
        final_b=jnp.zeros((1, dim), jnp.float32),
    )


# ------------------------------ pure-JAX reference -----------------------------

def _ref_ln(x, g, b):
    mu = jnp.mean(x, axis=-1, keepdims=True)
    var = jnp.mean((x - mu) ** 2, axis=-1, keepdims=True)
    return (x - mu) / jnp.sqrt(var + EPS) * g + b


def reference_forward(x, params, *, heads, dim_head):
    for layer in params["layers"]:
        a = layer["attn"]
        xn = _ref_ln(x, a["g"], a["b"])
        qkv = xn @ a["wqkv"]
        q, k, v = jnp.split(qkv, 3, axis=-1)
        B, N, _ = x.shape

        def to_heads(t):
            return t.reshape(B, N, heads, dim_head).transpose(0, 2, 1, 3)
        q, k, v = map(to_heads, (q, k, v))
        dots = jnp.einsum("bhqd,bhkd->bhqk", q, k) * (dim_head ** -0.5)
        attn = jax.nn.softmax(dots, axis=-1)
        out = jnp.einsum("bhqk,bhkd->bhqd", attn, v)
        out = out.transpose(0, 2, 1, 3).reshape(B, N, heads * dim_head)
        x = out @ a["wout"] + a["bout"] + x
        f = layer["ff"]
        h = _ref_ln(x, f["g"], f["b"]) @ f["w1"] + f["b1"]
        h = 0.5 * h * (1.0 + jax.lax.erf(h * (2.0 ** -0.5)))
        x = h @ f["w2"] + f["b2"] + x
    return _ref_ln(x, params["final_g"], params["final_b"])


# ----------------------------------- main --------------------------------------

if __name__ == "__main__":
    B, N, DIM = 4, 8, 32
    DEPTH, HEADS, DIM_HEAD, MLP_DIM = 2, 4, 16, 64   # dropout=0.0 (inference: identity)
    BLOCK_B = 2                                      # batch elements per grid step

    key = jax.random.PRNGKey(0)
    kx, kp = jax.random.split(key)
    x = jax.random.normal(kx, (B, N, DIM), jnp.float32)
    params = init_params(kp, DIM, DEPTH, HEADS, DIM_HEAD, MLP_DIM)
    # weight_dtype=jnp.bfloat16 recommended for v6e/v7x production shapes; f32 here so
    # the strict numerical check against the f32 reference is meaningful.
    prepared = prepare_params(params, heads=HEADS, dim_head=DIM_HEAD,
                              weight_dtype=jnp.float32)

    fwd = jax.jit(functools.partial(transformer_forward, heads=HEADS,
                                    dim_head=DIM_HEAD, block_b=BLOCK_B))
    out = jax.block_until_ready(fwd(x, prepared))

    ref = jax.block_until_ready(reference_forward(x, params, heads=HEADS,
                                                  dim_head=DIM_HEAD))
    np.testing.assert_allclose(np.asarray(out), np.asarray(ref), rtol=1e-3, atol=1e-3)

    print("KERNEL_OK")
</pallas_src>

<mosaic_0001>
module attributes {stable_mosaic.version = 11 : i64} {
  func.func @vit_encoder_kernel(%arg0: i32, %arg1: i32, %arg2: memref<2x8x32xf32, #tpu.memory_space<vmem>>, %arg3: memref<1x32x64xf32, #tpu.memory_space<vmem>>, %arg4: memref<1x32x64xf32, #tpu.memory_space<vmem>>, %arg5: memref<1x32x64xf32, #tpu.memory_space<vmem>>, %arg6: memref<1x64x32xf32, #tpu.memory_space<vmem>>, %arg7: memref<1x32x64xf32, #tpu.memory_space<vmem>>, %arg8: memref<1x1x64xf32, #tpu.memory_space<vmem>>, %arg9: memref<1x64x32xf32, #tpu.memory_space<vmem>>, %arg10: memref<1x6x32xf32, #tpu.memory_space<vmem>>, %arg11: memref<2x32xf32, #tpu.memory_space<vmem>>, %arg12: memref<2x8x32xf32, #tpu.memory_space<vmem>>, %arg13: memref<16x32xf32, #tpu.memory_space<vmem>>) attributes {dimension_semantics = [#tpu.dimension_semantics<parallel>, #tpu.dimension_semantics<arbitrary>], iteration_bounds = array<i64: 2, 2>, scalar_prefetch = 0 : i64, scratch_operands = 1 : i64, tpu.core_type = #tpu.core_type<tc>, window_params = [{transform_indices = @transform_0, window_bounds = array<i64: 2, 8, 32>}, {transform_indices = @transform_1, window_bounds = array<i64: 1, 32, 64>}, {transform_indices = @transform_2, window_bounds = array<i64: 1, 32, 64>}, {transform_indices = @transform_3, window_bounds = array<i64: 1, 32, 64>}, {transform_indices = @transform_4, window_bounds = array<i64: 1, 64, 32>}, {transform_indices = @transform_5, window_bounds = array<i64: 1, 32, 64>}, {transform_indices = @transform_6, window_bounds = array<i64: 1, 1, 64>}, {transform_indices = @transform_7, window_bounds = array<i64: 1, 64, 32>}, {transform_indices = @transform_8, window_bounds = array<i64: 1, 6, 32>}, {pipeline_mode = #tpu.pipeline_mode<synchronous>, transform_indices = @transform_9, window_bounds = array<i64: 2, 32>}, {transform_indices = @transform_10, window_bounds = array<i64: 2, 8, 32>}]} {
    %c0_i32 = arith.constant 0 : i32
    %0 = arith.cmpi eq, %arg1, %c0_i32 : i32
    %1 = arith.extui %0 : i1 to i32
    %c0_i32_0 = arith.constant 0 : i32
    %2 = arith.cmpi ne, %1, %c0_i32_0 : i32
    scf.if %2 {
      %c0_51 = arith.constant 0 : index
      %c0_52 = arith.constant 0 : index
      %c0_53 = arith.constant 0 : index
      %120 = vector.load %arg2[%c0_51, %c0_52, %c0_53] : memref<2x8x32xf32, #tpu.memory_space<vmem>>, vector<2x8x32xf32>
      %121 = vector.shape_cast %120 : vector<2x8x32xf32> to vector<16x32xf32>
      %c0_54 = arith.constant 0 : index
      %c0_55 = arith.constant 0 : index
      %122 = vector.load %arg13[%c0_54, %c0_55] : memref<16x32xf32, #tpu.memory_space<vmem>>, vector<16x32xf32>
      tpu.vector_store %arg13[%c0_54, %c0_55], %121 {strides = array<i32>} : memref<16x32xf32, #tpu.memory_space<vmem>>, vector<16x32xf32>,
    } else {
    }
    %c0 = arith.constant 0 : index
    %c0_1 = arith.constant 0 : index
    %3 = vector.load %arg13[%c0, %c0_1] : memref<16x32xf32, #tpu.memory_space<vmem>>, vector<16x32xf32>
    %c0_2 = arith.constant 0 : index
    %c0_3 = arith.constant 0 : index
    %c0_4 = arith.constant 0 : index
    %4 = vector.load %arg10[%c0_2, %c0_3, %c0_4] : memref<1x6x32xf32, #tpu.memory_space<vmem>>, vector<1x6x32xf32>
    %5 = vector.shape_cast %4 : vector<1x6x32xf32> to vector<6x32xf32>
    %6 = vector.extract_strided_slice %5 {offsets = [0, 0], sizes = [1, 32], strides = [1, 1]} : vector<6x32xf32> to vector<1x32xf32>
    %7 = vector.extract_strided_slice %5 {offsets = [1, 0], sizes = [1, 32], strides = [1, 1]} : vector<6x32xf32> to vector<1x32xf32>
    %8 = vector.extract_strided_slice %5 {offsets = [2, 0], sizes = [1, 32], strides = [1, 1]} : vector<6x32xf32> to vector<1x32xf32>
    %9 = vector.extract_strided_slice %5 {offsets = [3, 0], sizes = [1, 32], strides = [1, 1]} : vector<6x32xf32> to vector<1x32xf32>
    %10 = vector.extract_strided_slice %5 {offsets = [4, 0], sizes = [1, 32], strides = [1, 1]} : vector<6x32xf32> to vector<1x32xf32>
    %11 = vector.extract_strided_slice %5 {offsets = [5, 0], sizes = [1, 32], strides = [1, 1]} : vector<6x32xf32> to vector<1x32xf32>
    %cst = arith.constant dense<0.000000e+00> : vector<16xf32>
    %12 = vector.multi_reduction <add>, %3, %cst [1] : vector<16x32xf32> to vector<16xf32>
    %13 = vector.shape_cast %12 : vector<16xf32> to vector<16x1xf32>
    %cst_5 = arith.constant 3.200000e+01 : f32
    %14 = vector.broadcast %cst_5 : f32 to vector<16x1xf32>
    %15 = arith.divf %13, %14 : vector<16x1xf32>
    %16 = vector.broadcast %15 : vector<16x1xf32> to vector<16x32xf32>
    %17 = arith.subf %3, %16 : vector<16x32xf32>
    %18 = arith.mulf %17, %17 : vector<16x32xf32>
    %cst_6 = arith.constant dense<0.000000e+00> : vector<16xf32>
    %19 = vector.multi_reduction <add>, %18, %cst_6 [1] : vector<16x32xf32> to vector<16xf32>
    %20 = vector.shape_cast %19 : vector<16xf32> to vector<16x1xf32>
    %cst_7 = arith.constant 3.200000e+01 : f32
    %21 = vector.broadcast %cst_7 : f32 to vector<16x1xf32>
    %22 = arith.divf %20, %21 : vector<16x1xf32>
    %23 = vector.broadcast %15 : vector<16x1xf32> to vector<16x32xf32>
    %24 = arith.subf %3, %23 : vector<16x32xf32>
    %cst_8 = arith.constant 9.99999974E-6 : f32
    %25 = vector.broadcast %cst_8 : f32 to vector<16x1xf32>
    %26 = arith.addf %22, %25 : vector<16x1xf32>
    %27 = math.rsqrt %26 : vector<16x1xf32>
    %28 = vector.broadcast %27 : vector<16x1xf32> to vector<16x32xf32>
    %29 = arith.mulf %24, %28 : vector<16x32xf32>
    %30 = vector.broadcast %6 : vector<1x32xf32> to vector<16x32xf32>
    %31 = arith.mulf %29, %30 : vector<16x32xf32>
    %32 = vector.broadcast %7 : vector<1x32xf32> to vector<16x32xf32>
    %33 = arith.addf %31, %32 : vector<16x32xf32>
    %c0_9 = arith.constant 0 : index
    %c0_10 = arith.constant 0 : index
    %c0_11 = arith.constant 0 : index
    %34 = vector.load %arg3[%c0_9, %c0_10, %c0_11] : memref<1x32x64xf32, #tpu.memory_space<vmem>>, vector<1x32x64xf32>
    %35 = vector.shape_cast %34 : vector<1x32x64xf32> to vector<32x64xf32>
    %cst_12 = arith.constant dense<0.000000e+00> : vector<16x64xf32>
    %36 = tpu.matmul %33, %35, %cst_12 {dimension_numbers = #tpu.dot_dimension_numbers<[1], [0], [0], [1], [0, 0, 1, 1], [], []>} : vector<16x32xf32>, vector<32x64xf32>, vector<16x64xf32> -> vector<16x64xf32>
    %c0_13 = arith.constant 0 : index
    %c0_14 = arith.constant 0 : index
    %c0_15 = arith.constant 0 : index
    %37 = vector.load %arg4[%c0_13, %c0_14, %c0_15] : memref<1x32x64xf32, #tpu.memory_space<vmem>>, vector<1x32x64xf32>
    %38 = vector.shape_cast %37 : vector<1x32x64xf32> to vector<32x64xf32>
    %cst_16 = arith.constant dense<0.000000e+00> : vector<16x64xf32>
    %39 = tpu.matmul %33, %38, %cst_16 {dimension_numbers = #tpu.dot_dimension_numbers<[1], [0], [0], [1], [0, 0, 1, 1], [], []>} : vector<16x32xf32>, vector<32x64xf32>, vector<16x64xf32> -> vector<16x64xf32>
    %c0_17 = arith.constant 0 : index
    %c0_18 = arith.constant 0 : index
    %c0_19 = arith.constant 0 : index
    %40 = vector.load %arg5[%c0_17, %c0_18, %c0_19] : memref<1x32x64xf32, #tpu.memory_space<vmem>>, vector<1x32x64xf32>
    %41 = vector.shape_cast %40 : vector<1x32x64xf32> to vector<32x64xf32>
    %cst_20 = arith.constant dense<0.000000e+00> : vector<16x64xf32>
    %42 = tpu.matmul %33, %41, %cst_20 {dimension_numbers = #tpu.dot_dimension_numbers<[1], [0], [0], [1], [0, 0, 1, 1], [], []>} : vector<16x32xf32>, vector<32x64xf32>, vector<16x64xf32> -> vector<16x64xf32>
    %43 = vector.shape_cast %36 : vector<16x64xf32> to vector<16x4x16xf32>
    %44 = tpu.transpose %43, [1, 0, 2] : vector<16x4x16xf32> -> vector<4x16x16xf32>
    %45 = vector.shape_cast %44 : vector<4x16x16xf32> to vector<8x8x16xf32>
    %46 = vector.shape_cast %39 : vector<16x64xf32> to vector<16x4x16xf32>
    %47 = tpu.transpose %46, [1, 0, 2] : vector<16x4x16xf32> -> vector<4x16x16xf32>
    %48 = vector.shape_cast %47 : vector<4x16x16xf32> to vector<8x8x16xf32>
    %49 = vector.shape_cast %42 : vector<16x64xf32> to vector<16x4x16xf32>
    %50 = tpu.transpose %49, [1, 0, 2] : vector<16x4x16xf32> -> vector<4x16x16xf32>
    %51 = vector.shape_cast %50 : vector<4x16x16xf32> to vector<8x8x16xf32>
    "tpu.trace_start"() <{level = 10 : i32, message = "gqd,gkd->gqk"}> : () -> ()
    %cst_21 = arith.constant dense<0.000000e+00> : vector<8x8x8xf32>
    %52 = tpu.matmul %45, %48, %cst_21 {dimension_numbers = #tpu.dot_dimension_numbers<[2], [2], [1], [1], [0, 0, 0, 1, 1, 1], [0], [0]>} : vector<8x8x16xf32>, vector<8x8x16xf32>, vector<8x8x8xf32> -> vector<8x8x8xf32>
    "tpu.trace_stop"() : () -> ()
    %cst_22 = arith.constant dense<0xFF800000> : vector<8x8xf32>
    %53 = vector.multi_reduction <maximumf>, %52, %cst_22 [2] : vector<8x8x8xf32> to vector<8x8xf32>
    %54 = vector.shape_cast %53 : vector<8x8xf32> to vector<8x8x1xf32>
    %55 = vector.broadcast %54 : vector<8x8x1xf32> to vector<8x8x8xf32>
    %56 = arith.subf %52, %55 : vector<8x8x8xf32>
    %57 = math.exp %56 : vector<8x8x8xf32>
    %cst_23 = arith.constant dense<0.000000e+00> : vector<8x8xf32>
    %58 = vector.multi_reduction <add>, %57, %cst_23 [2] : vector<8x8x8xf32> to vector<8x8xf32>
    %59 = vector.shape_cast %58 : vector<8x8xf32> to vector<8x8x1xf32>
    "tpu.trace_start"() <{level = 10 : i32, message = "gqk,gkd->gqd"}> : () -> ()
    %cst_24 = arith.constant dense<0.000000e+00> : vector<8x8x16xf32>
    %60 = tpu.matmul %57, %51, %cst_24 {dimension_numbers = #tpu.dot_dimension_numbers<[2], [1], [1], [2], [0, 0, 0, 1, 1, 2], [0], [0]>} : vector<8x8x8xf32>, vector<8x8x16xf32>, vector<8x8x16xf32> -> vector<8x8x16xf32>
    "tpu.trace_stop"() : () -> ()
    %61 = tpu.reciprocal %59 : vector<8x8x1xf32> -> vector<8x8x1xf32>
    %62 = vector.broadcast %61 : vector<8x8x1xf32> to vector<8x8x16xf32>
    %63 = arith.mulf %60, %62 : vector<8x8x16xf32>
    %64 = vector.shape_cast %63 : vector<8x8x16xf32> to vector<4x16x16xf32>
    %65 = tpu.transpose %64, [1, 0, 2] : vector<4x16x16xf32> -> vector<16x4x16xf32>
    %66 = vector.shape_cast %65 : vector<16x4x16xf32> to vector<16x64xf32>
    %c0_25 = arith.constant 0 : index
    %c0_26 = arith.constant 0 : index
    %c0_27 = arith.constant 0 : index
    %67 = vector.load %arg6[%c0_25, %c0_26, %c0_27] : memref<1x64x32xf32, #tpu.memory_space<vmem>>, vector<1x64x32xf32>
    %68 = vector.shape_cast %67 : vector<1x64x32xf32> to vector<64x32xf32>
    %cst_28 = arith.constant dense<0.000000e+00> : vector<16x32xf32>
    %69 = tpu.matmul %66, %68, %cst_28 {dimension_numbers = #tpu.dot_dimension_numbers<[1], [0], [0], [1], [0, 0, 1, 1], [], []>} : vector<16x64xf32>, vector<64x32xf32>, vector<16x32xf32> -> vector<16x32xf32>
    %70 = arith.addf %3, %69 : vector<16x32xf32>
    %71 = vector.broadcast %8 : vector<1x32xf32> to vector<16x32xf32>
    %72 = arith.addf %70, %71 : vector<16x32xf32>
    %cst_29 = arith.constant dense<0.000000e+00> : vector<16xf32>
    %73 = vector.multi_reduction <add>, %72, %cst_29 [1] : vector<16x32xf32> to vector<16xf32>
    %74 = vector.shape_cast %73 : vector<16xf32> to vector<16x1xf32>
    %cst_30 = arith.constant 3.200000e+01 : f32
    %75 = vector.broadcast %cst_30 : f32 to vector<16x1xf32>
    %76 = arith.divf %74, %75 : vector<16x1xf32>
    %77 = vector.broadcast %76 : vector<16x1xf32> to vector<16x32xf32>
    %78 = arith.subf %72, %77 : vector<16x32xf32>
    %79 = arith.mulf %78, %78 : vector<16x32xf32>
    %cst_31 = arith.constant dense<0.000000e+00> : vector<16xf32>
    %80 = vector.multi_reduction <add>, %79, %cst_31 [1] : vector<16x32xf32> to vector<16xf32>
    %81 = vector.shape_cast %80 : vector<16xf32> to vector<16x1xf32>
    %cst_32 = arith.constant 3.200000e+01 : f32
    %82 = vector.broadcast %cst_32 : f32 to vector<16x1xf32>
    %83 = arith.divf %81, %82 : vector<16x1xf32>
    %84 = vector.broadcast %76 : vector<16x1xf32> to vector<16x32xf32>
    %85 = arith.subf %72, %84 : vector<16x32xf32>
    %cst_33 = arith.constant 9.99999974E-6 : f32
    %86 = vector.broadcast %cst_33 : f32 to vector<16x1xf32>
    %87 = arith.addf %83, %86 : vector<16x1xf32>
    %88 = math.rsqrt %87 : vector<16x1xf32>
    %89 = vector.broadcast %88 : vector<16x1xf32> to vector<16x32xf32>
    %90 = arith.mulf %85, %89 : vector<16x32xf32>
    %91 = vector.broadcast %9 : vector<1x32xf32> to vector<16x32xf32>
    %92 = arith.mulf %90, %91 : vector<16x32xf32>
    %93 = vector.broadcast %10 : vector<1x32xf32> to vector<16x32xf32>
    %94 = arith.addf %92, %93 : vector<16x32xf32>
    %c0_34 = arith.constant 0 : index
    %c0_35 = arith.constant 0 : index
    %c0_36 = arith.constant 0 : index
    %95 = vector.load %arg7[%c0_34, %c0_35, %c0_36] : memref<1x32x64xf32, #tpu.memory_space<vmem>>, vector<1x32x64xf32>
    %96 = vector.shape_cast %95 : vector<1x32x64xf32> to vector<32x64xf32>
    %cst_37 = arith.constant dense<0.000000e+00> : vector<16x64xf32>
    %97 = tpu.matmul %94, %96, %cst_37 {dimension_numbers = #tpu.dot_dimension_numbers<[1], [0], [0], [1], [0, 0, 1, 1], [], []>} : vector<16x32xf32>, vector<32x64xf32>, vector<16x64xf32> -> vector<16x64xf32>
    %c0_38 = arith.constant 0 : index
    %c0_39 = arith.constant 0 : index
    %c0_40 = arith.constant 0 : index
    %98 = vector.load %arg8[%c0_38, %c0_39, %c0_40] : memref<1x1x64xf32, #tpu.memory_space<vmem>>, vector<1x1x64xf32>
    %99 = vector.shape_cast %98 : vector<1x1x64xf32> to vector<1x64xf32>
    %100 = vector.broadcast %99 : vector<1x64xf32> to vector<16x64xf32>
    %101 = arith.addf %97, %100 : vector<16x64xf32>
    %cst_41 = arith.constant 5.000000e-01 : f32
    %102 = vector.broadcast %cst_41 : f32 to vector<16x64xf32>
    %103 = arith.mulf %102, %101 : vector<16x64xf32>
    %cst_42 = arith.constant 0.707106769 : f32
    %104 = vector.broadcast %cst_42 : f32 to vector<16x64xf32>
    %105 = arith.mulf %101, %104 : vector<16x64xf32>
    %106 = math.erf %105 : vector<16x64xf32>
    %cst_43 = arith.constant 1.000000e+00 : f32
    %107 = vector.broadcast %cst_43 : f32 to vector<16x64xf32>
    %108 = arith.addf %107, %106 : vector<16x64xf32>
    %109 = arith.mulf %103, %108 : vector<16x64xf32>
    %c0_44 = arith.constant 0 : index
    %c0_45 = arith.constant 0 : index
    %c0_46 = arith.constant 0 : index
    %110 = vector.load %arg9[%c0_44, %c0_45, %c0_46] : memref<1x64x32xf32, #tpu.memory_space<vmem>>, vector<1x64x32xf32>
    %111 = vector.shape_cast %110 : vector<1x64x32xf32> to vector<64x32xf32>
    %cst_47 = arith.constant dense<0.000000e+00> : vector<16x32xf32>
    %112 = tpu.matmul %109, %111, %cst_47 {dimension_numbers = #tpu.dot_dimension_numbers<[1], [0], [0], [1], [0, 0, 1, 1], [], []>} : vector<16x64xf32>, vector<64x32xf32>, vector<16x32xf32> -> vector<16x32xf32>
    %113 = vector.broadcast %11 : vector<1x32xf32> to vector<16x32xf32>
    %114 = arith.addf %112, %113 : vector<16x32xf32>
    %115 = arith.addf %72, %114 : vector<16x32xf32>
    %c0_48 = arith.constant 0 : index
    %c0_49 = arith.constant 0 : index
    %116 = vector.load %arg13[%c0_48, %c0_49] : memref<16x32xf32, #tpu.memory_space<vmem>>, vector<16x32xf32>
    tpu.vector_store %arg13[%c0_48, %c0_49], %115 {strides = array<i32>} : memref<16x32xf32, #tpu.memory_space<vmem>>, vector<16x32xf32>,
    %c1_i32 = arith.constant 1 : i32
    %117 = arith.cmpi eq, %arg1, %c1_i32 : i32
    %118 = arith.extui %117 : i1 to i32
    %c0_i32_50 = arith.constant 0 : i32
    %119 = arith.cmpi ne, %118, %c0_i32_50 : i32
    scf.if %119 {
      %c0_51 = arith.constant 0 : index
      %c0_52 = arith.constant 0 : index
      %120 = vector.load %arg11[%c0_51, %c0_52] : memref<2x32xf32, #tpu.memory_space<vmem>>, vector<1x32xf32>
      %c1 = arith.constant 1 : index
      %c0_53 = arith.constant 0 : index
      %121 = vector.load %arg11[%c1, %c0_53] : memref<2x32xf32, #tpu.memory_space<vmem>>, vector<1x32xf32>
      %cst_54 = arith.constant dense<0.000000e+00> : vector<16xf32>
      %122 = vector.multi_reduction <add>, %115, %cst_54 [1] : vector<16x32xf32> to vector<16xf32>
      %123 = vector.shape_cast %122 : vector<16xf32> to vector<16x1xf32>
      %cst_55 = arith.constant 3.200000e+01 : f32
      %124 = vector.broadcast %cst_55 : f32 to vector<16x1xf32>
      %125 = arith.divf %123, %124 : vector<16x1xf32>
      %126 = vector.broadcast %125 : vector<16x1xf32> to vector<16x32xf32>
      %127 = arith.subf %115, %126 : vector<16x32xf32>
      %128 = arith.mulf %127, %127 : vector<16x32xf32>
      %cst_56 = arith.constant dense<0.000000e+00> : vector<16xf32>
      %129 = vector.multi_reduction <add>, %128, %cst_56 [1] : vector<16x32xf32> to vector<16xf32>
      %130 = vector.shape_cast %129 : vector<16xf32> to vector<16x1xf32>
      %cst_57 = arith.constant 3.200000e+01 : f32
      %131 = vector.broadcast %cst_57 : f32 to vector<16x1xf32>
      %132 = arith.divf %130, %131 : vector<16x1xf32>
      %133 = vector.broadcast %125 : vector<16x1xf32> to vector<16x32xf32>
      %134 = arith.subf %115, %133 : vector<16x32xf32>
      %cst_58 = arith.constant 9.99999974E-6 : f32
      %135 = vector.broadcast %cst_58 : f32 to vector<16x1xf32>
      %136 = arith.addf %132, %135 : vector<16x1xf32>
      %137 = math.rsqrt %136 : vector<16x1xf32>
      %138 = vector.broadcast %137 : vector<16x1xf32> to vector<16x32xf32>
      %139 = arith.mulf %134, %138 : vector<16x32xf32>
      %140 = vector.broadcast %120 : vector<1x32xf32> to vector<16x32xf32>
      %141 = arith.mulf %139, %140 : vector<16x32xf32>
      %142 = vector.broadcast %121 : vector<1x32xf32> to vector<16x32xf32>
      %143 = arith.addf %141, %142 : vector<16x32xf32>
      %144 = vector.shape_cast %143 : vector<16x32xf32> to vector<2x8x32xf32>
      %c0_59 = arith.constant 0 : index
      %c0_60 = arith.constant 0 : index
      %c0_61 = arith.constant 0 : index
      %145 = vector.load %arg12[%c0_59, %c0_60, %c0_61] : memref<2x8x32xf32, #tpu.memory_space<vmem>>, vector<2x8x32xf32>
      tpu.vector_store %arg12[%c0_59, %c0_60, %c0_61], %144 {strides = array<i32>} : memref<2x8x32xf32, #tpu.memory_space<vmem>>, vector<2x8x32xf32>,
    } else {
    }
    return
  }
  func.func @transform_0(%arg0: i32, %arg1: i32) -> (i32, i32, i32) {
    %c0_i32 = arith.constant 0 : i32
    %c0_i32_0 = arith.constant 0 : i32
    %c0_i32_1 = arith.constant 0 : i32
    return %arg0, %c0_i32, %c0_i32_0 : i32, i32, i32
  }
  func.func @transform_1(%arg0: i32, %arg1: i32) -> (i32, i32, i32) {
    %c0_i32 = arith.constant 0 : i32
    %c0_i32_0 = arith.constant 0 : i32
    %c0_i32_1 = arith.constant 0 : i32
    return %arg1, %c0_i32, %c0_i32_0 : i32, i32, i32
  }
  func.func @transform_2(%arg0: i32, %arg1: i32) -> (i32, i32, i32) {
    %c0_i32 = arith.constant 0 : i32
    %c0_i32_0 = arith.constant 0 : i32
    %c0_i32_1 = arith.constant 0 : i32
    return %arg1, %c0_i32, %c0_i32_0 : i32, i32, i32
  }
  func.func @transform_3(%arg0: i32, %arg1: i32) -> (i32, i32, i32) {
    %c0_i32 = arith.constant 0 : i32
    %c0_i32_0 = arith.constant 0 : i32
    %c0_i32_1 = arith.constant 0 : i32
    return %arg1, %c0_i32, %c0_i32_0 : i32, i32, i32
  }
  func.func @transform_4(%arg0: i32, %arg1: i32) -> (i32, i32, i32) {
    %c0_i32 = arith.constant 0 : i32
    %c0_i32_0 = arith.constant 0 : i32
    %c0_i32_1 = arith.constant 0 : i32
    return %arg1, %c0_i32, %c0_i32_0 : i32, i32, i32
  }
  func.func @transform_5(%arg0: i32, %arg1: i32) -> (i32, i32, i32) {
    %c0_i32 = arith.constant 0 : i32
    %c0_i32_0 = arith.constant 0 : i32
    %c0_i32_1 = arith.constant 0 : i32
    return %arg1, %c0_i32, %c0_i32_0 : i32, i32, i32
  }
  func.func @transform_6(%arg0: i32, %arg1: i32) -> (i32, i32, i32) {
    %c0_i32 = arith.constant 0 : i32
    %c0_i32_0 = arith.constant 0 : i32
    %c0_i32_1 = arith.constant 0 : i32
    return %arg1, %c0_i32, %c0_i32_0 : i32, i32, i32
  }
  func.func @transform_7(%arg0: i32, %arg1: i32) -> (i32, i32, i32) {
    %c0_i32 = arith.constant 0 : i32
    %c0_i32_0 = arith.constant 0 : i32
    %c0_i32_1 = arith.constant 0 : i32
    return %arg1, %c0_i32, %c0_i32_0 : i32, i32, i32
  }
  func.func @transform_8(%arg0: i32, %arg1: i32) -> (i32, i32, i32) {
    %c0_i32 = arith.constant 0 : i32
    %c0_i32_0 = arith.constant 0 : i32
    %c0_i32_1 = arith.constant 0 : i32
    return %arg1, %c0_i32, %c0_i32_0 : i32, i32, i32
  }
  func.func @transform_9(%arg0: i32, %arg1: i32) -> (i32, i32) {
    %c0_i32 = arith.constant 0 : i32
    %c0_i32_0 = arith.constant 0 : i32
    %c0_i32_1 = arith.constant 0 : i32
    return %c0_i32, %c0_i32_0 : i32, i32
  }
  func.func @transform_10(%arg0: i32, %arg1: i32) -> (i32, i32, i32) {
    %c0_i32 = arith.constant 0 : i32
    %c0_i32_0 = arith.constant 0 : i32
    %c0_i32_1 = arith.constant 0 : i32
    return %arg0, %c0_i32, %c0_i32_0 : i32, i32, i32
  }
}

</mosaic_0001>

<llo_original>
// kernel: transformer_forward.1
$region0: #{transformer_forward.1}
  #allocation0 [shape = 'u32[]', space=smem, size = 0x4, offset = 0x4, fixed_abs, tag = 'smem constant byte address 0x4 - core index']
  #allocation1 [shape = 'u32[144,128]{1,0:T(1,128)}', space=vmem, size = 0x12000, scoped, tag = 'internal scratch']
  #allocation2 [shape = 'f32[16,32]{1,0:T(8,128)}', space=vmem, size = 0x2000, scoped, tag = 'scratch operand']
  %s0 = inlined_call_operand.vmem [shape: f32[4,8,32], index: 0, kind: input, shape index: {}]
  %s1 = inlined_call_operand.vmem [shape: f32[2,32,64], index: 1, kind: input, shape index: {}]
  %s2 = inlined_call_operand.vmem [shape: f32[2,32,64], index: 2, kind: input, shape index: {}]
  %s3 = inlined_call_operand.vmem [shape: f32[2,32,64], index: 3, kind: input, shape index: {}]
  %s4 = inlined_call_operand.vmem [shape: f32[2,64,32], index: 4, kind: input, shape index: {}]
  %s5 = inlined_call_operand.vmem [shape: f32[2,32,64], index: 5, kind: input, shape index: {}]
  %s6 = inlined_call_operand.vmem [shape: f32[2,1,64], index: 6, kind: input, shape index: {}]
  %s7 = inlined_call_operand.vmem [shape: f32[2,64,32], index: 7, kind: input, shape index: {}]
  %s8 = inlined_call_operand.vmem [shape: f32[2,6,32], index: 8, kind: input, shape index: {}]
  %s9 = inlined_call_operand.vmem [shape: f32[2,32], index: 9, kind: input, shape index: {}]
  %s10 = inlined_call_operand.hbm [shape: f32[4,8,32], index: 10, kind: output, shape index: {}]
  %s11 = sld [smem:[#allocation0]]
  $region81: #{transformer_forward.1} parent=0
    _
  %s13 = ssub.s32 1, %s11
  %s14 = scalar_select 0, %s13, %s11
  $region1: #{transformer_forward.1} parent=0
    #allocation3 [shape = 'u8[16384]{0}', space=vmem, size = 0x4000, scoped, tag = 'output window, operand 0']
    #allocation4 [shape = 's32[2]{0}', space=sflag, size = 0x8, scoped, tag = 'scoped memory for transformer_forward.1']
    %15 = vsyncpa [#allocation4], 0
    %s16 = scalar_lea.sflag [#allocation4], 1
    %17 = vsyncpa %s16, 0
    loop: start=0, step=1, limit=6
    $region2: #{transformer_forward.1} parent=1 // loop_pre_header
      _
    $region3: #{transformer_forward.1} parent=1 // loop_header
      %s19 = sphi 0, %s23
      %p20 = scmp.ge.s32.totalorder %s19, 6
      %s26 = sphi 0, %s38
      %s27 = sphi 0, %s34
      %s28 = sphi 0, %s26
      %s29 = sphi 0, %s27
      %s30 = sphi 0, %s28
      %s31 = sphi 0, %s29
      %s41 = sphi 0, %s43
      %s44 = sphi 0, %s41
      %s45 = sphi 0, %s44
      %s61 = sphi 0, %s45
      %s67 = sphi 0, %s69
      %s70 = sphi 0, %s67
      %s71 = sphi 0, %s70
      %s87 = sphi 0, %s71
      %s93 = sphi 0, %s95
      %s96 = sphi 0, %s93
      %s97 = sphi 0, %s96
      %s113 = sphi 0, %s97
      %s119 = sphi 0, %s121
      %s122 = sphi 0, %s119
      %s123 = sphi 0, %s122
      %s139 = sphi 0, %s123
      %s145 = sphi 0, %s147
      %s148 = sphi 0, %s145
      %s149 = sphi 0, %s148
      %s165 = sphi 0, %s149
      %s171 = sphi 0, %s173
      %s174 = sphi 0, %s171
      %s175 = sphi 0, %s174
      %s191 = sphi 0, %s175
      %s197 = sphi 0, %s199
      %s200 = sphi 0, %s197
      %s201 = sphi 0, %s200
      %s217 = sphi 0, %s201
      %s223 = sphi 0, %s225
      %s226 = sphi 0, %s223
      %s227 = sphi 0, %s226
      %s243 = sphi 0, %s227
      %s249 = sphi 0, %s251
      %s252 = sphi 0, %s249
      %s253 = sphi 0, %s252
      %s269 = sphi 0, %s253
      %s273 = sphi 0, %s273
      %s275 = sphi 0, %s273
      %s276 = sphi 0, %s275
      %s290 = sphi 0, %s276
      %s296 = sphi 0, %s298
      %s299 = sphi 0, %s296
      %s300 = sphi 0, %s299
      %s316 = sphi 0, %s300
    $region4: #{transformer_forward.1} parent=1 // loop_header_branch
      %22 = sbr.rel (%p20) target = $region8
    $region5: #{transformer_forward.1} parent=1 // loop_body
      %s24 = ssub.s32 %s19, 1
      %s25 = ssub.s32 %s19, 2
      %s32 = sadd.s32 1, %s27
      %p33 = scmp.ge.s32.totalorder %s32, 2
      %s34 = scalar_select %p33, 0, %s32
      %s35 = sadd.s32 1, %s26
      %s36 = scalar_select %p33, %s35, %s26
      %p37 = scmp.ge.s32.totalorder %s36, 2
      %s38 = scalar_select %p37, 0, %s36
      %s39 = ssub.s32 %s26, %s38
      %p40 = scmp.eq.s32.totalorder %s39, 0
      %s42 = sadd.s32 %s41, 1
      %s43 = scalar_select %p40, %s41, %s42
      %p46 = pneg %p40
      %p47 = scmp.eq.s32.totalorder %s19, 3
      %p48 = por %p46, %p47
      %p49 = scmp.ne.s32.totalorder %s41, %s44
      %p50 = scmp.eq.s32.totalorder %s19, 0
      %p51 = por %p49, %p50
      %p52 = scmp.ne.s32.totalorder %s41, %s44
      %p53 = scmp.eq.s32.totalorder %s24, 3
      %p54 = por %p52, %p53
      %p55 = scmp.ne.s32.totalorder %s44, %s45
      %p56 = scmp.eq.s32.totalorder %s24, 0
      %p57 = por %p55, %p56
      %p58 = scmp.ne.s32.totalorder %s44, %s45
      %p59 = scmp.eq.s32.totalorder %s25, 3
      %p60 = por %p58, %p59
      %p62 = scmp.ne.s32.totalorder %s45, %s61
      %p63 = scmp.eq.s32.totalorder %s25, 0
      %p64 = por %p62, %p63
      %s65 = ssub.s32 %s27, %s34
      %p66 = scmp.eq.s32.totalorder %s65, 0
      %s68 = sadd.s32 %s67, 1
      %s69 = scalar_select %p66, %s67, %s68
      %p72 = pneg %p66
      %p73 = scmp.eq.s32.totalorder %s19, 3
      %p74 = por %p72, %p73
      %p75 = scmp.ne.s32.totalorder %s67, %s70
      %p76 = scmp.eq.s32.totalorder %s19, 0
      %p77 = por %p75, %p76
      %p78 = scmp.ne.s32.totalorder %s67, %s70
      %p79 = scmp.eq.s32.totalorder %s24, 3
      %p80 = por %p78, %p79
      %p81 = scmp.ne.s32.totalorder %s70, %s71
      %p82 = scmp.eq.s32.totalorder %s24, 0
      %p83 = por %p81, %p82
      %p84 = scmp.ne.s32.totalorder %s70, %s71
      %p85 = scmp.eq.s32.totalorder %s25, 3
      %p86 = por %p84, %p85
      %p88 = scmp.ne.s32.totalorder %s71, %s87
      %p89 = scmp.eq.s32.totalorder %s25, 0
      %p90 = por %p88, %p89
      %s91 = ssub.s32 %s27, %s34
      %p92 = scmp.eq.s32.totalorder %s91, 0
      %s94 = sadd.s32 %s93, 1
      %s95 = scalar_select %p92, %s93, %s94
      %p98 = pneg %p92
      %p99 = scmp.eq.s32.totalorder %s19, 3
      %p100 = por %p98, %p99
      %p101 = scmp.ne.s32.totalorder %s93, %s96
      %p102 = scmp.eq.s32.totalorder %s19, 0
      %p103 = por %p101, %p102
      %p104 = scmp.ne.s32.totalorder %s93, %s96
      %p105 = scmp.eq.s32.totalorder %s24, 3
      %p106 = por %p104, %p105
      %p107 = scmp.ne.s32.totalorder %s96, %s97
      %p108 = scmp.eq.s32.totalorder %s24, 0
      %p109 = por %p107, %p108
      %p110 = scmp.ne.s32.totalorder %s96, %s97
      %p111 = scmp.eq.s32.totalorder %s25, 3
      %p112 = por %p110, %p111
      %p114 = scmp.ne.s32.totalorder %s97, %s113
      %p115 = scmp.eq.s32.totalorder %s25, 0
      %p116 = por %p114, %p115
      %s117 = ssub.s32 %s27, %s34
      %p118 = scmp.eq.s32.totalorder %s117, 0
      %s120 = sadd.s32 %s119, 1
      %s121 = scalar_select %p118, %s119, %s120
      %p124 = pneg %p118
      %p125 = scmp.eq.s32.totalorder %s19, 3
      %p126 = por %p124, %p125
      %p127 = scmp.ne.s32.totalorder %s119, %s122
      %p128 = scmp.eq.s32.totalorder %s19, 0
      %p129 = por %p127, %p128
      %p130 = scmp.ne.s32.totalorder %s119, %s122
      %p131 = scmp.eq.s32.totalorder %s24, 3
      %p132 = por %p130, %p131
      %p133 = scmp.ne.s32.totalorder %s122, %s123
      %p134 = scmp.eq.s32.totalorder %s24, 0
      %p135 = por %p133, %p134
      %p136 = scmp.ne.s32.totalorder %s122, %s123
      %p137 = scmp.eq.s32.totalorder %s25, 3
      %p138 = por %p136, %p137
      %p140 = scmp.ne.s32.totalorder %s123, %s139
      %p141 = scmp.eq.s32.totalorder %s25, 0
      %p142 = por %p140, %p141
      %s143 = ssub.s32 %s27, %s34
      %p144 = scmp.eq.s32.totalorder %s143, 0
      %s146 = sadd.s32 %s145, 1
      %s147 = scalar_select %p144, %s145, %s146
      %p150 = pneg %p144
      %p151 = scmp.eq.s32.totalorder %s19, 3
      %p152 = por %p150, %p151
      %p153 = scmp.ne.s32.totalorder %s145, %s148
      %p154 = scmp.eq.s32.totalorder %s19, 0
      %p155 = por %p153, %p154
      %p156 = scmp.ne.s32.totalorder %s145, %s148
      %p157 = scmp.eq.s32.totalorder %s24, 3
      %p158 = por %p156, %p157
      %p159 = scmp.ne.s32.totalorder %s148, %s149
      %p160 = scmp.eq.s32.totalorder %s24, 0
      %p161 = por %p159, %p160
      %p162 = scmp.ne.s32.totalorder %s148, %s149
      %p163 = scmp.eq.s32.totalorder %s25, 3
      %p164 = por %p162, %p163
      %p166 = scmp.ne.s32.totalorder %s149, %s165
      %p167 = scmp.eq.s32.totalorder %s25, 0
      %p168 = por %p166, %p167
      %s169 = ssub.s32 %s27, %s34
      %p170 = scmp.eq.s32.totalorder %s169, 0
      %s172 = sadd.s32 %s171, 1
      %s173 = scalar_select %p170, %s171, %s172
      %p176 = pneg %p170
      %p177 = scmp.eq.s32.totalorder %s19, 3
      %p178 = por %p176, %p177
      %p179 = scmp.ne.s32.totalorder %s171, %s174
      %p180 = scmp.eq.s32.totalorder %s19, 0
      %p181 = por %p179, %p180
      %p182 = scmp.ne.s32.totalorder %s171, %s174
      %p183 = scmp.eq.s32.totalorder %s24, 3
      %p184 = por %p182, %p183
      %p185 = scmp.ne.s32.totalorder %s174, %s175
      %p186 = scmp.eq.s32.totalorder %s24, 0
      %p187 = por %p185, %p186
      %p188 = scmp.ne.s32.totalorder %s174, %s175
      %p189 = scmp.eq.s32.totalorder %s25, 3
      %p190 = por %p188, %p189
      %p192 = scmp.ne.s32.totalorder %s175, %s191
      %p193 = scmp.eq.s32.totalorder %s25, 0
      %p194 = por %p192, %p193
      %s195 = ssub.s32 %s27, %s34
      %p196 = scmp.eq.s32.totalorder %s195, 0
      %s198 = sadd.s32 %s197, 1
      %s199 = scalar_select %p196, %s197, %s198
      %p202 = pneg %p196
      %p203 = scmp.eq.s32.totalorder %s19, 3
      %p204 = por %p202, %p203
      %p205 = scmp.ne.s32.totalorder %s197, %s200
      %p206 = scmp.eq.s32.totalorder %s19, 0
      %p207 = por %p205, %p206
      %p208 = scmp.ne.s32.totalorder %s197, %s200
      %p209 = scmp.eq.s32.totalorder %s24, 3
      %p210 = por %p208, %p209
      %p211 = scmp.ne.s32.totalorder %s200, %s201
      %p212 = scmp.eq.s32.totalorder %s24, 0
      %p213 = por %p211, %p212
      %p214 = scmp.ne.s32.totalorder %s200, %s201
      %p215 = scmp.eq.s32.totalorder %s25, 3
      %p216 = por %p214, %p215
      %p218 = scmp.ne.s32.totalorder %s201, %s217
      %p219 = scmp.eq.s32.totalorder %s25, 0
      %p220 = por %p218, %p219
      %s221 = ssub.s32 %s27, %s34
      %p222 = scmp.eq.s32.totalorder %s221, 0
      %s224 = sadd.s32 %s223, 1
      %s225 = scalar_select %p222, %s223, %s224
      %p228 = pneg %p222
      %p229 = scmp.eq.s32.totalorder %s19, 3
      %p230 = por %p228, %p229
      %p231 = scmp.ne.s32.totalorder %s223, %s226
      %p232 = scmp.eq.s32.totalorder %s19, 0
      %p233 = por %p231, %p232
      %p234 = scmp.ne.s32.totalorder %s223, %s226
      %p235 = scmp.eq.s32.totalorder %s24, 3
      %p236 = por %p234, %p235
      %p237 = scmp.ne.s32.totalorder %s226, %s227
      %p238 = scmp.eq.s32.totalorder %s24, 0
      %p239 = por %p237, %p238
      %p240 = scmp.ne.s32.totalorder %s226, %s227
      %p241 = scmp.eq.s32.totalorder %s25, 3
      %p242 = por %p240, %p241
      %p244 = scmp.ne.s32.totalorder %s227, %s243
      %p245 = scmp.eq.s32.totalorder %s25, 0
      %p246 = por %p244, %p245
      %s247 = ssub.s32 %s27, %s34
      %p248 = scmp.eq.s32.totalorder %s247, 0
      %s250 = sadd.s32 %s249, 1
      %s251 = scalar_select %p248, %s249, %s250
      %p254 = pneg %p248
      %p255 = scmp.eq.s32.totalorder %s19, 3
      %p256 = por %p254, %p255
      %p257 = scmp.ne.s32.totalorder %s249, %s252
      %p258 = scmp.eq.s32.totalorder %s19, 0
      %p259 = por %p257, %p258
      %p260 = scmp.ne.s32.totalorder %s249, %s252
      %p261 = scmp.eq.s32.totalorder %s24, 3
      %p262 = por %p260, %p261
      %p263 = scmp.ne.s32.totalorder %s252, %s253
      %p264 = scmp.eq.s32.totalorder %s24, 0
      %p265 = por %p263, %p264
      %p266 = scmp.ne.s32.totalorder %s252, %s253
      %p267 = scmp.eq.s32.totalorder %s25, 3
      %p268 = por %p266, %p267
      %p270 = scmp.ne.s32.totalorder %s253, %s269
      %p271 = scmp.eq.s32.totalorder %s25, 0
      %p272 = por %p270, %p271
      %s274 = sadd.s32 %s273, 1
      %p277 = scmp.eq.s32.totalorder %s19, 3
      %p278 = scmp.ne.s32.totalorder %s273, %s275
      %p279 = scmp.eq.s32.totalorder %s19, 0
      %p280 = por %p278, %p279
      %p281 = scmp.ne.s32.totalorder %s273, %s275
      %p282 = scmp.eq.s32.totalorder %s24, 3
      %p283 = por %p281, %p282
      %p284 = scmp.ne.s32.totalorder %s275, %s276
      %p285 = scmp.eq.s32.totalorder %s24, 0
      %p286 = por %p284, %p285
      %p287 = scmp.ne.s32.totalorder %s275, %s276
      %p288 = scmp.eq.s32.totalorder %s25, 3
      %p289 = por %p287, %p288
      %p291 = scmp.ne.s32.totalorder %s276, %s290
      %p292 = scmp.eq.s32.totalorder %s25, 0
      %p293 = por %p291, %p292
      %s294 = ssub.s32 %s26, %s38
      %p295 = scmp.eq.s32.totalorder %s294, 0
      %s297 = sadd.s32 %s296, 1
      %s298 = scalar_select %p295, %s296, %s297
      %p301 = pneg %p295
      %p302 = scmp.eq.s32.totalorder %s19, 3
      %p303 = por %p301, %p302
      %p304 = scmp.ne.s32.totalorder %s296, %s299
      %p305 = scmp.eq.s32.totalorder %s19, 0
      %p306 = por %p304, %p305
      %p307 = scmp.ne.s32.totalorder %s296, %s299
      %p308 = scmp.eq.s32.totalorder %s24, 3
      %p309 = por %p307, %p308
      %p310 = scmp.ne.s32.totalorder %s299, %s300
      %p311 = scmp.eq.s32.totalorder %s24, 0
      %p312 = por %p310, %p311
      %p313 = scmp.ne.s32.totalorder %s299, %s300
      %p314 = scmp.eq.s32.totalorder %s25, 3
      %p315 = por %p313, %p314
      %p317 = scmp.ne.s32.totalorder %s300, %s316
      %p318 = scmp.eq.s32.totalorder %s25, 0
      %p319 = por %p317, %p318
      %p320 = scmp.le.s32.totalorder 1, %s19
      %p321 = scmp.lt.s32.totalorder %s19, 5
      %p322 = pnand %p320, %p321
      %p323 = pneg %p322
      // Predicated region
      $region9: #{transformer_forward.1} parent=5 // pred_check
        _
      $region10: #{transformer_forward.1} parent=5 // pred_check_branch
        %325 = sbr.rel (%p322) target = $region12
      $region11: #{transformer_forward.1} parent=5 // pred_region
        %s326 = ssub.s32 %s19, 1
        // Predicated region
        $region13: #{transformer_forward.1} parent=11 // pred_check
          %p327 = pneg %p286
        $region14: #{transformer_forward.1} parent=11 // pred_check_branch
          %329 = sbr.rel (%p327) target = $region16
        $region15: #{transformer_forward.1} parent=11 // pred_region
          _
        $region16: #{transformer_forward.1} parent=11 // pred_fallthru
          _
      $region12: #{transformer_forward.1} parent=5 // pred_fallthru
        _
      %p330 = scmp.lt.s32.totalorder %s19, 4
      // Predicated region
      $region17: #{transformer_forward.1} parent=5 // pred_check
        %p331 = pneg %p330
      $region18: #{transformer_forward.1} parent=5 // pred_check_branch
        %333 = sbr.rel (%p331) target = $region20
      $region19: #{transformer_forward.1} parent=5 // pred_region
        // Predicated region
        $region21: #{transformer_forward.1} parent=19 // pred_check
          %p334 = pneg %p51
        $region22: #{transformer_forward.1} parent=19 // pred_check_branch
          %336 = sbr.rel (%p334) target = $region24
        $region23: #{transformer_forward.1} parent=19 // pred_region
          %s337 = smul.u32 2, %s26
          %p338 = scmp.lt.s32.totalorder %s337, 3
          %s339 = scalar_select %p338, %s337, 3
          %s340 = smul.addr %s339, 8
          %s341 = scalar_lea.vmem %s0, %s340
          %s342 = smul.u32 2, %s26
        $region24: #{transformer_forward.1} parent=19 // pred_fallthru
          _
        // Predicated region
        $region25: #{transformer_forward.1} parent=19 // pred_check
          %p343 = pneg %p77
        $region26: #{transformer_forward.1} parent=19 // pred_check_branch
          %345 = sbr.rel (%p343) target = $region28
        $region27: #{transformer_forward.1} parent=19 // pred_region
          %p346 = scmp.lt.s32.totalorder %s27, 1
          %s347 = scalar_select %p346, %s27, 1
          %s348 = smul.addr %s347, 4
          %s349 = smul.addr %s348, 8
          %s350 = scalar_lea.vmem %s1, %s349
        $region28: #{transformer_forward.1} parent=19 // pred_fallthru
          _
        // Predicated region
        $region29: #{transformer_forward.1} parent=19 // pred_check
          %p351 = pneg %p103
        $region30: #{transformer_forward.1} parent=19 // pred_check_branch
          %353 = sbr.rel (%p351) target = $region32
        $region31: #{transformer_forward.1} parent=19 // pred_region
          %p354 = scmp.lt.s32.totalorder %s27, 1
          %s355 = scalar_select %p354, %s27, 1
          %s356 = smul.addr %s355, 4
          %s357 = smul.addr %s356, 8
          %s358 = scalar_lea.vmem %s2, %s357
        $region32: #{transformer_forward.1} parent=19 // pred_fallthru
          _
        // Predicated region
        $region33: #{transformer_forward.1} parent=19 // pred_check
          %p359 = pneg %p129
        $region34: #{transformer_forward.1} parent=19 // pred_check_branch
          %361 = sbr.rel (%p359) target = $region36
        $region35: #{transformer_forward.1} parent=19 // pred_region
          %p362 = scmp.lt.s32.totalorder %s27, 1
          %s363 = scalar_select %p362, %s27, 1
          %s364 = smul.addr %s363, 4
          %s365 = smul.addr %s364, 8
          %s366 = scalar_lea.vmem %s3, %s365
        $region36: #{transformer_forward.1} parent=19 // pred_fallthru
          _
        // Predicated region
        $region37: #{transformer_forward.1} parent=19 // pred_check
          %p367 = pneg %p155
        $region38: #{transformer_forward.1} parent=19 // pred_check_branch
          %369 = sbr.rel (%p367) target = $region40
        $region39: #{transformer_forward.1} parent=19 // pred_region
          %p370 = scmp.lt.s32.totalorder %s27, 1
          %s371 = scalar_select %p370, %s27, 1
          %s372 = smul.addr %s371, 8
          %s373 = smul.addr %s372, 8
          %s374 = scalar_lea.vmem %s4, %s373
        $region40: #{transformer_forward.1} parent=19 // pred_fallthru
          _
        // Predicated region
        $region41: #{transformer_forward.1} parent=19 // pred_check
          %p375 = pneg %p181
        $region42: #{transformer_forward.1} parent=19 // pred_check_branch
          %377 = sbr.rel (%p375) target = $region44
        $region43: #{transformer_forward.1} parent=19 // pred_region
          %p378 = scmp.lt.s32.totalorder %s27, 1
          %s379 = scalar_select %p378, %s27, 1
          %s380 = smul.addr %s379, 4
          %s381 = smul.addr %s380, 8
          %s382 = scalar_lea.vmem %s5, %s381
        $region44: #{transformer_forward.1} parent=19 // pred_fallthru
          _
        // Predicated region
        $region45: #{transformer_forward.1} parent=19 // pred_check
          %p383 = pneg %p207
        $region46: #{transformer_forward.1} parent=19 // pred_check_branch
          %385 = sbr.rel (%p383) target = $region48
        $region47: #{transformer_forward.1} parent=19 // pred_region
          %p386 = scmp.lt.s32.totalorder %s27, 1
          %s387 = scalar_select %p386, %s27, 1
          %s388 = scalar_lea.vmem %s6, %s387
        $region48: #{transformer_forward.1} parent=19 // pred_fallthru
          _
        // Predicated region
        $region49: #{transformer_forward.1} parent=19 // pred_check
          %p389 = pneg %p233
        $region50: #{transformer_forward.1} parent=19 // pred_check_branch
          %391 = sbr.rel (%p389) target = $region52
        $region51: #{transformer_forward.1} parent=19 // pred_region
          %p392 = scmp.lt.s32.totalorder %s27, 1
          %s393 = scalar_select %p392, %s27, 1
          %s394 = smul.addr %s393, 8
          %s395 = smul.addr %s394, 8
          %s396 = scalar_lea.vmem %s7, %s395
        $region52: #{transformer_forward.1} parent=19 // pred_fallthru
          _
        // Predicated region
        $region53: #{transformer_forward.1} parent=19 // pred_check
          %p397 = pneg %p259
        $region54: #{transformer_forward.1} parent=19 // pred_check_branch
          %399 = sbr.rel (%p397) target = $region56
        $region55: #{transformer_forward.1} parent=19 // pred_region
          %p400 = scmp.lt.s32.totalorder %s27, 1
          %s401 = scalar_select %p400, %s27, 1
          %s402 = smul.addr %s401, 8
          %s403 = scalar_lea.vmem %s8, %s402
        $region56: #{transformer_forward.1} parent=19 // pred_fallthru
          _
      $region20: #{transformer_forward.1} parent=5 // pred_fallthru
        _
      %p404 = scmp.le.s32.totalorder 1, %s19
      %p405 = scmp.lt.s32.totalorder %s19, 5
      %p406 = pnand %p404, %p405
      %p407 = pneg %p406
      // Predicated region
      $region57: #{transformer_forward.1} parent=5 // pred_check
        _
      $region58: #{transformer_forward.1} parent=5 // pred_check_branch
        %409 = sbr.rel (%p406) target = $region60
      $region59: #{transformer_forward.1} parent=5 // pred_region
        %s410 = ssub.s32 %s19, 1
        %s411 = smul.u32 2, %s28
        %p412 = scmp.lt.s32.totalorder %s411, 3
        %s413 = scalar_select %p412, %s411, 3
        %s414 = smul.addr %s413, 8
        %s415 = scalar_lea.vmem %s0, %s414
        %p416 = pneg %p57
        %p417 = pneg %p54
        %p418 = scmp.lt.s32.totalorder %s29, 1
        %s419 = scalar_select %p418, %s29, 1
        %s420 = smul.addr %s419, 4
        %s421 = smul.addr %s420, 8
        %s422 = scalar_lea.vmem %s1, %s421
        %p423 = pneg %p83
        %p424 = pneg %p80
        %p425 = scmp.lt.s32.totalorder %s29, 1
        %s426 = scalar_select %p425, %s29, 1
        %s427 = smul.addr %s426, 4
        %s428 = smul.addr %s427, 8
        %s429 = scalar_lea.vmem %s2, %s428
        %p430 = pneg %p109
        %p431 = pneg %p106
        %p432 = scmp.lt.s32.totalorder %s29, 1
        %s433 = scalar_select %p432, %s29, 1
        %s434 = smul.addr %s433, 4
        %s435 = smul.addr %s434, 8
        %s436 = scalar_lea.vmem %s3, %s435
        %p437 = pneg %p135
        %p438 = pneg %p132
        %p439 = scmp.lt.s32.totalorder %s29, 1
        %s440 = scalar_select %p439, %s29, 1
        %s441 = smul.addr %s440, 8
        %s442 = smul.addr %s441, 8
        %s443 = scalar_lea.vmem %s4, %s442
        %p444 = pneg %p161
        %p445 = pneg %p158
        %p446 = scmp.lt.s32.totalorder %s29, 1
        %s447 = scalar_select %p446, %s29, 1
        %s448 = smul.addr %s447, 4
        %s449 = smul.addr %s448, 8
        %s450 = scalar_lea.vmem %s5, %s449
        %p451 = pneg %p187
        %p452 = pneg %p184
        %p453 = scmp.lt.s32.totalorder %s29, 1
        %s454 = scalar_select %p453, %s29, 1
        %s455 = scalar_lea.vmem %s6, %s454
        %p456 = pneg %p213
        %p457 = pneg %p210
        %p458 = scmp.lt.s32.totalorder %s29, 1
        %s459 = scalar_select %p458, %s29, 1
        %s460 = smul.addr %s459, 8
        %s461 = smul.addr %s460, 8
        %s462 = scalar_lea.vmem %s7, %s461
        %p463 = pneg %p239
        %p464 = pneg %p236
        %p465 = scmp.lt.s32.totalorder %s29, 1
        %s466 = scalar_select %p465, %s29, 1
        %s467 = smul.addr %s466, 8
        %s468 = scalar_lea.vmem %s8, %s467
        %p469 = pneg %p265
        %p470 = pneg %p262
        %p471 = pneg %p286
        %p472 = pneg %p283
        %p473 = pneg %p312
        %p474 = pneg %p309
        %s475 = sand.u32 %s299, 1
        %s476 = scalar_lea.sflag [#allocation4], %s475
        %s477 = sand.u32 %s299, 1
        %s478 = smul.addr %s477, 16
        %s479 = scalar_lea.vmem [#allocation3], %s478
        %s480 = smul.u32 2, %s28
        %p481 = scmp.lt.s32.totalorder %s480, 3
        %s482 = scalar_select %p481, %s480, 3
        %s483 = smul.addr %s482, 8
        %s484 = scalar_lea.vmem %s0, %s483
        %s485 = smul.u32 2, %s28
        %p486 = scmp.lt.s32.totalorder %s29, 1
        %s487 = scalar_select %p486, %s29, 1
        %s488 = smul.addr %s487, 4
        %s489 = smul.addr %s488, 8
        %s490 = scalar_lea.vmem %s1, %s489
        %p491 = scmp.lt.s32.totalorder %s29, 1
        %s492 = scalar_select %p491, %s29, 1
        %s493 = smul.addr %s492, 4
        %s494 = smul.addr %s493, 8
        %s495 = scalar_lea.vmem %s2, %s494
        %p496 = scmp.lt.s32.totalorder %s29, 1
        %s497 = scalar_select %p496, %s29, 1
        %s498 = smul.addr %s497, 4
        %s499 = smul.addr %s498, 8
        %s500 = scalar_lea.vmem %s3, %s499
        %p501 = scmp.lt.s32.totalorder %s29, 1
        %s502 = scalar_select %p501, %s29, 1
        %s503 = smul.addr %s502, 8
        %s504 = smul.addr %s503, 8
        %s505 = scalar_lea.vmem %s4, %s504
        %p506 = scmp.lt.s32.totalorder %s29, 1
        %s507 = scalar_select %p506, %s29, 1
        %s508 = smul.addr %s507, 4
        %s509 = smul.addr %s508, 8
        %s510 = scalar_lea.vmem %s5, %s509
        %p511 = scmp.lt.s32.totalorder %s29, 1
        %s512 = scalar_select %p511, %s29, 1
        %s513 = scalar_lea.vmem %s6, %s512
        %p514 = scmp.lt.s32.totalorder %s29, 1
        %s515 = scalar_select %p514, %s29, 1
        %s516 = smul.addr %s515, 8
        %s517 = smul.addr %s516, 8
        %s518 = scalar_lea.vmem %s7, %s517
        %p519 = scmp.lt.s32.totalorder %s29, 1
        %s520 = scalar_select %p519, %s29, 1
        %s521 = smul.addr %s520, 8
        %s522 = scalar_lea.vmem %s8, %s521
        %s523 = smul.u32 2, %s28
        %p524 = scmp.eq.s32.totalorder %s29, 0
        // Predicated region
        $region61: #{transformer_forward.1} parent=59 // pred_check
          %p525 = pneg %p524
        $region62: #{transformer_forward.1} parent=59 // pred_check_branch
          %527 = sbr.rel (%p525) target = $region64
        $region63: #{transformer_forward.1} parent=59 // pred_region
          %v528 = vld [vmem:[%s484] sm:$0xff]
          %v529 = vld [vmem:[%s484 + $0x8] sm:$0xff]
          %vm530 = vcmask 261120
          %531 = vst.msk [vmem:[#allocation2] sm:$0xff] %vm530, %v528
          %532 = vst.msk [vmem:[#allocation2 + $0x8] sm:$0xff] %vm530, %v529
        $region64: #{transformer_forward.1} parent=59 // pred_fallthru
          _
        %v533 = vld [vmem:[#allocation2] sm:$0xff]
        %v534 = vld [vmem:[#allocation2 + $0x8] sm:$0xff]
        %v535 = vld [vmem:[%s522] sm:$0x3f]
        %vm536 = vcmask 261120
        %v537 = vsel %vm536, %v533, 0.0
        %538 = vadd.xlane.f32.xlu0 %v537
        %v539 = vpop.xlane.xlu0 %538
        %v540 = vsel %vm536, %v534, 0.0
        %541 = vadd.xlane.f32.xlu0 %v540
        %v542 = vpop.xlane.xlu0 %541
        %v543 = vrcp.pop 32.0
        %v544 = vmul.f32 %v539, %v543
        %v545 = vmul.f32 %v542, %v543
        %v546 = vsub.f32 %v533, %v544
        %v547 = vsub.f32 %v534, %v545
        %v548 = vmul.f32 %v546, %v546
        %v549 = vmul.f32 %v547, %v547
        %v550 = vsel %vm536, %v548, 0.0
        %551 = vadd.xlane.f32.xlu0 %v550
        %v552 = vpop.xlane.xlu0 %551
        %v553 = vsel %vm536, %v549, 0.0
        %554 = vadd.xlane.f32.xlu0 %v553
        %v555 = vpop.xlane.xlu0 %554
        %v556 = vmul.f32 %v552, %v543
        %v557 = vmul.f32 %v555, %v543
        %v558 = vadd.f32 %v556, 1e-05
        %v559 = vadd.f32 %v557, 1e-05
        %v560 = vrsqrt.pop %v558
        %v561 = vrsqrt.pop %v559
        %v562 = vmul.f32 %v546, %v560
        %v563 = vmul.f32 %v547, %v561
        %v564 = vlaneseq
        %v565 = vshrl.u32 %v564, 7
        %v566 = vsub.s32 0, %v565
        %v567 = vrot.slane %v535, %v566
        %v568 = vmul.f32 %v562, %v567
        %v569 = vmul.f32 %v563, %v567
        %v570 = vlaneseq
        %v571 = vshrl.u32 %v570, 7
        %v572 = vsub.s32 1, %v571
        %v573 = vrot.slane %v535, %v572
        %v574 = vadd.f32 %v568, %v573
        %v575 = vadd.f32 %v569, %v573
        %v576 = vld [vmem:[%s490] sm:$0xff]
        %v577 = vld [vmem:[%s490 + $0x8] sm:$0xff]
        %v578 = vld [vmem:[%s490 + $0x10] sm:$0xff]
        %v579 = vld [vmem:[%s490 + $0x18] sm:$0xff]
        %v581 = vsel %vm536, %v574, 0
        %v584 = vsel %vm536, %v575, 0
        %586 = vmatprep.subr.mxu0 0.0
        %587 = vmatpush1.msra.mxu0 %v576
        %588 = vmatprep.subr.mxu0 0.0
        %589 = vmatpush1.msra.mxu0 %v577
        %590 = vmatprep.subr.mxu0 0.0
        %591 = vmatpush1.msra.mxu0 %v578
        %592 = vmatprep.subr.mxu0 0.0
        %593 = vmatpush1.msra.mxu0 %v579
        %594 = vmatprep.subr.mxu0 0.0
        %595 = vmatpush1.msra.mxu0 0.0
        %596 = vmatprep.subr.mxu0 0.0
        %597 = vmatpush1.msra.mxu0 0.0
        %598 = vmatprep.subr.mxu0 0.0
        %599 = vmatpush1.msra.mxu0 0.0
        %600 = vmatprep.subr.mxu0 0.0
        %601 = vmatpush1.msra.mxu0 0.0
        %602 = vmatprep.subr.mxu0 0.0
        %603 = vmatpush1.msra.mxu0 0.0
        %604 = vmatprep.subr.mxu0 0.0
        %605 = vmatpush1.msra.mxu0 0.0
        %606 = vmatprep.subr.mxu0 0.0
        %607 = vmatpush1.msra.mxu0 0.0
        %608 = vmatprep.subr.mxu0 0.0
        %609 = vmatpush1.msra.mxu0 0.0
        %610 = vmatprep.subr.mxu0 0.0
        %611 = vmatpush1.msra.mxu0 0.0
        %612 = vmatprep.subr.mxu0 0.0
        %613 = vmatpush1.msra.mxu0 0.0
        %614 = vmatprep.subr.mxu0 0.0
        %615 = vmatpush1.msra.mxu0 0.0
        %616 = vmatprep.subr.mxu0 0.0
        %617 = vmatpush1.msra.mxu0 0.0
        %618 = vmatprep.subr.mxu0 0.0
        %619 = vmatpush1.msra.mxu0 0.0
        %620 = vmatprep.subr.mxu0 0.0
        %621 = vmatpush1.msra.mxu0 0.0
        %622 = vmatprep.subr.mxu0 0.0
        %623 = vmatpush1.msra.mxu0 0.0
        %624 = vmatprep.subr.mxu0 0.0
        %625 = vmatpush1.msra.mxu0 0.0
        %626 = vmatprep.subr.mxu0 0.0
        %627 = vmatpush1.msra.mxu0 0.0
        %628 = vmatprep.subr.mxu0 0.0
        %629 = vmatpush1.msra.mxu0 0.0
        %630 = vmatprep.subr.mxu0 0.0
        %631 = vmatpush1.msra.mxu0 0.0
        %632 = vmatprep.subr.mxu0 0.0
        %633 = vmatpush1.msra.mxu0 0.0
        %634 = vmatprep.subr.mxu0 0.0
        %635 = vmatpush1.msra.mxu0 0.0
        %636 = vmatprep.subr.mxu0 0.0
        %637 = vmatpush1.msra.mxu0 0.0
        %638 = vmatprep.subr.mxu0 0.0
        %639 = vmatpush1.msra.mxu0 0.0
        %640 = vmatprep.subr.mxu0 0.0
        %641 = vmatpush1.msra.mxu0 0.0
        %642 = vmatprep.subr.mxu0 0.0
        %643 = vmatpush1.msra.mxu0 0.0
        %644 = vmatprep.subr.mxu0 0.0
        %645 = vmatpush1.msra.mxu0 0.0
        %646 = vmatprep.subr.mxu0 0.0
        %647 = vmatpush1.msra.mxu0 0.0
        %648 = vmatprep.subr.mxu0 0.0
        %649 = vmatpush1.msra.mxu0 0.0
        %650 = vmatprep.mubr.f32.mxu0 0.0
        %651 = vmatmul.mubr.f32.gmra.mrb[0].mxu0 %v581
        %v652 = vpop.f32.mrb[0].mxu0
        %v653 = vadd.f32 0.0, %v652
        %v654 = vpop.f32.mrb[0].mxu0
        %655 = vmatprep.mubr.f32.mxu0 0.0
        %656 = vmatmul.mubr.f32.gmra.mrb[0].mxu0 %v584
        %v657 = vpop.f32.mrb[0].mxu0
        %v658 = vadd.f32 0.0, %v657
        %v659 = vpop.f32.mrb[0].mxu0
        %660 = vdwg.mxu0
        %v661 = vld [vmem:[%s495] sm:$0xff]
        %v662 = vld [vmem:[%s495 + $0x8] sm:$0xff]
        %v663 = vld [vmem:[%s495 + $0x10] sm:$0xff]
        %v664 = vld [vmem:[%s495 + $0x18] sm:$0xff]
        %665 = vmatprep.subr.mxu0 0.0
        %666 = vmatpush1.msra.mxu0 %v661
        %667 = vmatprep.subr.mxu0 0.0
        %668 = vmatpush1.msra.mxu0 %v662
        %669 = vmatprep.subr.mxu0 0.0
        %670 = vmatpush1.msra.mxu0 %v663
        %671 = vmatprep.subr.mxu0 0.0
        %672 = vmatpush1.msra.mxu0 %v664
        %673 = vmatprep.subr.mxu0 0.0
        %674 = vmatpush1.msra.mxu0 0.0
        %675 = vmatprep.subr.mxu0 0.0
        %676 = vmatpush1.msra.mxu0 0.0
        %677 = vmatprep.subr.mxu0 0.0
        %678 = vmatpush1.msra.mxu0 0.0
        %679 = vmatprep.subr.mxu0 0.0
        %680 = vmatpush1.msra.mxu0 0.0
        %681 = vmatprep.subr.mxu0 0.0
        %682 = vmatpush1.msra.mxu0 0.0
        %683 = vmatprep.subr.mxu0 0.0
        %684 = vmatpush1.msra.mxu0 0.0
        %685 = vmatprep.subr.mxu0 0.0
        %686 = vmatpush1.msra.mxu0 0.0
        %687 = vmatprep.subr.mxu0 0.0
        %688 = vmatpush1.msra.mxu0 0.0
        %689 = vmatprep.subr.mxu0 0.0
        %690 = vmatpush1.msra.mxu0 0.0
        %691 = vmatprep.subr.mxu0 0.0
        %692 = vmatpush1.msra.mxu0 0.0
        %693 = vmatprep.subr.mxu0 0.0
        %694 = vmatpush1.msra.mxu0 0.0
        %695 = vmatprep.subr.mxu0 0.0
        %696 = vmatpush1.msra.mxu0 0.0
        %697 = vmatprep.subr.mxu0 0.0
        %698 = vmatpush1.msra.mxu0 0.0
        %699 = vmatprep.subr.mxu0 0.0
        %700 = vmatpush1.msra.mxu0 0.0
        %701 = vmatprep.subr.mxu0 0.0
        %702 = vmatpush1.msra.mxu0 0.0
        %703 = vmatprep.subr.mxu0 0.0
        %704 = vmatpush1.msra.mxu0 0.0
        %705 = vmatprep.subr.mxu0 0.0
        %706 = vmatpush1.msra.mxu0 0.0
        %707 = vmatprep.subr.mxu0 0.0
        %708 = vmatpush1.msra.mxu0 0.0
        %709 = vmatprep.subr.mxu0 0.0
        %710 = vmatpush1.msra.mxu0 0.0
        %711 = vmatprep.subr.mxu0 0.0
        %712 = vmatpush1.msra.mxu0 0.0
        %713 = vmatprep.subr.mxu0 0.0
        %714 = vmatpush1.msra.mxu0 0.0
        %715 = vmatprep.subr.mxu0 0.0
        %716 = vmatpush1.msra.mxu0 0.0
        %717 = vmatprep.subr.mxu0 0.0
        %718 = vmatpush1.msra.mxu0 0.0
        %719 = vmatprep.subr.mxu0 0.0
        %720 = vmatpush1.msra.mxu0 0.0
        %721 = vmatprep.subr.mxu0 0.0
        %722 = vmatpush1.msra.mxu0 0.0
        %723 = vmatprep.subr.mxu0 0.0
        %724 = vmatpush1.msra.mxu0 0.0
        %725 = vmatprep.subr.mxu0 0.0
        %726 = vmatpush1.msra.mxu0 0.0
        %727 = vmatprep.subr.mxu0 0.0
        %728 = vmatpush1.msra.mxu0 0.0
        %729 = vmatprep.mubr.f32.mxu0 0.0
        %730 = vmatmul.mubr.f32.gmra.mrb[0].mxu0 %v581
        %v731 = vpop.f32.mrb[0].mxu0
        %v732 = vadd.f32 0.0, %v731
        %v733 = vpop.f32.mrb[0].mxu0
        %734 = vmatprep.mubr.f32.mxu0 0.0
        %735 = vmatmul.mubr.f32.gmra.mrb[0].mxu0 %v584
        %v736 = vpop.f32.mrb[0].mxu0
        %v737 = vadd.f32 0.0, %v736
        %v738 = vpop.f32.mrb[0].mxu0
        %739 = vdwg.mxu0
        %v740 = vld [vmem:[%s500] sm:$0xff]
        %v741 = vld [vmem:[%s500 + $0x8] sm:$0xff]
        %v742 = vld [vmem:[%s500 + $0x10] sm:$0xff]
        %v743 = vld [vmem:[%s500 + $0x18] sm:$0xff]
        %744 = vmatprep.subr.mxu0 0.0
        %745 = vmatpush1.msra.mxu0 %v740
        %746 = vmatprep.subr.mxu0 0.0
        %747 = vmatpush1.msra.mxu0 %v741
        %748 = vmatprep.subr.mxu0 0.0
        %749 = vmatpush1.msra.mxu0 %v742
        %750 = vmatprep.subr.mxu0 0.0
        %751 = vmatpush1.msra.mxu0 %v743
        %752 = vmatprep.subr.mxu0 0.0
        %753 = vmatpush1.msra.mxu0 0.0
        %754 = vmatprep.subr.mxu0 0.0
        %755 = vmatpush1.msra.mxu0 0.0
        %756 = vmatprep.subr.mxu0 0.0
        %757 = vmatpush1.msra.mxu0 0.0
        %758 = vmatprep.subr.mxu0 0.0
        %759 = vmatpush1.msra.mxu0 0.0
        %760 = vmatprep.subr.mxu0 0.0
        %761 = vmatpush1.msra.mxu0 0.0
        %762 = vmatprep.subr.mxu0 0.0
        %763 = vmatpush1.msra.mxu0 0.0
        %764 = vmatprep.subr.mxu0 0.0
        %765 = vmatpush1.msra.mxu0 0.0
        %766 = vmatprep.subr.mxu0 0.0
        %767 = vmatpush1.msra.mxu0 0.0
        %768 = vmatprep.subr.mxu0 0.0
        %769 = vmatpush1.msra.mxu0 0.0
        %770 = vmatprep.subr.mxu0 0.0
        %771 = vmatpush1.msra.mxu0 0.0
        %772 = vmatprep.subr.mxu0 0.0
        %773 = vmatpush1.msra.mxu0 0.0
        %774 = vmatprep.subr.mxu0 0.0
        %775 = vmatpush1.msra.mxu0 0.0
        %776 = vmatprep.subr.mxu0 0.0
        %777 = vmatpush1.msra.mxu0 0.0
        %778 = vmatprep.subr.mxu0 0.0
        %779 = vmatpush1.msra.mxu0 0.0
        %780 = vmatprep.subr.mxu0 0.0
        %781 = vmatpush1.msra.mxu0 0.0
        %782 = vmatprep.subr.mxu0 0.0
        %783 = vmatpush1.msra.mxu0 0.0
        %784 = vmatprep.subr.mxu0 0.0
        %785 = vmatpush1.msra.mxu0 0.0
        %786 = vmatprep.subr.mxu0 0.0
        %787 = vmatpush1.msra.mxu0 0.0
        %788 = vmatprep.subr.mxu0 0.0
        %789 = vmatpush1.msra.mxu0 0.0
        %790 = vmatprep.subr.mxu0 0.0
        %791 = vmatpush1.msra.mxu0 0.0
        %792 = vmatprep.subr.mxu0 0.0
        %793 = vmatpush1.msra.mxu0 0.0
        %794 = vmatprep.subr.mxu0 0.0
        %795 = vmatpush1.msra.mxu0 0.0
        %796 = vmatprep.subr.mxu0 0.0
        %797 = vmatpush1.msra.mxu0 0.0
        %798 = vmatprep.subr.mxu0 0.0
        %799 = vmatpush1.msra.mxu0 0.0
        %800 = vmatprep.subr.mxu0 0.0
        %801 = vmatpush1.msra.mxu0 0.0
        %802 = vmatprep.subr.mxu0 0.0
        %803 = vmatpush1.msra.mxu0 0.0
        %804 = vmatprep.subr.mxu0 0.0
        %805 = vmatpush1.msra.mxu0 0.0
        %806 = vmatprep.subr.mxu0 0.0
        %807 = vmatpush1.msra.mxu0 0.0
        %808 = vmatprep.mubr.f32.mxu0 0.0
        %809 = vmatmul.mubr.f32.gmra.mrb[0].mxu0 %v581
        %v810 = vpop.f32.mrb[0].mxu0
        %v811 = vadd.f32 0.0, %v810
        %v812 = vpop.f32.mrb[0].mxu0
        %813 = vmatprep.mubr.f32.mxu0 0.0
        %814 = vmatmul.mubr.f32.gmra.mrb[0].mxu0 %v584
        %v815 = vpop.f32.mrb[0].mxu0
        %v816 = vadd.f32 0.0, %v815
        %v817 = vpop.f32.mrb[0].mxu0
        %818 = vdwg.mxu0
        %821 = vrot.lane.b32.xlu0 %v653, 112
        %v822 = vpop.permute.xlu0 %821
        %823 = vrot.lane.b32.xlu0 %v658, 112
        %v824 = vpop.permute.xlu0 %823
        %827 = vrot.lane.b32.xlu0 %v653, 96
        %v828 = vpop.permute.xlu0 %827
        %829 = vrot.lane.b32.xlu0 %v658, 96
        %v830 = vpop.permute.xlu0 %829
        %833 = vrot.lane.b32.xlu0 %v653, 80
        %v834 = vpop.permute.xlu0 %833
        %835 = vrot.lane.b32.xlu0 %v658, 80
        %v836 = vpop.permute.xlu0 %835
        %v839 = vcombine.low %v653, %v828
        %v840 = vcombine.high %v653, %v828
        %v842 = vunpack.c.l.s4 1983009808
        %v843 = vunpack.c.0.s8 %v842
        %v844 = vlaneseq
        %v845 = vshrl.u32 %v844, 7
        %v846 = vsub.s32 %v843, %v845
        %v847 = vrot.slane %v839, %v846
        %v849 = vunpack.c.l.s4 1983009808
        %v850 = vunpack.c.0.s8 %v849
        %v851 = vlaneseq
        %v852 = vshrl.u32 %v851, 7
        %v853 = vsub.s32 %v850, %v852
        %v854 = vrot.slane %v840, %v853
        %v855 = vcombine.low %v822, %v834
        %v856 = vcombine.high %v822, %v834
        %v858 = vunpack.c.l.s4 1983009808
        %v859 = vunpack.c.0.s8 %v858
        %v860 = vlaneseq
        %v861 = vshrl.u32 %v860, 7
        %v862 = vsub.s32 %v859, %v861
        %v863 = vrot.slane %v855, %v862
        %v865 = vunpack.c.l.s4 1983009808
        %v866 = vunpack.c.0.s8 %v865
        %v867 = vlaneseq
        %v868 = vshrl.u32 %v867, 7
        %v869 = vsub.s32 %v866, %v868
        %v870 = vrot.slane %v856, %v869
        %v871 = vcombine.low %v847, %v863
        %v872 = vcombine.high %v847, %v863
        %v874 = vunpack.c.l.s4 1934713408
        %v875 = vunpack.c.0.s8 %v874
        %v876 = vlaneseq
        %v877 = vshrl.u32 %v876, 7
        %v878 = vsub.s32 %v875, %v877
        %v879 = vrot.slane %v871, %v878
        %v881 = vunpack.c.l.s4 1934713408
        %v882 = vunpack.c.0.s8 %v881
        %v883 = vlaneseq
        %v884 = vshrl.u32 %v883, 7
        %v885 = vsub.s32 %v882, %v884
        %v886 = vrot.slane %v872, %v885
        %v887 = vcombine.low %v854, %v870
        %v888 = vcombine.high %v854, %v870
        %v890 = vunpack.c.l.s4 1934713408
        %v891 = vunpack.c.0.s8 %v890
        %v892 = vlaneseq
        %v893 = vshrl.u32 %v892, 7
        %v894 = vsub.s32 %v891, %v893
        %v895 = vrot.slane %v887, %v894
        %v897 = vunpack.c.l.s4 1934713408
        %v898 = vunpack.c.0.s8 %v897
        %v899 = vlaneseq
        %v900 = vshrl.u32 %v899, 7
        %v901 = vsub.s32 %v898, %v900
        %v902 = vrot.slane %v888, %v901
        %v903 = vcombine.high %v879, 0.0
        %v904 = vcombine.high %v886, 0.0
        %v905 = vcombine.high %v895, 0.0
        %v906 = vcombine.high %v902, 0.0
        %v907 = vcombine.low %v658, %v830
        %v908 = vcombine.high %v658, %v830
        %v910 = vunpack.c.l.s4 1983009808
        %v911 = vunpack.c.0.s8 %v910
        %v912 = vlaneseq
        %v913 = vshrl.u32 %v912, 7
        %v914 = vsub.s32 %v911, %v913
        %v915 = vrot.slane %v907, %v914
        %v917 = vunpack.c.l.s4 1983009808
        %v918 = vunpack.c.0.s8 %v917
        %v919 = vlaneseq
        %v920 = vshrl.u32 %v919, 7
        %v921 = vsub.s32 %v918, %v920
        %v922 = vrot.slane %v908, %v921
        %v923 = vcombine.low %v824, %v836
        %v924 = vcombine.high %v824, %v836
        %v926 = vunpack.c.l.s4 1983009808
        %v927 = vunpack.c.0.s8 %v926
        %v928 = vlaneseq
        %v929 = vshrl.u32 %v928, 7
        %v930 = vsub.s32 %v927, %v929
        %v931 = vrot.slane %v923, %v930
        %v933 = vunpack.c.l.s4 1983009808
        %v934 = vunpack.c.0.s8 %v933
        %v935 = vlaneseq
        %v936 = vshrl.u32 %v935, 7
        %v937 = vsub.s32 %v934, %v936
        %v938 = vrot.slane %v924, %v937
        %v939 = vcombine.low %v915, %v931
        %v940 = vcombine.high %v915, %v931
        %v942 = vunpack.c.l.s4 1934713408
        %v943 = vunpack.c.0.s8 %v942
        %v944 = vlaneseq
        %v945 = vshrl.u32 %v944, 7
        %v946 = vsub.s32 %v943, %v945
        %v947 = vrot.slane %v939, %v946
        %v949 = vunpack.c.l.s4 1934713408
        %v950 = vunpack.c.0.s8 %v949
        %v951 = vlaneseq
        %v952 = vshrl.u32 %v951, 7
        %v953 = vsub.s32 %v950, %v952
        %v954 = vrot.slane %v940, %v953
        %v955 = vcombine.low %v922, %v938
        %v956 = vcombine.high %v922, %v938
        %v958 = vunpack.c.l.s4 1934713408
        %v959 = vunpack.c.0.s8 %v958
        %v960 = vlaneseq
        %v961 = vshrl.u32 %v960, 7
        %v962 = vsub.s32 %v959, %v961
        %v963 = vrot.slane %v955, %v962
        %v965 = vunpack.c.l.s4 1934713408
        %v966 = vunpack.c.0.s8 %v965
        %v967 = vlaneseq
        %v968 = vshrl.u32 %v967, 7
        %v969 = vsub.s32 %v966, %v968
        %v970 = vrot.slane %v956, %v969
        %v971 = vcombine.high %v947, 0.0
        %v972 = vcombine.high %v954, 0.0
        %v973 = vcombine.high %v963, 0.0
        %v974 = vcombine.high %v970, 0.0
        %v975 = vcombine.low %v879, %v886
        %v977 = vunpack.c.l.s4 1983009808
        %v978 = vunpack.c.0.s8 %v977
        %v979 = vlaneseq
        %v980 = vshrl.u32 %v979, 7
        %v981 = vsub.s32 %v978, %v980
        %v982 = vrot.slane %v975, %v981
        %v983 = vcombine.low %v903, %v904
        %v985 = vunpack.c.l.s4 1983009808
        %v986 = vunpack.c.0.s8 %v985
        %v987 = vlaneseq
        %v988 = vshrl.u32 %v987, 7
        %v989 = vsub.s32 %v986, %v988
        %v990 = vrot.slane %v983, %v989
        %v991 = vcombine.low %v895, %v902
        %v993 = vunpack.c.l.s4 1983009808
        %v994 = vunpack.c.0.s8 %v993
        %v995 = vlaneseq
        %v996 = vshrl.u32 %v995, 7
        %v997 = vsub.s32 %v994, %v996
        %v998 = vrot.slane %v991, %v997
        %v999 = vcombine.low %v905, %v906
        %v1001 = vunpack.c.l.s4 1983009808
        %v1002 = vunpack.c.0.s8 %v1001
        %v1003 = vlaneseq
        %v1004 = vshrl.u32 %v1003, 7
        %v1005 = vsub.s32 %v1002, %v1004
        %v1006 = vrot.slane %v999, %v1005
        %v1007 = vcombine.low %v982, %v990
        %v1008 = vcombine.high %v982, %v990
        %v1010 = vunpack.c.l.s4 1934713408
        %v1011 = vunpack.c.0.s8 %v1010
        %v1012 = vlaneseq
        %v1013 = vshrl.u32 %v1012, 7
        %v1014 = vsub.s32 %v1011, %v1013
        %v1015 = vrot.slane %v1007, %v1014
        %v1017 = vunpack.c.l.s4 1934713408
        %v1018 = vunpack.c.0.s8 %v1017
        %v1019 = vlaneseq
        %v1020 = vshrl.u32 %v1019, 7
        %v1021 = vsub.s32 %v1018, %v1020
        %v1022 = vrot.slane %v1008, %v1021
        %v1023 = vcombine.low %v998, %v1006
        %v1024 = vcombine.high %v998, %v1006
        %v1026 = vunpack.c.l.s4 1934713408
        %v1027 = vunpack.c.0.s8 %v1026
        %v1028 = vlaneseq
        %v1029 = vshrl.u32 %v1028, 7
        %v1030 = vsub.s32 %v1027, %v1029
        %v1031 = vrot.slane %v1023, %v1030
        %v1033 = vunpack.c.l.s4 1934713408
        %v1034 = vunpack.c.0.s8 %v1033
        %v1035 = vlaneseq
        %v1036 = vshrl.u32 %v1035, 7
        %v1037 = vsub.s32 %v1034, %v1036
        %v1038 = vrot.slane %v1024, %v1037
        %v1039 = vcombine.low %v1015, %v1031
        %v1040 = vcombine.high %v1015, %v1031
        %v1041 = vcombine.low %v1022, %v1038
        %v1042 = vcombine.high %v1022, %v1038
        %v1043 = vcombine.low %v947, %v954
        %v1045 = vunpack.c.l.s4 1983009808
        %v1046 = vunpack.c.0.s8 %v1045
        %v1047 = vlaneseq
        %v1048 = vshrl.u32 %v1047, 7
        %v1049 = vsub.s32 %v1046, %v1048
        %v1050 = vrot.slane %v1043, %v1049
        %v1051 = vcombine.low %v971, %v972
        %v1053 = vunpack.c.l.s4 1983009808
        %v1054 = vunpack.c.0.s8 %v1053
        %v1055 = vlaneseq
        %v1056 = vshrl.u32 %v1055, 7
        %v1057 = vsub.s32 %v1054, %v1056
        %v1058 = vrot.slane %v1051, %v1057
        %v1059 = vcombine.low %v963, %v970
        %v1061 = vunpack.c.l.s4 1983009808
        %v1062 = vunpack.c.0.s8 %v1061
        %v1063 = vlaneseq
        %v1064 = vshrl.u32 %v1063, 7
        %v1065 = vsub.s32 %v1062, %v1064
        %v1066 = vrot.slane %v1059, %v1065
        %v1067 = vcombine.low %v973, %v974
        %v1069 = vunpack.c.l.s4 1983009808
        %v1070 = vunpack.c.0.s8 %v1069
        %v1071 = vlaneseq
        %v1072 = vshrl.u32 %v1071, 7
        %v1073 = vsub.s32 %v1070, %v1072
        %v1074 = vrot.slane %v1067, %v1073
        %v1075 = vcombine.low %v1050, %v1058
        %v1076 = vcombine.high %v1050, %v1058
        %v1078 = vunpack.c.l.s4 1934713408
        %v1079 = vunpack.c.0.s8 %v1078
        %v1080 = vlaneseq
        %v1081 = vshrl.u32 %v1080, 7
        %v1082 = vsub.s32 %v1079, %v1081
        %v1083 = vrot.slane %v1075, %v1082
        %v1085 = vunpack.c.l.s4 1934713408
        %v1086 = vunpack.c.0.s8 %v1085
        %v1087 = vlaneseq
        %v1088 = vshrl.u32 %v1087, 7
        %v1089 = vsub.s32 %v1086, %v1088
        %v1090 = vrot.slane %v1076, %v1089
        %v1091 = vcombine.low %v1066, %v1074
        %v1092 = vcombine.high %v1066, %v1074
        %v1094 = vunpack.c.l.s4 1934713408
        %v1095 = vunpack.c.0.s8 %v1094
        %v1096 = vlaneseq
        %v1097 = vshrl.u32 %v1096, 7
        %v1098 = vsub.s32 %v1095, %v1097
        %v1099 = vrot.slane %v1091, %v1098
        %v1101 = vunpack.c.l.s4 1934713408
        %v1102 = vunpack.c.0.s8 %v1101
        %v1103 = vlaneseq
        %v1104 = vshrl.u32 %v1103, 7
        %v1105 = vsub.s32 %v1102, %v1104
        %v1106 = vrot.slane %v1092, %v1105
        %v1107 = vcombine.low %v1083, %v1099
        %v1108 = vcombine.high %v1083, %v1099
        %v1109 = vcombine.low %v1090, %v1106
        %v1110 = vcombine.high %v1090, %v1106
        %1113 = vrot.lane.b32.xlu0 %v732, 112
        %v1114 = vpop.permute.xlu0 %1113
        %1115 = vrot.lane.b32.xlu0 %v737, 112
        %v1116 = vpop.permute.xlu0 %1115
        %1119 = vrot.lane.b32.xlu0 %v732, 96
        %v1120 = vpop.permute.xlu0 %1119
        %1121 = vrot.lane.b32.xlu0 %v737, 96
        %v1122 = vpop.permute.xlu0 %1121
        %1125 = vrot.lane.b32.xlu0 %v732, 80
        %v1126 = vpop.permute.xlu0 %1125
        %1127 = vrot.lane.b32.xlu0 %v737, 80
        %v1128 = vpop.permute.xlu0 %1127
        %v1131 = vcombine.low %v732, %v1120
        %v1132 = vcombine.high %v732, %v1120
        %v1134 = vunpack.c.l.s4 1983009808
        %v1135 = vunpack.c.0.s8 %v1134
        %v1136 = vlaneseq
        %v1137 = vshrl.u32 %v1136, 7
        %v1138 = vsub.s32 %v1135, %v1137
        %v1139 = vrot.slane %v1131, %v1138
        %v1141 = vunpack.c.l.s4 1983009808
        %v1142 = vunpack.c.0.s8 %v1141
        %v1143 = vlaneseq
        %v1144 = vshrl.u32 %v1143, 7
        %v1145 = vsub.s32 %v1142, %v1144
        %v1146 = vrot.slane %v1132, %v1145
        %v1147 = vcombine.low %v1114, %v1126
        %v1148 = vcombine.high %v1114, %v1126
        %v1150 = vunpack.c.l.s4 1983009808
        %v1151 = vunpack.c.0.s8 %v1150
        %v1152 = vlaneseq
        %v1153 = vshrl.u32 %v1152, 7
        %v1154 = vsub.s32 %v1151, %v1153
        %v1155 = vrot.slane %v1147, %v1154
        %v1157 = vunpack.c.l.s4 1983009808
        %v1158 = vunpack.c.0.s8 %v1157
        %v1159 = vlaneseq
        %v1160 = vshrl.u32 %v1159, 7
        %v1161 = vsub.s32 %v1158, %v1160
        %v1162 = vrot.slane %v1148, %v1161
        %v1163 = vcombine.low %v1139, %v1155
        %v1164 = vcombine.high %v1139, %v1155
        %v1166 = vunpack.c.l.s4 1934713408
        %v1167 = vunpack.c.0.s8 %v1166
        %v1168 = vlaneseq
        %v1169 = vshrl.u32 %v1168, 7
        %v1170 = vsub.s32 %v1167, %v1169
        %v1171 = vrot.slane %v1163, %v1170
        %v1173 = vunpack.c.l.s4 1934713408
        %v1174 = vunpack.c.0.s8 %v1173
        %v1175 = vlaneseq
        %v1176 = vshrl.u32 %v1175, 7
        %v1177 = vsub.s32 %v1174, %v1176
        %v1178 = vrot.slane %v1164, %v1177
        %v1179 = vcombine.low %v1146, %v1162
        %v1180 = vcombine.high %v1146, %v1162
        %v1182 = vunpack.c.l.s4 1934713408
        %v1183 = vunpack.c.0.s8 %v1182
        %v1184 = vlaneseq
        %v1185 = vshrl.u32 %v1184, 7
        %v1186 = vsub.s32 %v1183, %v1185
        %v1187 = vrot.slane %v1179, %v1186
        %v1189 = vunpack.c.l.s4 1934713408
        %v1190 = vunpack.c.0.s8 %v1189
        %v1191 = vlaneseq
        %v1192 = vshrl.u32 %v1191, 7
        %v1193 = vsub.s32 %v1190, %v1192
        %v1194 = vrot.slane %v1180, %v1193
        %v1195 = vcombine.high %v1171, 0.0
        %v1196 = vcombine.high %v1178, 0.0
        %v1197 = vcombine.high %v1187, 0.0
        %v1198 = vcombine.high %v1194, 0.0
        %v1199 = vcombine.low %v737, %v1122
        %v1200 = vcombine.high %v737, %v1122
        %v1202 = vunpack.c.l.s4 1983009808
        %v1203 = vunpack.c.0.s8 %v1202
        %v1204 = vlaneseq
        %v1205 = vshrl.u32 %v1204, 7
        %v1206 = vsub.s32 %v1203, %v1205
        %v1207 = vrot.slane %v1199, %v1206
        %v1209 = vunpack.c.l.s4 1983009808
        %v1210 = vunpack.c.0.s8 %v1209
        %v1211 = vlaneseq
        %v1212 = vshrl.u32 %v1211, 7
        %v1213 = vsub.s32 %v1210, %v1212
        %v1214 = vrot.slane %v1200, %v1213
        %v1215 = vcombine.low %v1116, %v1128
        %v1216 = vcombine.high %v1116, %v1128
        %v1218 = vunpack.c.l.s4 1983009808
        %v1219 = vunpack.c.0.s8 %v1218
        %v1220 = vlaneseq
        %v1221 = vshrl.u32 %v1220, 7
        %v1222 = vsub.s32 %v1219, %v1221
        %v1223 = vrot.slane %v1215, %v1222
        %v1225 = vunpack.c.l.s4 1983009808
        %v1226 = vunpack.c.0.s8 %v1225
        %v1227 = vlaneseq
        %v1228 = vshrl.u32 %v1227, 7
        %v1229 = vsub.s32 %v1226, %v1228
        %v1230 = vrot.slane %v1216, %v1229
        %v1231 = vcombine.low %v1207, %v1223
        %v1232 = vcombine.high %v1207, %v1223
        %v1234 = vunpack.c.l.s4 1934713408
        %v1235 = vunpack.c.0.s8 %v1234
        %v1236 = vlaneseq
        %v1237 = vshrl.u32 %v1236, 7
        %v1238 = vsub.s32 %v1235, %v1237
        %v1239 = vrot.slane %v1231, %v1238
        %v1241 = vunpack.c.l.s4 1934713408
        %v1242 = vunpack.c.0.s8 %v1241
        %v1243 = vlaneseq
        %v1244 = vshrl.u32 %v1243, 7
        %v1245 = vsub.s32 %v1242, %v1244
        %v1246 = vrot.slane %v1232, %v1245
        %v1247 = vcombine.low %v1214, %v1230
        %v1248 = vcombine.high %v1214, %v1230
        %v1250 = vunpack.c.l.s4 1934713408
        %v1251 = vunpack.c.0.s8 %v1250
        %v1252 = vlaneseq
        %v1253 = vshrl.u32 %v1252, 7
        %v1254 = vsub.s32 %v1251, %v1253
        %v1255 = vrot.slane %v1247, %v1254
        %v1257 = vunpack.c.l.s4 1934713408
        %v1258 = vunpack.c.0.s8 %v1257
        %v1259 = vlaneseq
        %v1260 = vshrl.u32 %v1259, 7
        %v1261 = vsub.s32 %v1258, %v1260
        %v1262 = vrot.slane %v1248, %v1261
        %v1263 = vcombine.high %v1239, 0.0
        %v1264 = vcombine.high %v1246, 0.0
        %v1265 = vcombine.high %v1255, 0.0
        %v1266 = vcombine.high %v1262, 0.0
        %v1267 = vcombine.low %v1171, %v1178
        %v1269 = vunpack.c.l.s4 1983009808
        %v1270 = vunpack.c.0.s8 %v1269
        %v1271 = vlaneseq
        %v1272 = vshrl.u32 %v1271, 7
        %v1273 = vsub.s32 %v1270, %v1272
        %v1274 = vrot.slane %v1267, %v1273
        %v1275 = vcombine.low %v1195, %v1196
        %v1277 = vunpack.c.l.s4 1983009808
        %v1278 = vunpack.c.0.s8 %v1277
        %v1279 = vlaneseq
        %v1280 = vshrl.u32 %v1279, 7
        %v1281 = vsub.s32 %v1278, %v1280
        %v1282 = vrot.slane %v1275, %v1281
        %v1283 = vcombine.low %v1187, %v1194
        %v1285 = vunpack.c.l.s4 1983009808
        %v1286 = vunpack.c.0.s8 %v1285
        %v1287 = vlaneseq
        %v1288 = vshrl.u32 %v1287, 7
        %v1289 = vsub.s32 %v1286, %v1288
        %v1290 = vrot.slane %v1283, %v1289
        %v1291 = vcombine.low %v1197, %v1198
        %v1293 = vunpack.c.l.s4 1983009808
        %v1294 = vunpack.c.0.s8 %v1293
        %v1295 = vlaneseq
        %v1296 = vshrl.u32 %v1295, 7
        %v1297 = vsub.s32 %v1294, %v1296
        %v1298 = vrot.slane %v1291, %v1297
        %v1299 = vcombine.low %v1274, %v1282
        %v1300 = vcombine.high %v1274, %v1282
        %v1302 = vunpack.c.l.s4 1934713408
        %v1303 = vunpack.c.0.s8 %v1302
        %v1304 = vlaneseq
        %v1305 = vshrl.u32 %v1304, 7
        %v1306 = vsub.s32 %v1303, %v1305
        %v1307 = vrot.slane %v1299, %v1306
        %v1309 = vunpack.c.l.s4 1934713408
        %v1310 = vunpack.c.0.s8 %v1309
        %v1311 = vlaneseq
        %v1312 = vshrl.u32 %v1311, 7
        %v1313 = vsub.s32 %v1310, %v1312
        %v1314 = vrot.slane %v1300, %v1313
        %v1315 = vcombine.low %v1290, %v1298
        %v1316 = vcombine.high %v1290, %v1298
        %v1318 = vunpack.c.l.s4 1934713408
        %v1319 = vunpack.c.0.s8 %v1318
        %v1320 = vlaneseq
        %v1321 = vshrl.u32 %v1320, 7
        %v1322 = vsub.s32 %v1319, %v1321
        %v1323 = vrot.slane %v1315, %v1322
        %v1325 = vunpack.c.l.s4 1934713408
        %v1326 = vunpack.c.0.s8 %v1325
        %v1327 = vlaneseq
        %v1328 = vshrl.u32 %v1327, 7
        %v1329 = vsub.s32 %v1326, %v1328
        %v1330 = vrot.slane %v1316, %v1329
        %v1331 = vcombine.low %v1307, %v1323
        %v1332 = vcombine.high %v1307, %v1323
        %v1333 = vcombine.low %v1314, %v1330
        %v1334 = vcombine.high %v1314, %v1330
        %v1335 = vcombine.low %v1239, %v1246
        %v1337 = vunpack.c.l.s4 1983009808
        %v1338 = vunpack.c.0.s8 %v1337
        %v1339 = vlaneseq
        %v1340 = vshrl.u32 %v1339, 7
        %v1341 = vsub.s32 %v1338, %v1340
        %v1342 = vrot.slane %v1335, %v1341
        %v1343 = vcombine.low %v1263, %v1264
        %v1345 = vunpack.c.l.s4 1983009808
        %v1346 = vunpack.c.0.s8 %v1345
        %v1347 = vlaneseq
        %v1348 = vshrl.u32 %v1347, 7
        %v1349 = vsub.s32 %v1346, %v1348
        %v1350 = vrot.slane %v1343, %v1349
        %v1351 = vcombine.low %v1255, %v1262
        %v1353 = vunpack.c.l.s4 1983009808
        %v1354 = vunpack.c.0.s8 %v1353
        %v1355 = vlaneseq
        %v1356 = vshrl.u32 %v1355, 7
        %v1357 = vsub.s32 %v1354, %v1356
        %v1358 = vrot.slane %v1351, %v1357
        %v1359 = vcombine.low %v1265, %v1266
        %v1361 = vunpack.c.l.s4 1983009808
        %v1362 = vunpack.c.0.s8 %v1361
        %v1363 = vlaneseq
        %v1364 = vshrl.u32 %v1363, 7
        %v1365 = vsub.s32 %v1362, %v1364
        %v1366 = vrot.slane %v1359, %v1365
        %v1367 = vcombine.low %v1342, %v1350
        %v1368 = vcombine.high %v1342, %v1350
        %v1370 = vunpack.c.l.s4 1934713408
        %v1371 = vunpack.c.0.s8 %v1370
        %v1372 = vlaneseq
        %v1373 = vshrl.u32 %v1372, 7
        %v1374 = vsub.s32 %v1371, %v1373
        %v1375 = vrot.slane %v1367, %v1374
        %v1377 = vunpack.c.l.s4 1934713408
        %v1378 = vunpack.c.0.s8 %v1377
        %v1379 = vlaneseq
        %v1380 = vshrl.u32 %v1379, 7
        %v1381 = vsub.s32 %v1378, %v1380
        %v1382 = vrot.slane %v1368, %v1381
        %v1383 = vcombine.low %v1358, %v1366
        %v1384 = vcombine.high %v1358, %v1366
        %v1386 = vunpack.c.l.s4 1934713408
        %v1387 = vunpack.c.0.s8 %v1386
        %v1388 = vlaneseq
        %v1389 = vshrl.u32 %v1388, 7
        %v1390 = vsub.s32 %v1387, %v1389
        %v1391 = vrot.slane %v1383, %v1390
        %v1393 = vunpack.c.l.s4 1934713408
        %v1394 = vunpack.c.0.s8 %v1393
        %v1395 = vlaneseq
        %v1396 = vshrl.u32 %v1395, 7
        %v1397 = vsub.s32 %v1394, %v1396
        %v1398 = vrot.slane %v1384, %v1397
        %v1399 = vcombine.low %v1375, %v1391
        %v1400 = vcombine.high %v1375, %v1391
        %v1401 = vcombine.low %v1382, %v1398
        %v1402 = vcombine.high %v1382, %v1398
        %1405 = vrot.lane.b32.xlu0 %v811, 112
        %v1406 = vpop.permute.xlu0 %1405
        %1407 = vrot.lane.b32.xlu0 %v816, 112
        %v1408 = vpop.permute.xlu0 %1407
        %1411 = vrot.lane.b32.xlu0 %v811, 96
        %v1412 = vpop.permute.xlu0 %1411
        %1413 = vrot.lane.b32.xlu0 %v816, 96
        %v1414 = vpop.permute.xlu0 %1413
        %1417 = vrot.lane.b32.xlu0 %v811, 80
        %v1418 = vpop.permute.xlu0 %1417
        %1419 = vrot.lane.b32.xlu0 %v816, 80
        %v1420 = vpop.permute.xlu0 %1419
        %v1423 = vcombine.low %v811, %v1412
        %v1424 = vcombine.high %v811, %v1412
        %v1426 = vunpack.c.l.s4 1983009808
        %v1427 = vunpack.c.0.s8 %v1426
        %v1428 = vlaneseq
        %v1429 = vshrl.u32 %v1428, 7
        %v1430 = vsub.s32 %v1427, %v1429
        %v1431 = vrot.slane %v1423, %v1430
        %v1433 = vunpack.c.l.s4 1983009808
        %v1434 = vunpack.c.0.s8 %v1433
        %v1435 = vlaneseq
        %v1436 = vshrl.u32 %v1435, 7
        %v1437 = vsub.s32 %v1434, %v1436
        %v1438 = vrot.slane %v1424, %v1437
        %v1439 = vcombine.low %v1406, %v1418
        %v1440 = vcombine.high %v1406, %v1418
        %v1442 = vunpack.c.l.s4 1983009808
        %v1443 = vunpack.c.0.s8 %v1442
        %v1444 = vlaneseq
        %v1445 = vshrl.u32 %v1444, 7
        %v1446 = vsub.s32 %v1443, %v1445
        %v1447 = vrot.slane %v1439, %v1446
        %v1449 = vunpack.c.l.s4 1983009808
        %v1450 = vunpack.c.0.s8 %v1449
        %v1451 = vlaneseq
        %v1452 = vshrl.u32 %v1451, 7
        %v1453 = vsub.s32 %v1450, %v1452
        %v1454 = vrot.slane %v1440, %v1453
        %v1455 = vcombine.low %v1431, %v1447
        %v1456 = vcombine.high %v1431, %v1447
        %v1458 = vunpack.c.l.s4 1934713408
        %v1459 = vunpack.c.0.s8 %v1458
        %v1460 = vlaneseq
        %v1461 = vshrl.u32 %v1460, 7
        %v1462 = vsub.s32 %v1459, %v1461
        %v1463 = vrot.slane %v1455, %v1462
        %v1465 = vunpack.c.l.s4 1934713408
        %v1466 = vunpack.c.0.s8 %v1465
        %v1467 = vlaneseq
        %v1468 = vshrl.u32 %v1467, 7
        %v1469 = vsub.s32 %v1466, %v1468
        %v1470 = vrot.slane %v1456, %v1469
        %v1471 = vcombine.low %v1438, %v1454
        %v1472 = vcombine.high %v1438, %v1454
        %v1474 = vunpack.c.l.s4 1934713408
        %v1475 = vunpack.c.0.s8 %v1474
        %v1476 = vlaneseq
        %v1477 = vshrl.u32 %v1476, 7
        %v1478 = vsub.s32 %v1475, %v1477
        %v1479 = vrot.slane %v1471, %v1478
        %v1481 = vunpack.c.l.s4 1934713408
        %v1482 = vunpack.c.0.s8 %v1481
        %v1483 = vlaneseq
        %v1484 = vshrl.u32 %v1483, 7
        %v1485 = vsub.s32 %v1482, %v1484
        %v1486 = vrot.slane %v1472, %v1485
        %v1487 = vcombine.high %v1463, 0.0
        %v1488 = vcombine.high %v1470, 0.0
        %v1489 = vcombine.high %v1479, 0.0
        %v1490 = vcombine.high %v1486, 0.0
        %v1491 = vcombine.low %v816, %v1414
        %v1492 = vcombine.high %v816, %v1414
        %v1494 = vunpack.c.l.s4 1983009808
        %v1495 = vunpack.c.0.s8 %v1494
        %v1496 = vlaneseq
        %v1497 = vshrl.u32 %v1496, 7
        %v1498 = vsub.s32 %v1495, %v1497
        %v1499 = vrot.slane %v1491, %v1498
        %v1501 = vunpack.c.l.s4 1983009808
        %v1502 = vunpack.c.0.s8 %v1501
        %v1503 = vlaneseq
        %v1504 = vshrl.u32 %v1503, 7
        %v1505 = vsub.s32 %v1502, %v1504
        %v1506 = vrot.slane %v1492, %v1505
        %v1507 = vcombine.low %v1408, %v1420
        %v1508 = vcombine.high %v1408, %v1420
        %v1510 = vunpack.c.l.s4 1983009808
        %v1511 = vunpack.c.0.s8 %v1510
        %v1512 = vlaneseq
        %v1513 = vshrl.u32 %v1512, 7
        %v1514 = vsub.s32 %v1511, %v1513
        %v1515 = vrot.slane %v1507, %v1514
        %v1517 = vunpack.c.l.s4 1983009808
        %v1518 = vunpack.c.0.s8 %v1517
        %v1519 = vlaneseq
        %v1520 = vshrl.u32 %v1519, 7
        %v1521 = vsub.s32 %v1518, %v1520
        %v1522 = vrot.slane %v1508, %v1521
        %v1523 = vcombine.low %v1499, %v1515
        %v1524 = vcombine.high %v1499, %v1515
        %v1526 = vunpack.c.l.s4 1934713408
        %v1527 = vunpack.c.0.s8 %v1526
        %v1528 = vlaneseq
        %v1529 = vshrl.u32 %v1528, 7
        %v1530 = vsub.s32 %v1527, %v1529
        %v1531 = vrot.slane %v1523, %v1530
        %v1533 = vunpack.c.l.s4 1934713408
        %v1534 = vunpack.c.0.s8 %v1533
        %v1535 = vlaneseq
        %v1536 = vshrl.u32 %v1535, 7
        %v1537 = vsub.s32 %v1534, %v1536
        %v1538 = vrot.slane %v1524, %v1537
        %v1539 = vcombine.low %v1506, %v1522
        %v1540 = vcombine.high %v1506, %v1522
        %v1542 = vunpack.c.l.s4 1934713408
        %v1543 = vunpack.c.0.s8 %v1542
        %v1544 = vlaneseq
        %v1545 = vshrl.u32 %v1544, 7
        %v1546 = vsub.s32 %v1543, %v1545
        %v1547 = vrot.slane %v1539, %v1546
        %v1549 = vunpack.c.l.s4 1934713408
        %v1550 = vunpack.c.0.s8 %v1549
        %v1551 = vlaneseq
        %v1552 = vshrl.u32 %v1551, 7
        %v1553 = vsub.s32 %v1550, %v1552
        %v1554 = vrot.slane %v1540, %v1553
        %v1555 = vcombine.high %v1531, 0.0
        %v1556 = vcombine.high %v1538, 0.0
        %v1557 = vcombine.high %v1547, 0.0
        %v1558 = vcombine.high %v1554, 0.0
        %v1559 = vcombine.low %v1463, %v1470
        %v1561 = vunpack.c.l.s4 1983009808
        %v1562 = vunpack.c.0.s8 %v1561
        %v1563 = vlaneseq
        %v1564 = vshrl.u32 %v1563, 7
        %v1565 = vsub.s32 %v1562, %v1564
        %v1566 = vrot.slane %v1559, %v1565
        %v1567 = vcombine.low %v1487, %v1488
        %v1569 = vunpack.c.l.s4 1983009808
        %v1570 = vunpack.c.0.s8 %v1569
        %v1571 = vlaneseq
        %v1572 = vshrl.u32 %v1571, 7
        %v1573 = vsub.s32 %v1570, %v1572
        %v1574 = vrot.slane %v1567, %v1573
        %v1575 = vcombine.low %v1479, %v1486
        %v1577 = vunpack.c.l.s4 1983009808
        %v1578 = vunpack.c.0.s8 %v1577
        %v1579 = vlaneseq
        %v1580 = vshrl.u32 %v1579, 7
        %v1581 = vsub.s32 %v1578, %v1580
        %v1582 = vrot.slane %v1575, %v1581
        %v1583 = vcombine.low %v1489, %v1490
        %v1585 = vunpack.c.l.s4 1983009808
        %v1586 = vunpack.c.0.s8 %v1585
        %v1587 = vlaneseq
        %v1588 = vshrl.u32 %v1587, 7
        %v1589 = vsub.s32 %v1586, %v1588
        %v1590 = vrot.slane %v1583, %v1589
        %v1591 = vcombine.low %v1566, %v1574
        %v1592 = vcombine.high %v1566, %v1574
        %v1594 = vunpack.c.l.s4 1934713408
        %v1595 = vunpack.c.0.s8 %v1594
        %v1596 = vlaneseq
        %v1597 = vshrl.u32 %v1596, 7
        %v1598 = vsub.s32 %v1595, %v1597
        %v1599 = vrot.slane %v1591, %v1598
        %v1601 = vunpack.c.l.s4 1934713408
        %v1602 = vunpack.c.0.s8 %v1601
        %v1603 = vlaneseq
        %v1604 = vshrl.u32 %v1603, 7
        %v1605 = vsub.s32 %v1602, %v1604
        %v1606 = vrot.slane %v1592, %v1605
        %v1607 = vcombine.low %v1582, %v1590
        %v1608 = vcombine.high %v1582, %v1590
        %v1610 = vunpack.c.l.s4 1934713408
        %v1611 = vunpack.c.0.s8 %v1610
        %v1612 = vlaneseq
        %v1613 = vshrl.u32 %v1612, 7
        %v1614 = vsub.s32 %v1611, %v1613
        %v1615 = vrot.slane %v1607, %v1614
        %v1617 = vunpack.c.l.s4 1934713408
        %v1618 = vunpack.c.0.s8 %v1617
        %v1619 = vlaneseq
        %v1620 = vshrl.u32 %v1619, 7
        %v1621 = vsub.s32 %v1618, %v1620
        %v1622 = vrot.slane %v1608, %v1621
        %v1623 = vcombine.low %v1599, %v1615
        %v1624 = vcombine.high %v1599, %v1615
        %v1625 = vcombine.low %v1606, %v1622
        %v1626 = vcombine.high %v1606, %v1622
        %v1627 = vcombine.low %v1531, %v1538
        %v1629 = vunpack.c.l.s4 1983009808
        %v1630 = vunpack.c.0.s8 %v1629
        %v1631 = vlaneseq
        %v1632 = vshrl.u32 %v1631, 7
        %v1633 = vsub.s32 %v1630, %v1632
        %v1634 = vrot.slane %v1627, %v1633
        %v1635 = vcombine.low %v1555, %v1556
        %v1637 = vunpack.c.l.s4 1983009808
        %v1638 = vunpack.c.0.s8 %v1637
        %v1639 = vlaneseq
        %v1640 = vshrl.u32 %v1639, 7
        %v1641 = vsub.s32 %v1638, %v1640
        %v1642 = vrot.slane %v1635, %v1641
        %v1643 = vcombine.low %v1547, %v1554
        %v1645 = vunpack.c.l.s4 1983009808
        %v1646 = vunpack.c.0.s8 %v1645
        %v1647 = vlaneseq
        %v1648 = vshrl.u32 %v1647, 7
        %v1649 = vsub.s32 %v1646, %v1648
        %v1650 = vrot.slane %v1643, %v1649
        %v1651 = vcombine.low %v1557, %v1558
        %v1653 = vunpack.c.l.s4 1983009808
        %v1654 = vunpack.c.0.s8 %v1653
        %v1655 = vlaneseq
        %v1656 = vshrl.u32 %v1655, 7
        %v1657 = vsub.s32 %v1654, %v1656
        %v1658 = vrot.slane %v1651, %v1657
        %v1659 = vcombine.low %v1634, %v1642
        %v1660 = vcombine.high %v1634, %v1642
        %v1662 = vunpack.c.l.s4 1934713408
        %v1663 = vunpack.c.0.s8 %v1662
        %v1664 = vlaneseq
        %v1665 = vshrl.u32 %v1664, 7
        %v1666 = vsub.s32 %v1663, %v1665
        %v1667 = vrot.slane %v1659, %v1666
        %v1669 = vunpack.c.l.s4 1934713408
        %v1670 = vunpack.c.0.s8 %v1669
        %v1671 = vlaneseq
        %v1672 = vshrl.u32 %v1671, 7
        %v1673 = vsub.s32 %v1670, %v1672
        %v1674 = vrot.slane %v1660, %v1673
        %v1675 = vcombine.low %v1650, %v1658
        %v1676 = vcombine.high %v1650, %v1658
        %v1678 = vunpack.c.l.s4 1934713408
        %v1679 = vunpack.c.0.s8 %v1678
        %v1680 = vlaneseq
        %v1681 = vshrl.u32 %v1680, 7
        %v1682 = vsub.s32 %v1679, %v1681
        %v1683 = vrot.slane %v1675, %v1682
        %v1685 = vunpack.c.l.s4 1934713408
        %v1686 = vunpack.c.0.s8 %v1685
        %v1687 = vlaneseq
        %v1688 = vshrl.u32 %v1687, 7
        %v1689 = vsub.s32 %v1686, %v1688
        %v1690 = vrot.slane %v1676, %v1689
        %v1691 = vcombine.low %v1667, %v1683
        %v1692 = vcombine.high %v1667, %v1683
        %v1693 = vcombine.low %v1674, %v1690
        %v1694 = vcombine.high %v1674, %v1690
        %vm1695 = vcmask 130048
        %v1697 = vsel %vm1695, %v1039, 0
        %v1700 = vsel %vm1695, %v1331, 0
        %1702 = vmatprep.subr.mxu0 0.0
        %1703 = vmatpush1.xpose.msra.mxu0 %v1700
        %1704 = vmatprep.subr.mxu0 0.0
        %1705 = vmatpush1.xpose.msra.mxu0 0.0
        %1706 = vmatprep.subr.mxu0 0.0
        %1707 = vmatpush1.xpose.msra.mxu0 0.0
        %1708 = vmatprep.subr.mxu0 0.0
        %1709 = vmatpush1.xpose.msra.mxu0 0.0
        %1710 = vmatprep.subr.mxu0 0.0
        %1711 = vmatpush1.xpose.msra.mxu0 0.0
        %1712 = vmatprep.subr.mxu0 0.0
        %1713 = vmatpush1.xpose.msra.mxu0 0.0
        %1714 = vmatprep.subr.mxu0 0.0
        %1715 = vmatpush1.xpose.msra.mxu0 0.0
        %1716 = vmatprep.subr.mxu0 0.0
        %1717 = vmatpush1.xpose.msra.mxu0 0.0
        %1718 = vmatprep.subr.mxu0 0.0
        %1719 = vmatpush1.xpose.msra.mxu0 0.0
        %1720 = vmatprep.subr.mxu0 0.0
        %1721 = vmatpush1.xpose.msra.mxu0 0.0
        %1722 = vmatprep.subr.mxu0 0.0
        %1723 = vmatpush1.xpose.msra.mxu0 0.0
        %1724 = vmatprep.subr.mxu0 0.0
        %1725 = vmatpush1.xpose.msra.mxu0 0.0
        %1726 = vmatprep.subr.mxu0 0.0
        %1727 = vmatpush1.xpose.msra.mxu0 0.0
        %1728 = vmatprep.subr.mxu0 0.0
        %1729 = vmatpush1.xpose.msra.mxu0 0.0
        %1730 = vmatprep.subr.mxu0 0.0
        %1731 = vmatpush1.xpose.msra.mxu0 0.0
        %1732 = vmatprep.subr.mxu0 0.0
        %1733 = vmatpush1.xpose.msra.mxu0 0.0
        %1734 = vmatprep.subr.mxu0 0.0
        %1735 = vmatpush1.xpose.msra.mxu0 0.0
        %1736 = vmatprep.subr.mxu0 0.0
        %1737 = vmatpush1.xpose.msra.mxu0 0.0
        %1738 = vmatprep.subr.mxu0 0.0
        %1739 = vmatpush1.xpose.msra.mxu0 0.0
        %1740 = vmatprep.subr.mxu0 0.0
        %1741 = vmatpush1.xpose.msra.mxu0 0.0
        %1742 = vmatprep.subr.mxu0 0.0
        %1743 = vmatpush1.xpose.msra.mxu0 0.0
        %1744 = vmatprep.subr.mxu0 0.0
        %1745 = vmatpush1.xpose.msra.mxu0 0.0
        %1746 = vmatprep.subr.mxu0 0.0
        %1747 = vmatpush1.xpose.msra.mxu0 0.0
        %1748 = vmatprep.subr.mxu0 0.0
        %1749 = vmatpush1.xpose.msra.mxu0 0.0
        %1750 = vmatprep.subr.mxu0 0.0
        %1751 = vmatpush1.xpose.msra.mxu0 0.0
        %1752 = vmatprep.subr.mxu0 0.0
        %1753 = vmatpush1.xpose.msra.mxu0 0.0
        %1754 = vmatprep.subr.mxu0 0.0
        %1755 = vmatpush1.xpose.msra.mxu0 0.0
        %1756 = vmatprep.subr.mxu0 0.0
        %1757 = vmatpush1.xpose.msra.mxu0 0.0
        %1758 = vmatprep.subr.mxu0 0.0
        %1759 = vmatpush1.xpose.msra.mxu0 0.0
        %1760 = vmatprep.subr.mxu0 0.0
        %1761 = vmatpush1.xpose.msra.mxu0 0.0
        %1762 = vmatprep.subr.mxu0 0.0
        %1763 = vmatpush1.xpose.msra.mxu0 0.0
        %1764 = vmatprep.subr.mxu0 0.0
        %1765 = vmatpush1.xpose.msra.mxu0 0.0
        %1766 = vmatprep.mubr.f32.mxu0 0.0
        %1767 = vmatmul.mubr.f32.gmra.mrb[0].mxu0 %v1697
        %v1768 = vpop.f32.mrb[0].mxu0
        %v1769 = vadd.f32 0.0, %v1768
        %v1770 = vpop.f32.mrb[0].mxu0
        %1771 = vdwg.mxu0
        %v1773 = vsel %vm1695, %v1107, 0
        %v1776 = vsel %vm1695, %v1399, 0
        %1778 = vmatprep.subr.mxu0 0.0
        %1779 = vmatpush1.xpose.msra.mxu0 %v1776
        %1780 = vmatprep.subr.mxu0 0.0
        %1781 = vmatpush1.xpose.msra.mxu0 0.0
        %1782 = vmatprep.subr.mxu0 0.0
        %1783 = vmatpush1.xpose.msra.mxu0 0.0
        %1784 = vmatprep.subr.mxu0 0.0
        %1785 = vmatpush1.xpose.msra.mxu0 0.0
        %1786 = vmatprep.subr.mxu0 0.0
        %1787 = vmatpush1.xpose.msra.mxu0 0.0
        %1788 = vmatprep.subr.mxu0 0.0
        %1789 = vmatpush1.xpose.msra.mxu0 0.0
        %1790 = vmatprep.subr.mxu0 0.0
        %1791 = vmatpush1.xpose.msra.mxu0 0.0
        %1792 = vmatprep.subr.mxu0 0.0
        %1793 = vmatpush1.xpose.msra.mxu0 0.0
        %1794 = vmatprep.subr.mxu0 0.0
        %1795 = vmatpush1.xpose.msra.mxu0 0.0
        %1796 = vmatprep.subr.mxu0 0.0
        %1797 = vmatpush1.xpose.msra.mxu0 0.0
        %1798 = vmatprep.subr.mxu0 0.0
        %1799 = vmatpush1.xpose.msra.mxu0 0.0
        %1800 = vmatprep.subr.mxu0 0.0
        %1801 = vmatpush1.xpose.msra.mxu0 0.0
        %1802 = vmatprep.subr.mxu0 0.0
        %1803 = vmatpush1.xpose.msra.mxu0 0.0
        %1804 = vmatprep.subr.mxu0 0.0
        %1805 = vmatpush1.xpose.msra.mxu0 0.0
        %1806 = vmatprep.subr.mxu0 0.0
        %1807 = vmatpush1.xpose.msra.mxu0 0.0
        %1808 = vmatprep.subr.mxu0 0.0
        %1809 = vmatpush1.xpose.msra.mxu0 0.0
        %1810 = vmatprep.subr.mxu0 0.0
        %1811 = vmatpush1.xpose.msra.mxu0 0.0
        %1812 = vmatprep.subr.mxu0 0.0
        %1813 = vmatpush1.xpose.msra.mxu0 0.0
        %1814 = vmatprep.subr.mxu0 0.0
        %1815 = vmatpush1.xpose.msra.mxu0 0.0
        %1816 = vmatprep.subr.mxu0 0.0
        %1817 = vmatpush1.xpose.msra.mxu0 0.0
        %1818 = vmatprep.subr.mxu0 0.0
        %1819 = vmatpush1.xpose.msra.mxu0 0.0
        %1820 = vmatprep.subr.mxu0 0.0
        %1821 = vmatpush1.xpose.msra.mxu0 0.0
        %1822 = vmatprep.subr.mxu0 0.0
        %1823 = vmatpush1.xpose.msra.mxu0 0.0
        %1824 = vmatprep.subr.mxu0 0.0
        %1825 = vmatpush1.xpose.msra.mxu0 0.0
        %1826 = vmatprep.subr.mxu0 0.0
        %1827 = vmatpush1.xpose.msra.mxu0 0.0
        %1828 = vmatprep.subr.mxu0 0.0
        %1829 = vmatpush1.xpose.msra.mxu0 0.0
        %1830 = vmatprep.subr.mxu0 0.0
        %1831 = vmatpush1.xpose.msra.mxu0 0.0
        %1832 = vmatprep.subr.mxu0 0.0
        %1833 = vmatpush1.xpose.msra.mxu0 0.0
        %1834 = vmatprep.subr.mxu0 0.0
        %1835 = vmatpush1.xpose.msra.mxu0 0.0
        %1836 = vmatprep.subr.mxu0 0.0
        %1837 = vmatpush1.xpose.msra.mxu0 0.0
        %1838 = vmatprep.subr.mxu0 0.0
        %1839 = vmatpush1.xpose.msra.mxu0 0.0
        %1840 = vmatprep.subr.mxu0 0.0
        %1841 = vmatpush1.xpose.msra.mxu0 0.0
        %1842 = vmatprep.mubr.f32.mxu0 0.0
        %1843 = vmatmul.mubr.f32.gmra.mrb[0].mxu0 %v1773
        %v1844 = vpop.f32.mrb[0].mxu0
        %v1845 = vadd.f32 0.0, %v1844
        %v1846 = vpop.f32.mrb[0].mxu0
        %1847 = vdwg.mxu0
        %v1849 = vsel %vm1695, %v1040, 0
        %v1852 = vsel %vm1695, %v1332, 0
        %1854 = vmatprep.subr.mxu0 0.0
        %1855 = vmatpush1.xpose.msra.mxu0 %v1852
        %1856 = vmatprep.subr.mxu0 0.0
        %1857 = vmatpush1.xpose.msra.mxu0 0.0
        %1858 = vmatprep.subr.mxu0 0.0
        %1859 = vmatpush1.xpose.msra.mxu0 0.0
        %1860 = vmatprep.subr.mxu0 0.0
        %1861 = vmatpush1.xpose.msra.mxu0 0.0
        %1862 = vmatprep.subr.mxu0 0.0
        %1863 = vmatpush1.xpose.msra.mxu0 0.0
        %1864 = vmatprep.subr.mxu0 0.0
        %1865 = vmatpush1.xpose.msra.mxu0 0.0
        %1866 = vmatprep.subr.mxu0 0.0
        %1867 = vmatpush1.xpose.msra.mxu0 0.0
        %1868 = vmatprep.subr.mxu0 0.0
        %1869 = vmatpush1.xpose.msra.mxu0 0.0
        %1870 = vmatprep.subr.mxu0 0.0
        %1871 = vmatpush1.xpose.msra.mxu0 0.0
        %1872 = vmatprep.subr.mxu0 0.0
        %1873 = vmatpush1.xpose.msra.mxu0 0.0
        %1874 = vmatprep.subr.mxu0 0.0
        %1875 = vmatpush1.xpose.msra.mxu0 0.0
        %1876 = vmatprep.subr.mxu0 0.0
        %1877 = vmatpush1.xpose.msra.mxu0 0.0
        %1878 = vmatprep.subr.mxu0 0.0
        %1879 = vmatpush1.xpose.msra.mxu0 0.0
        %1880 = vmatprep.subr.mxu0 0.0
        %1881 = vmatpush1.xpose.msra.mxu0 0.0
        %1882 = vmatprep.subr.mxu0 0.0
        %1883 = vmatpush1.xpose.msra.mxu0 0.0
        %1884 = vmatprep.subr.mxu0 0.0
        %1885 = vmatpush1.xpose.msra.mxu0 0.0
        %1886 = vmatprep.subr.mxu0 0.0
        %1887 = vmatpush1.xpose.msra.mxu0 0.0
        %1888 = vmatprep.subr.mxu0 0.0
        %1889 = vmatpush1.xpose.msra.mxu0 0.0
        %1890 = vmatprep.subr.mxu0 0.0
        %1891 = vmatpush1.xpose.msra.mxu0 0.0
        %1892 = vmatprep.subr.mxu0 0.0
        %1893 = vmatpush1.xpose.msra.mxu0 0.0
        %1894 = vmatprep.subr.mxu0 0.0
        %1895 = vmatpush1.xpose.msra.mxu0 0.0
        %1896 = vmatprep.subr.mxu0 0.0
        %1897 = vmatpush1.xpose.msra.mxu0 0.0
        %1898 = vmatprep.subr.mxu0 0.0
        %1899 = vmatpush1.xpose.msra.mxu0 0.0
        %1900 = vmatprep.subr.mxu0 0.0
        %1901 = vmatpush1.xpose.msra.mxu0 0.0
        %1902 = vmatprep.subr.mxu0 0.0
        %1903 = vmatpush1.xpose.msra.mxu0 0.0
        %1904 = vmatprep.subr.mxu0 0.0
        %1905 = vmatpush1.xpose.msra.mxu0 0.0
        %1906 = vmatprep.subr.mxu0 0.0
        %1907 = vmatpush1.xpose.msra.mxu0 0.0
        %1908 = vmatprep.subr.mxu0 0.0
        %1909 = vmatpush1.xpose.msra.mxu0 0.0
        %1910 = vmatprep.subr.mxu0 0.0
        %1911 = vmatpush1.xpose.msra.mxu0 0.0
        %1912 = vmatprep.subr.mxu0 0.0
        %1913 = vmatpush1.xpose.msra.mxu0 0.0
        %1914 = vmatprep.subr.mxu0 0.0
        %1915 = vmatpush1.xpose.msra.mxu0 0.0
        %1916 = vmatprep.subr.mxu0 0.0
        %1917 = vmatpush1.xpose.msra.mxu0 0.0
        %1918 = vmatprep.mubr.f32.mxu0 0.0
        %1919 = vmatmul.mubr.f32.gmra.mrb[0].mxu0 %v1849
        %v1920 = vpop.f32.mrb[0].mxu0
        %v1921 = vadd.f32 0.0, %v1920
        %v1922 = vpop.f32.mrb[0].mxu0
        %1923 = vdwg.mxu0
        %v1925 = vsel %vm1695, %v1108, 0
        %v1928 = vsel %vm1695, %v1400, 0
        %1930 = vmatprep.subr.mxu0 0.0
        %1931 = vmatpush1.xpose.msra.mxu0 %v1928
        %1932 = vmatprep.subr.mxu0 0.0
        %1933 = vmatpush1.xpose.msra.mxu0 0.0
        %1934 = vmatprep.subr.mxu0 0.0
        %1935 = vmatpush1.xpose.msra.mxu0 0.0
        %1936 = vmatprep.subr.mxu0 0.0
        %1937 = vmatpush1.xpose.msra.mxu0 0.0
        %1938 = vmatprep.subr.mxu0 0.0
        %1939 = vmatpush1.xpose.msra.mxu0 0.0
        %1940 = vmatprep.subr.mxu0 0.0
        %1941 = vmatpush1.xpose.msra.mxu0 0.0
        %1942 = vmatprep.subr.mxu0 0.0
        %1943 = vmatpush1.xpose.msra.mxu0 0.0
        %1944 = vmatprep.subr.mxu0 0.0
        %1945 = vmatpush1.xpose.msra.mxu0 0.0
        %1946 = vmatprep.subr.mxu0 0.0
        %1947 = vmatpush1.xpose.msra.mxu0 0.0
        %1948 = vmatprep.subr.mxu0 0.0
        %1949 = vmatpush1.xpose.msra.mxu0 0.0
        %1950 = vmatprep.subr.mxu0 0.0
        %1951 = vmatpush1.xpose.msra.mxu0 0.0
        %1952 = vmatprep.subr.mxu0 0.0
        %1953 = vmatpush1.xpose.msra.mxu0 0.0
        %1954 = vmatprep.subr.mxu0 0.0
        %1955 = vmatpush1.xpose.msra.mxu0 0.0
        %1956 = vmatprep.subr.mxu0 0.0
        %1957 = vmatpush1.xpose.msra.mxu0 0.0
        %1958 = vmatprep.subr.mxu0 0.0
        %1959 = vmatpush1.xpose.msra.mxu0 0.0
        %1960 = vmatprep.subr.mxu0 0.0
        %1961 = vmatpush1.xpose.msra.mxu0 0.0
        %1962 = vmatprep.subr.mxu0 0.0
        %1963 = vmatpush1.xpose.msra.mxu0 0.0
        %1964 = vmatprep.subr.mxu0 0.0
        %1965 = vmatpush1.xpose.msra.mxu0 0.0
        %1966 = vmatprep.subr.mxu0 0.0
        %1967 = vmatpush1.xpose.msra.mxu0 0.0
        %1968 = vmatprep.subr.mxu0 0.0
        %1969 = vmatpush1.xpose.msra.mxu0 0.0
        %1970 = vmatprep.subr.mxu0 0.0
        %1971 = vmatpush1.xpose.msra.mxu0 0.0
        %1972 = vmatprep.subr.mxu0 0.0
        %1973 = vmatpush1.xpose.msra.mxu0 0.0
        %1974 = vmatprep.subr.mxu0 0.0
        %1975 = vmatpush1.xpose.msra.mxu0 0.0
        %1976 = vmatprep.subr.mxu0 0.0
        %1977 = vmatpush1.xpose.msra.mxu0 0.0
        %1978 = vmatprep.subr.mxu0 0.0
        %1979 = vmatpush1.xpose.msra.mxu0 0.0
        %1980 = vmatprep.subr.mxu0 0.0
        %1981 = vmatpush1.xpose.msra.mxu0 0.0
        %1982 = vmatprep.subr.mxu0 0.0
        %1983 = vmatpush1.xpose.msra.mxu0 0.0
        %1984 = vmatprep.subr.mxu0 0.0
        %1985 = vmatpush1.xpose.msra.mxu0 0.0
        %1986 = vmatprep.subr.mxu0 0.0
        %1987 = vmatpush1.xpose.msra.mxu0 0.0
        %1988 = vmatprep.subr.mxu0 0.0
        %1989 = vmatpush1.xpose.msra.mxu0 0.0
        %1990 = vmatprep.subr.mxu0 0.0
        %1991 = vmatpush1.xpose.msra.mxu0 0.0
        %1992 = vmatprep.subr.mxu0 0.0
        %1993 = vmatpush1.xpose.msra.mxu0 0.0
        %1994 = vmatprep.mubr.f32.mxu0 0.0
        %1995 = vmatmul.mubr.f32.gmra.mrb[0].mxu0 %v1925
        %v1996 = vpop.f32.mrb[0].mxu0
        %v1997 = vadd.f32 0.0, %v1996
        %v1998 = vpop.f32.mrb[0].mxu0
        %1999 = vdwg.mxu0
        %v2001 = vsel %vm1695, %v1041, 0
        %v2004 = vsel %vm1695, %v1333, 0
        %2006 = vmatprep.subr.mxu0 0.0
        %2007 = vmatpush1.xpose.msra.mxu0 %v2004
        %2008 = vmatprep.subr.mxu0 0.0
        %2009 = vmatpush1.xpose.msra.mxu0 0.0
        %2010 = vmatprep.subr.mxu0 0.0
        %2011 = vmatpush1.xpose.msra.mxu0 0.0
        %2012 = vmatprep.subr.mxu0 0.0
        %2013 = vmatpush1.xpose.msra.mxu0 0.0
        %2014 = vmatprep.subr.mxu0 0.0
        %2015 = vmatpush1.xpose.msra.mxu0 0.0
        %2016 = vmatprep.subr.mxu0 0.0
        %2017 = vmatpush1.xpose.msra.mxu0 0.0
        %2018 = vmatprep.subr.mxu0 0.0
        %2019 = vmatpush1.xpose.msra.mxu0 0.0
        %2020 = vmatprep.subr.mxu0 0.0
        %2021 = vmatpush1.xpose.msra.mxu0 0.0
        %2022 = vmatprep.subr.mxu0 0.0
        %2023 = vmatpush1.xpose.msra.mxu0 0.0
        %2024 = vmatprep.subr.mxu0 0.0
        %2025 = vmatpush1.xpose.msra.mxu0 0.0
        %2026 = vmatprep.subr.mxu0 0.0
        %2027 = vmatpush1.xpose.msra.mxu0 0.0
        %2028 = vmatprep.subr.mxu0 0.0
        %2029 = vmatpush1.xpose.msra.mxu0 0.0
        %2030 = vmatprep.subr.mxu0 0.0
        %2031 = vmatpush1.xpose.msra.mxu0 0.0
        %2032 = vmatprep.subr.mxu0 0.0
        %2033 = vmatpush1.xpose.msra.mxu0 0.0
        %2034 = vmatprep.subr.mxu0 0.0
        %2035 = vmatpush1.xpose.msra.mxu0 0.0
        %2036 = vmatprep.subr.mxu0 0.0
        %2037 = vmatpush1.xpose.msra.mxu0 0.0
        %2038 = vmatprep.subr.mxu0 0.0
        %2039 = vmatpush1.xpose.msra.mxu0 0.0
        %2040 = vmatprep.subr.mxu0 0.0
        %2041 = vmatpush1.xpose.msra.mxu0 0.0
        %2042 = vmatprep.subr.mxu0 0.0
        %2043 = vmatpush1.xpose.msra.mxu0 0.0
        %2044 = vmatprep.subr.mxu0 0.0
        %2045 = vmatpush1.xpose.msra.mxu0 0.0
        %2046 = vmatprep.subr.mxu0 0.0
        %2047 = vmatpush1.xpose.msra.mxu0 0.0
        %2048 = vmatprep.subr.mxu0 0.0
        %2049 = vmatpush1.xpose.msra.mxu0 0.0
        %2050 = vmatprep.subr.mxu0 0.0
        %2051 = vmatpush1.xpose.msra.mxu0 0.0
        %2052 = vmatprep.subr.mxu0 0.0
        %2053 = vmatpush1.xpose.msra.mxu0 0.0
        %2054 = vmatprep.subr.mxu0 0.0
        %2055 = vmatpush1.xpose.msra.mxu0 0.0
        %2056 = vmatprep.subr.mxu0 0.0
        %2057 = vmatpush1.xpose.msra.mxu0 0.0
        %2058 = vmatprep.subr.mxu0 0.0
        %2059 = vmatpush1.xpose.msra.mxu0 0.0
        %2060 = vmatprep.subr.mxu0 0.0
        %2061 = vmatpush1.xpose.msra.mxu0 0.0
        %2062 = vmatprep.subr.mxu0 0.0
        %2063 = vmatpush1.xpose.msra.mxu0 0.0
        %2064 = vmatprep.subr.mxu0 0.0
        %2065 = vmatpush1.xpose.msra.mxu0 0.0
        %2066 = vmatprep.subr.mxu0 0.0
        %2067 = vmatpush1.xpose.msra.mxu0 0.0
        %2068 = vmatprep.subr.mxu0 0.0
        %2069 = vmatpush1.xpose.msra.mxu0 0.0
        %2070 = vmatprep.mubr.f32.mxu0 0.0
        %2071 = vmatmul.mubr.f32.gmra.mrb[0].mxu0 %v2001
        %v2072 = vpop.f32.mrb[0].mxu0
        %v2073 = vadd.f32 0.0, %v2072
        %v2074 = vpop.f32.mrb[0].mxu0
        %2075 = vdwg.mxu0
        %v2077 = vsel %vm1695, %v1109, 0
        %v2080 = vsel %vm1695, %v1401, 0
        %2082 = vmatprep.subr.mxu0 0.0
        %2083 = vmatpush1.xpose.msra.mxu0 %v2080
        %2084 = vmatprep.subr.mxu0 0.0
        %2085 = vmatpush1.xpose.msra.mxu0 0.0
        %2086 = vmatprep.subr.mxu0 0.0
        %2087 = vmatpush1.xpose.msra.mxu0 0.0
        %2088 = vmatprep.subr.mxu0 0.0
        %2089 = vmatpush1.xpose.msra.mxu0 0.0
        %2090 = vmatprep.subr.mxu0 0.0
        %2091 = vmatpush1.xpose.msra.mxu0 0.0
        %2092 = vmatprep.subr.mxu0 0.0
        %2093 = vmatpush1.xpose.msra.mxu0 0.0
        %2094 = vmatprep.subr.mxu0 0.0
        %2095 = vmatpush1.xpose.msra.mxu0 0.0
        %2096 = vmatprep.subr.mxu0 0.0
        %2097 = vmatpush1.xpose.msra.mxu0 0.0
        %2098 = vmatprep.subr.mxu0 0.0
        %2099 = vmatpush1.xpose.msra.mxu0 0.0
        %2100 = vmatprep.subr.mxu0 0.0
        %2101 = vmatpush1.xpose.msra.mxu0 0.0
        %2102 = vmatprep.subr.mxu0 0.0
        %2103 = vmatpush1.xpose.msra.mxu0 0.0
        %2104 = vmatprep.subr.mxu0 0.0
        %2105 = vmatpush1.xpose.msra.mxu0 0.0
        %2106 = vmatprep.subr.mxu0 0.0
        %2107 = vmatpush1.xpose.msra.mxu0 0.0
        %2108 = vmatprep.subr.mxu0 0.0
        %2109 = vmatpush1.xpose.msra.mxu0 0.0
        %2110 = vmatprep.subr.mxu0 0.0
        %2111 = vmatpush1.xpose.msra.mxu0 0.0
        %2112 = vmatprep.subr.mxu0 0.0
        %2113 = vmatpush1.xpose.msra.mxu0 0.0
        %2114 = vmatprep.subr.mxu0 0.0
        %2115 = vmatpush1.xpose.msra.mxu0 0.0
        %2116 = vmatprep.subr.mxu0 0.0
        %2117 = vmatpush1.xpose.msra.mxu0 0.0
        %2118 = vmatprep.subr.mxu0 0.0
        %2119 = vmatpush1.xpose.msra.mxu0 0.0
        %2120 = vmatprep.subr.mxu0 0.0
        %2121 = vmatpush1.xpose.msra.mxu0 0.0
        %2122 = vmatprep.subr.mxu0 0.0
        %2123 = vmatpush1.xpose.msra.mxu0 0.0
        %2124 = vmatprep.subr.mxu0 0.0
        %2125 = vmatpush1.xpose.msra.mxu0 0.0
        %2126 = vmatprep.subr.mxu0 0.0
        %2127 = vmatpush1.xpose.msra.mxu0 0.0
        %2128 = vmatprep.subr.mxu0 0.0
        %2129 = vmatpush1.xpose.msra.mxu0 0.0
        %2130 = vmatprep.subr.mxu0 0.0
        %2131 = vmatpush1.xpose.msra.mxu0 0.0
        %2132 = vmatprep.subr.mxu0 0.0
        %2133 = vmatpush1.xpose.msra.mxu0 0.0
        %2134 = vmatprep.subr.mxu0 0.0
        %2135 = vmatpush1.xpose.msra.mxu0 0.0
        %2136 = vmatprep.subr.mxu0 0.0
        %2137 = vmatpush1.xpose.msra.mxu0 0.0
        %2138 = vmatprep.subr.mxu0 0.0
        %2139 = vmatpush1.xpose.msra.mxu0 0.0
        %2140 = vmatprep.subr.mxu0 0.0
        %2141 = vmatpush1.xpose.msra.mxu0 0.0
        %2142 = vmatprep.subr.mxu0 0.0
        %2143 = vmatpush1.xpose.msra.mxu0 0.0
        %2144 = vmatprep.subr.mxu0 0.0
        %2145 = vmatpush1.xpose.msra.mxu0 0.0
        %2146 = vmatprep.mubr.f32.mxu0 0.0
        %2147 = vmatmul.mubr.f32.gmra.mrb[0].mxu0 %v2077
        %v2148 = vpop.f32.mrb[0].mxu0
        %v2149 = vadd.f32 0.0, %v2148
        %v2150 = vpop.f32.mrb[0].mxu0
        %2151 = vdwg.mxu0
        %v2153 = vsel %vm1695, %v1042, 0
        %v2156 = vsel %vm1695, %v1334, 0
        %2158 = vmatprep.subr.mxu0 0.0
        %2159 = vmatpush1.xpose.msra.mxu0 %v2156
        %2160 = vmatprep.subr.mxu0 0.0
        %2161 = vmatpush1.xpose.msra.mxu0 0.0
        %2162 = vmatprep.subr.mxu0 0.0
        %2163 = vmatpush1.xpose.msra.mxu0 0.0
        %2164 = vmatprep.subr.mxu0 0.0
        %2165 = vmatpush1.xpose.msra.mxu0 0.0
        %2166 = vmatprep.subr.mxu0 0.0
        %2167 = vmatpush1.xpose.msra.mxu0 0.0
        %2168 = vmatprep.subr.mxu0 0.0
        %2169 = vmatpush1.xpose.msra.mxu0 0.0
        %2170 = vmatprep.subr.mxu0 0.0
        %2171 = vmatpush1.xpose.msra.mxu0 0.0
        %2172 = vmatprep.subr.mxu0 0.0
        %2173 = vmatpush1.xpose.msra.mxu0 0.0
        %2174 = vmatprep.subr.mxu0 0.0
        %2175 = vmatpush1.xpose.msra.mxu0 0.0
        %2176 = vmatprep.subr.mxu0 0.0
        %2177 = vmatpush1.xpose.msra.mxu0 0.0
        %2178 = vmatprep.subr.mxu0 0.0
        %2179 = vmatpush1.xpose.msra.mxu0 0.0
        %2180 = vmatprep.subr.mxu0 0.0
        %2181 = vmatpush1.xpose.msra.mxu0 0.0
        %2182 = vmatprep.subr.mxu0 0.0
        %2183 = vmatpush1.xpose.msra.mxu0 0.0
        %2184 = vmatprep.subr.mxu0 0.0
        %2185 = vmatpush1.xpose.msra.mxu0 0.0
        %2186 = vmatprep.subr.mxu0 0.0
        %2187 = vmatpush1.xpose.msra.mxu0 0.0
        %2188 = vmatprep.subr.mxu0 0.0
        %2189 = vmatpush1.xpose.msra.mxu0 0.0
        %2190 = vmatprep.subr.mxu0 0.0
        %2191 = vmatpush1.xpose.msra.mxu0 0.0
        %2192 = vmatprep.subr.mxu0 0.0
        %2193 = vmatpush1.xpose.msra.mxu0 0.0
        %2194 = vmatprep.subr.mxu0 0.0
        %2195 = vmatpush1.xpose.msra.mxu0 0.0
        %2196 = vmatprep.subr.mxu0 0.0
        %2197 = vmatpush1.xpose.msra.mxu0 0.0
        %2198 = vmatprep.subr.mxu0 0.0
        %2199 = vmatpush1.xpose.msra.mxu0 0.0
        %2200 = vmatprep.subr.mxu0 0.0
        %2201 = vmatpush1.xpose.msra.mxu0 0.0
        %2202 = vmatprep.subr.mxu0 0.0
        %2203 = vmatpush1.xpose.msra.mxu0 0.0
        %2204 = vmatprep.subr.mxu0 0.0
        %2205 = vmatpush1.xpose.msra.mxu0 0.0
        %2206 = vmatprep.subr.mxu0 0.0
        %2207 = vmatpush1.xpose.msra.mxu0 0.0
        %2208 = vmatprep.subr.mxu0 0.0
        %2209 = vmatpush1.xpose.msra.mxu0 0.0
        %2210 = vmatprep.subr.mxu0 0.0
        %2211 = vmatpush1.xpose.msra.mxu0 0.0
        %2212 = vmatprep.subr.mxu0 0.0
        %2213 = vmatpush1.xpose.msra.mxu0 0.0
        %2214 = vmatprep.subr.mxu0 0.0
        %2215 = vmatpush1.xpose.msra.mxu0 0.0
        %2216 = vmatprep.subr.mxu0 0.0
        %2217 = vmatpush1.xpose.msra.mxu0 0.0
        %2218 = vmatprep.subr.mxu0 0.0
        %2219 = vmatpush1.xpose.msra.mxu0 0.0
        %2220 = vmatprep.subr.mxu0 0.0
        %2221 = vmatpush1.xpose.msra.mxu0 0.0
        %2222 = vmatprep.mubr.f32.mxu0 0.0
        %2223 = vmatmul.mubr.f32.gmra.mrb[0].mxu0 %v2153
        %v2224 = vpop.f32.mrb[0].mxu0
        %v2225 = vadd.f32 0.0, %v2224
        %v2226 = vpop.f32.mrb[0].mxu0
        %2227 = vdwg.mxu0
        %v2229 = vsel %vm1695, %v1110, 0
        %v2232 = vsel %vm1695, %v1402, 0
        %2234 = vmatprep.subr.mxu0 0.0
        %2235 = vmatpush1.xpose.msra.mxu0 %v2232
        %2236 = vmatprep.subr.mxu0 0.0
        %2237 = vmatpush1.xpose.msra.mxu0 0.0
        %2238 = vmatprep.subr.mxu0 0.0
        %2239 = vmatpush1.xpose.msra.mxu0 0.0
        %2240 = vmatprep.subr.mxu0 0.0
        %2241 = vmatpush1.xpose.msra.mxu0 0.0
        %2242 = vmatprep.subr.mxu0 0.0
        %2243 = vmatpush1.xpose.msra.mxu0 0.0
        %2244 = vmatprep.subr.mxu0 0.0
        %2245 = vmatpush1.xpose.msra.mxu0 0.0
        %2246 = vmatprep.subr.mxu0 0.0
        %2247 = vmatpush1.xpose.msra.mxu0 0.0
        %2248 = vmatprep.subr.mxu0 0.0
        %2249 = vmatpush1.xpose.msra.mxu0 0.0
        %2250 = vmatprep.subr.mxu0 0.0
        %2251 = vmatpush1.xpose.msra.mxu0 0.0
        %2252 = vmatprep.subr.mxu0 0.0
        %2253 = vmatpush1.xpose.msra.mxu0 0.0
        %2254 = vmatprep.subr.mxu0 0.0
        %2255 = vmatpush1.xpose.msra.mxu0 0.0
        %2256 = vmatprep.subr.mxu0 0.0
        %2257 = vmatpush1.xpose.msra.mxu0 0.0
        %2258 = vmatprep.subr.mxu0 0.0
        %2259 = vmatpush1.xpose.msra.mxu0 0.0
        %2260 = vmatprep.subr.mxu0 0.0
        %2261 = vmatpush1.xpose.msra.mxu0 0.0
        %2262 = vmatprep.subr.mxu0 0.0
        %2263 = vmatpush1.xpose.msra.mxu0 0.0
        %2264 = vmatprep.subr.mxu0 0.0
        %2265 = vmatpush1.xpose.msra.mxu0 0.0
        %2266 = vmatprep.subr.mxu0 0.0
        %2267 = vmatpush1.xpose.msra.mxu0 0.0
        %2268 = vmatprep.subr.mxu0 0.0
        %2269 = vmatpush1.xpose.msra.mxu0 0.0
        %2270 = vmatprep.subr.mxu0 0.0
        %2271 = vmatpush1.xpose.msra.mxu0 0.0
        %2272 = vmatprep.subr.mxu0 0.0
        %2273 = vmatpush1.xpose.msra.mxu0 0.0
        %2274 = vmatprep.subr.mxu0 0.0
        %2275 = vmatpush1.xpose.msra.mxu0 0.0
        %2276 = vmatprep.subr.mxu0 0.0
        %2277 = vmatpush1.xpose.msra.mxu0 0.0
        %2278 = vmatprep.subr.mxu0 0.0
        %2279 = vmatpush1.xpose.msra.mxu0 0.0
        %2280 = vmatprep.subr.mxu0 0.0
        %2281 = vmatpush1.xpose.msra.mxu0 0.0
        %2282 = vmatprep.subr.mxu0 0.0
        %2283 = vmatpush1.xpose.msra.mxu0 0.0
        %2284 = vmatprep.subr.mxu0 0.0
        %2285 = vmatpush1.xpose.msra.mxu0 0.0
        %2286 = vmatprep.subr.mxu0 0.0
        %2287 = vmatpush1.xpose.msra.mxu0 0.0
        %2288 = vmatprep.subr.mxu0 0.0
        %2289 = vmatpush1.xpose.msra.mxu0 0.0
        %2290 = vmatprep.subr.mxu0 0.0
        %2291 = vmatpush1.xpose.msra.mxu0 0.0
        %2292 = vmatprep.subr.mxu0 0.0
        %2293 = vmatpush1.xpose.msra.mxu0 0.0
        %2294 = vmatprep.subr.mxu0 0.0
        %2295 = vmatpush1.xpose.msra.mxu0 0.0
        %2296 = vmatprep.subr.mxu0 0.0
        %2297 = vmatpush1.xpose.msra.mxu0 0.0
        %2298 = vmatprep.mubr.f32.mxu0 0.0
        %2299 = vmatmul.mubr.f32.gmra.mrb[0].mxu0 %v2229
        %v2300 = vpop.f32.mrb[0].mxu0
        %v2301 = vadd.f32 0.0, %v2300
        %v2302 = vpop.f32.mrb[0].mxu0
        %2303 = vdwg.mxu0
        %vm2304 = vcmask 64512
        %v2305 = vsel %vm2304, %v1769, -inf
        %2306 = vmax.xlane.f32.xlu0 %v2305
        %v2307 = vpop.xlane.xlu0 %2306
        %v2308 = vsel %vm2304, %v1845, -inf
        %2309 = vmax.xlane.f32.xlu0 %v2308
        %v2310 = vpop.xlane.xlu0 %2309
        %v2311 = vsel %vm2304, %v1921, -inf
        %2312 = vmax.xlane.f32.xlu0 %v2311
        %v2313 = vpop.xlane.xlu0 %2312
        %v2314 = vsel %vm2304, %v1997, -inf
        %2315 = vmax.xlane.f32.xlu0 %v2314
        %v2316 = vpop.xlane.xlu0 %2315
        %v2317 = vsel %vm2304, %v2073, -inf
        %2318 = vmax.xlane.f32.xlu0 %v2317
        %v2319 = vpop.xlane.xlu0 %2318
        %v2320 = vsel %vm2304, %v2149, -inf
        %2321 = vmax.xlane.f32.xlu0 %v2320
        %v2322 = vpop.xlane.xlu0 %2321
        %v2323 = vsel %vm2304, %v2225, -inf
        %2324 = vmax.xlane.f32.xlu0 %v2323
        %v2325 = vpop.xlane.xlu0 %2324
        %v2326 = vsel %vm2304, %v2301, -inf
        %2327 = vmax.xlane.f32.xlu0 %v2326
        %v2328 = vpop.xlane.xlu0 %2327
        %v2329 = vsub.f32 %v1769, %v2307
        %v2330 = vsub.f32 %v1845, %v2310
        %v2331 = vsub.f32 %v1921, %v2313
        %v2332 = vsub.f32 %v1997, %v2316
        %v2333 = vsub.f32 %v2073, %v2319
        %v2334 = vsub.f32 %v2149, %v2322
        %v2335 = vsub.f32 %v2225, %v2325
        %v2336 = vsub.f32 %v2301, %v2328
        %v2337 = vmul.f32 %v2329, 1.442695
        %v2338 = vpow.pop %v2337
        %v2339 = vmul.f32 %v2330, 1.442695
        %v2340 = vpow.pop %v2339
        %v2341 = vmul.f32 %v2331, 1.442695
        %v2342 = vpow.pop %v2341
        %v2343 = vmul.f32 %v2332, 1.442695
        %v2344 = vpow.pop %v2343
        %v2345 = vmul.f32 %v2333, 1.442695
        %v2346 = vpow.pop %v2345
        %v2347 = vmul.f32 %v2334, 1.442695
        %v2348 = vpow.pop %v2347
        %v2349 = vmul.f32 %v2335, 1.442695
        %v2350 = vpow.pop %v2349
        %v2351 = vmul.f32 %v2336, 1.442695
        %v2352 = vpow.pop %v2351
        %v2353 = vsel %vm2304, %v2338, 0.0
        %2354 = vadd.xlane.f32.xlu0 %v2353
        %v2355 = vpop.xlane.xlu0 %2354
        %v2356 = vsel %vm2304, %v2340, 0.0
        %2357 = vadd.xlane.f32.xlu0 %v2356
        %v2358 = vpop.xlane.xlu0 %2357
        %v2359 = vsel %vm2304, %v2342, 0.0
        %2360 = vadd.xlane.f32.xlu0 %v2359
        %v2361 = vpop.xlane.xlu0 %2360
        %v2362 = vsel %vm2304, %v2344, 0.0
        %2363 = vadd.xlane.f32.xlu0 %v2362
        %v2364 = vpop.xlane.xlu0 %2363
        %v2365 = vsel %vm2304, %v2346, 0.0
        %2366 = vadd.xlane.f32.xlu0 %v2365
        %v2367 = vpop.xlane.xlu0 %2366
        %v2368 = vsel %vm2304, %v2348, 0.0
        %2369 = vadd.xlane.f32.xlu0 %v2368
        %v2370 = vpop.xlane.xlu0 %2369
        %v2371 = vsel %vm2304, %v2350, 0.0
        %2372 = vadd.xlane.f32.xlu0 %v2371
        %v2373 = vpop.xlane.xlu0 %2372
        %v2374 = vsel %vm2304, %v2352, 0.0
        %2375 = vadd.xlane.f32.xlu0 %v2374
        %v2376 = vpop.xlane.xlu0 %2375
        %v2378 = vsel %vm2304, %v2338, 0
        %2380 = vmatprep.subr.mxu0 0.0
        %2381 = vmatpush1.msra.mxu0 %v1623
        %2382 = vmatprep.subr.mxu0 0.0
        %2383 = vmatpush1.msra.mxu0 0.0
        %2384 = vmatprep.subr.mxu0 0.0
        %2385 = vmatpush1.msra.mxu0 0.0
        %2386 = vmatprep.subr.mxu0 0.0
        %2387 = vmatpush1.msra.mxu0 0.0
        %2388 = vmatprep.subr.mxu0 0.0
        %2389 = vmatpush1.msra.mxu0 0.0
        %2390 = vmatprep.subr.mxu0 0.0
        %2391 = vmatpush1.msra.mxu0 0.0
        %2392 = vmatprep.subr.mxu0 0.0
        %2393 = vmatpush1.msra.mxu0 0.0
        %2394 = vmatprep.subr.mxu0 0.0
        %2395 = vmatpush1.msra.mxu0 0.0
        %2396 = vmatprep.subr.mxu0 0.0
        %2397 = vmatpush1.msra.mxu0 0.0
        %2398 = vmatprep.subr.mxu0 0.0
        %2399 = vmatpush1.msra.mxu0 0.0
        %2400 = vmatprep.subr.mxu0 0.0
        %2401 = vmatpush1.msra.mxu0 0.0
        %2402 = vmatprep.subr.mxu0 0.0
        %2403 = vmatpush1.msra.mxu0 0.0
        %2404 = vmatprep.subr.mxu0 0.0
        %2405 = vmatpush1.msra.mxu0 0.0
        %2406 = vmatprep.subr.mxu0 0.0
        %2407 = vmatpush1.msra.mxu0 0.0
        %2408 = vmatprep.subr.mxu0 0.0
        %2409 = vmatpush1.msra.mxu0 0.0
        %2410 = vmatprep.subr.mxu0 0.0
        %2411 = vmatpush1.msra.mxu0 0.0
        %2412 = vmatprep.subr.mxu0 0.0
        %2413 = vmatpush1.msra.mxu0 0.0
        %2414 = vmatprep.subr.mxu0 0.0
        %2415 = vmatpush1.msra.mxu0 0.0
        %2416 = vmatprep.subr.mxu0 0.0
        %2417 = vmatpush1.msra.mxu0 0.0
        %2418 = vmatprep.subr.mxu0 0.0
        %2419 = vmatpush1.msra.mxu0 0.0
        %2420 = vmatprep.subr.mxu0 0.0
        %2421 = vmatpush1.msra.mxu0 0.0
        %2422 = vmatprep.subr.mxu0 0.0
        %2423 = vmatpush1.msra.mxu0 0.0
        %2424 = vmatprep.subr.mxu0 0.0
        %2425 = vmatpush1.msra.mxu0 0.0
        %2426 = vmatprep.subr.mxu0 0.0
        %2427 = vmatpush1.msra.mxu0 0.0
        %2428 = vmatprep.subr.mxu0 0.0
        %2429 = vmatpush1.msra.mxu0 0.0
        %2430 = vmatprep.subr.mxu0 0.0
        %2431 = vmatpush1.msra.mxu0 0.0
        %2432 = vmatprep.subr.mxu0 0.0
        %2433 = vmatpush1.msra.mxu0 0.0
        %2434 = vmatprep.subr.mxu0 0.0
        %2435 = vmatpush1.msra.mxu0 0.0
        %2436 = vmatprep.subr.mxu0 0.0
        %2437 = vmatpush1.msra.mxu0 0.0
        %2438 = vmatprep.subr.mxu0 0.0
        %2439 = vmatpush1.msra.mxu0 0.0
        %2440 = vmatprep.subr.mxu0 0.0
        %2441 = vmatpush1.msra.mxu0 0.0
        %2442 = vmatprep.subr.mxu0 0.0
        %2443 = vmatpush1.msra.mxu0 0.0
        %2444 = vmatprep.mubr.f32.mxu0 0.0
        %2445 = vmatmul.mubr.f32.gmra.mrb[0].mxu0 %v2378
        %v2446 = vpop.f32.mrb[0].mxu0
        %v2447 = vadd.f32 0.0, %v2446
        %v2448 = vpop.f32.mrb[0].mxu0
        %2449 = vdwg.mxu0
        %v2451 = vsel %vm2304, %v2340, 0
        %2453 = vmatprep.subr.mxu0 0.0
        %2454 = vmatpush1.msra.mxu0 %v1691
        %2455 = vmatprep.subr.mxu0 0.0
        %2456 = vmatpush1.msra.mxu0 0.0
        %2457 = vmatprep.subr.mxu0 0.0
        %2458 = vmatpush1.msra.mxu0 0.0
        %2459 = vmatprep.subr.mxu0 0.0
        %2460 = vmatpush1.msra.mxu0 0.0
        %2461 = vmatprep.subr.mxu0 0.0
        %2462 = vmatpush1.msra.mxu0 0.0
        %2463 = vmatprep.subr.mxu0 0.0
        %2464 = vmatpush1.msra.mxu0 0.0
        %2465 = vmatprep.subr.mxu0 0.0
        %2466 = vmatpush1.msra.mxu0 0.0
        %2467 = vmatprep.subr.mxu0 0.0
        %2468 = vmatpush1.msra.mxu0 0.0
        %2469 = vmatprep.subr.mxu0 0.0
        %2470 = vmatpush1.msra.mxu0 0.0
        %2471 = vmatprep.subr.mxu0 0.0
        %2472 = vmatpush1.msra.mxu0 0.0
        %2473 = vmatprep.subr.mxu0 0.0
        %2474 = vmatpush1.msra.mxu0 0.0
        %2475 = vmatprep.subr.mxu0 0.0
        %2476 = vmatpush1.msra.mxu0 0.0
        %2477 = vmatprep.subr.mxu0 0.0
        %2478 = vmatpush1.msra.mxu0 0.0
        %2479 = vmatprep.subr.mxu0 0.0
        %2480 = vmatpush1.msra.mxu0 0.0
        %2481 = vmatprep.subr.mxu0 0.0
        %2482 = vmatpush1.msra.mxu0 0.0
        %2483 = vmatprep.subr.mxu0 0.0
        %2484 = vmatpush1.msra.mxu0 0.0
        %2485 = vmatprep.subr.mxu0 0.0
        %2486 = vmatpush1.msra.mxu0 0.0
        %2487 = vmatprep.subr.mxu0 0.0
        %2488 = vmatpush1.msra.mxu0 0.0
        %2489 = vmatprep.subr.mxu0 0.0
        %2490 = vmatpush1.msra.mxu0 0.0
        %2491 = vmatprep.subr.mxu0 0.0
        %2492 = vmatpush1.msra.mxu0 0.0
        %2493 = vmatprep.subr.mxu0 0.0
        %2494 = vmatpush1.msra.mxu0 0.0
        %2495 = vmatprep.subr.mxu0 0.0
        %2496 = vmatpush1.msra.mxu0 0.0
        %2497 = vmatprep.subr.mxu0 0.0
        %2498 = vmatpush1.msra.mxu0 0.0
        %2499 = vmatprep.subr.mxu0 0.0
        %2500 = vmatpush1.msra.mxu0 0.0
        %2501 = vmatprep.subr.mxu0 0.0
        %2502 = vmatpush1.msra.mxu0 0.0
        %2503 = vmatprep.subr.mxu0 0.0
        %2504 = vmatpush1.msra.mxu0 0.0
        %2505 = vmatprep.subr.mxu0 0.0
        %2506 = vmatpush1.msra.mxu0 0.0
        %2507 = vmatprep.subr.mxu0 0.0
        %2508 = vmatpush1.msra.mxu0 0.0
        %2509 = vmatprep.subr.mxu0 0.0
        %2510 = vmatpush1.msra.mxu0 0.0
        %2511 = vmatprep.subr.mxu0 0.0
        %2512 = vmatpush1.msra.mxu0 0.0
        %2513 = vmatprep.subr.mxu0 0.0
        %2514 = vmatpush1.msra.mxu0 0.0
        %2515 = vmatprep.subr.mxu0 0.0
        %2516 = vmatpush1.msra.mxu0 0.0
        %2517 = vmatprep.mubr.f32.mxu0 0.0
        %2518 = vmatmul.mubr.f32.gmra.mrb[0].mxu0 %v2451
        %v2519 = vpop.f32.mrb[0].mxu0
        %v2520 = vadd.f32 0.0, %v2519
        %v2521 = vpop.f32.mrb[0].mxu0
        %2522 = vdwg.mxu0
        %v2524 = vsel %vm2304, %v2342, 0
        %2526 = vmatprep.subr.mxu0 0.0
        %2527 = vmatpush1.msra.mxu0 %v1624
        %2528 = vmatprep.subr.mxu0 0.0
        %2529 = vmatpush1.msra.mxu0 0.0
        %2530 = vmatprep.subr.mxu0 0.0
        %2531 = vmatpush1.msra.mxu0 0.0
        %2532 = vmatprep.subr.mxu0 0.0
        %2533 = vmatpush1.msra.mxu0 0.0
        %2534 = vmatprep.subr.mxu0 0.0
        %2535 = vmatpush1.msra.mxu0 0.0
        %2536 = vmatprep.subr.mxu0 0.0
        %2537 = vmatpush1.msra.mxu0 0.0
        %2538 = vmatprep.subr.mxu0 0.0
        %2539 = vmatpush1.msra.mxu0 0.0
        %2540 = vmatprep.subr.mxu0 0.0
        %2541 = vmatpush1.msra.mxu0 0.0
        %2542 = vmatprep.subr.mxu0 0.0
        %2543 = vmatpush1.msra.mxu0 0.0
        %2544 = vmatprep.subr.mxu0 0.0
        %2545 = vmatpush1.msra.mxu0 0.0
        %2546 = vmatprep.subr.mxu0 0.0
        %2547 = vmatpush1.msra.mxu0 0.0
        %2548 = vmatprep.subr.mxu0 0.0
        %2549 = vmatpush1.msra.mxu0 0.0
        %2550 = vmatprep.subr.mxu0 0.0
        %2551 = vmatpush1.msra.mxu0 0.0
        %2552 = vmatprep.subr.mxu0 0.0
        %2553 = vmatpush1.msra.mxu0 0.0
        %2554 = vmatprep.subr.mxu0 0.0
        %2555 = vmatpush1.msra.mxu0 0.0
        %2556 = vmatprep.subr.mxu0 0.0
        %2557 = vmatpush1.msra.mxu0 0.0
        %2558 = vmatprep.subr.mxu0 0.0
        %2559 = vmatpush1.msra.mxu0 0.0
        %2560 = vmatprep.subr.mxu0 0.0
        %2561 = vmatpush1.msra.mxu0 0.0
        %2562 = vmatprep.subr.mxu0 0.0
        %2563 = vmatpush1.msra.mxu0 0.0
        %2564 = vmatprep.subr.mxu0 0.0
        %2565 = vmatpush1.msra.mxu0 0.0
        %2566 = vmatprep.subr.mxu0 0.0
        %2567 = vmatpush1.msra.mxu0 0.0
        %2568 = vmatprep.subr.mxu0 0.0
        %2569 = vmatpush1.msra.mxu0 0.0
        %2570 = vmatprep.subr.mxu0 0.0
        %2571 = vmatpush1.msra.mxu0 0.0
        %2572 = vmatprep.subr.mxu0 0.0
        %2573 = vmatpush1.msra.mxu0 0.0
        %2574 = vmatprep.subr.mxu0 0.0
        %2575 = vmatpush1.msra.mxu0 0.0
        %2576 = vmatprep.subr.mxu0 0.0
        %2577 = vmatpush1.msra.mxu0 0.0
        %2578 = vmatprep.subr.mxu0 0.0
        %2579 = vmatpush1.msra.mxu0 0.0
        %2580 = vmatprep.subr.mxu0 0.0
        %2581 = vmatpush1.msra.mxu0 0.0
        %2582 = vmatprep.subr.mxu0 0.0
        %2583 = vmatpush1.msra.mxu0 0.0
        %2584 = vmatprep.subr.mxu0 0.0
        %2585 = vmatpush1.msra.mxu0 0.0
        %2586 = vmatprep.subr.mxu0 0.0
        %2587 = vmatpush1.msra.mxu0 0.0
        %2588 = vmatprep.subr.mxu0 0.0
        %2589 = vmatpush1.msra.mxu0 0.0
        %2590 = vmatprep.mubr.f32.mxu0 0.0
        %2591 = vmatmul.mubr.f32.gmra.mrb[0].mxu0 %v2524
        %v2592 = vpop.f32.mrb[0].mxu0
        %v2593 = vadd.f32 0.0, %v2592
        %v2594 = vpop.f32.mrb[0].mxu0
        %2595 = vdwg.mxu0
        %v2597 = vsel %vm2304, %v2344, 0
        %2599 = vmatprep.subr.mxu0 0.0
        %2600 = vmatpush1.msra.mxu0 %v1692
        %2601 = vmatprep.subr.mxu0 0.0
        %2602 = vmatpush1.msra.mxu0 0.0
        %2603 = vmatprep.subr.mxu0 0.0
        %2604 = vmatpush1.msra.mxu0 0.0
        %2605 = vmatprep.subr.mxu0 0.0
        %2606 = vmatpush1.msra.mxu0 0.0
        %2607 = vmatprep.subr.mxu0 0.0
        %2608 = vmatpush1.msra.mxu0 0.0
        %2609 = vmatprep.subr.mxu0 0.0
        %2610 = vmatpush1.msra.mxu0 0.0
        %2611 = vmatprep.subr.mxu0 0.0
        %2612 = vmatpush1.msra.mxu0 0.0
        %2613 = vmatprep.subr.mxu0 0.0
        %2614 = vmatpush1.msra.mxu0 0.0
        %2615 = vmatprep.subr.mxu0 0.0
        %2616 = vmatpush1.msra.mxu0 0.0
        %2617 = vmatprep.subr.mxu0 0.0
        %2618 = vmatpush1.msra.mxu0 0.0
        %2619 = vmatprep.subr.mxu0 0.0
        %2620 = vmatpush1.msra.mxu0 0.0
        %2621 = vmatprep.subr.mxu0 0.0
        %2622 = vmatpush1.msra.mxu0 0.0
        %2623 = vmatprep.subr.mxu0 0.0
        %2624 = vmatpush1.msra.mxu0 0.0
        %2625 = vmatprep.subr.mxu0 0.0
        %2626 = vmatpush1.msra.mxu0 0.0
        %2627 = vmatprep.subr.mxu0 0.0
        %2628 = vmatpush1.msra.mxu0 0.0
        %2629 = vmatprep.subr.mxu0 0.0
        %2630 = vmatpush1.msra.mxu0 0.0
        %2631 = vmatprep.subr.mxu0 0.0
        %2632 = vmatpush1.msra.mxu0 0.0
        %2633 = vmatprep.subr.mxu0 0.0
        %2634 = vmatpush1.msra.mxu0 0.0
        %2635 = vmatprep.subr.mxu0 0.0
        %2636 = vmatpush1.msra.mxu0 0.0
        %2637 = vmatprep.subr.mxu0 0.0
        %2638 = vmatpush1.msra.mxu0 0.0
        %2639 = vmatprep.subr.mxu0 0.0
        %2640 = vmatpush1.msra.mxu0 0.0
        %2641 = vmatprep.subr.mxu0 0.0
        %2642 = vmatpush1.msra.mxu0 0.0
        %2643 = vmatprep.subr.mxu0 0.0
        %2644 = vmatpush1.msra.mxu0 0.0
        %2645 = vmatprep.subr.mxu0 0.0
        %2646 = vmatpush1.msra.mxu0 0.0
        %2647 = vmatprep.subr.mxu0 0.0
        %2648 = vmatpush1.msra.mxu0 0.0
        %2649 = vmatprep.subr.mxu0 0.0
        %2650 = vmatpush1.msra.mxu0 0.0
        %2651 = vmatprep.subr.mxu0 0.0
        %2652 = vmatpush1.msra.mxu0 0.0
        %2653 = vmatprep.subr.mxu0 0.0
        %2654 = vmatpush1.msra.mxu0 0.0
        %2655 = vmatprep.subr.mxu0 0.0
        %2656 = vmatpush1.msra.mxu0 0.0
        %2657 = vmatprep.subr.mxu0 0.0
        %2658 = vmatpush1.msra.mxu0 0.0
        %2659 = vmatprep.subr.mxu0 0.0
        %2660 = vmatpush1.msra.mxu0 0.0
        %2661 = vmatprep.subr.mxu0 0.0
        %2662 = vmatpush1.msra.mxu0 0.0
        %2663 = vmatprep.mubr.f32.mxu0 0.0
        %2664 = vmatmul.mubr.f32.gmra.mrb[0].mxu0 %v2597
        %v2665 = vpop.f32.mrb[0].mxu0
        %v2666 = vadd.f32 0.0, %v2665
        %v2667 = vpop.f32.mrb[0].mxu0
        %2668 = vdwg.mxu0
        %v2670 = vsel %vm2304, %v2346, 0
        %2672 = vmatprep.subr.mxu0 0.0
        %2673 = vmatpush1.msra.mxu0 %v1625
        %2674 = vmatprep.subr.mxu0 0.0
        %2675 = vmatpush1.msra.mxu0 0.0
        %2676 = vmatprep.subr.mxu0 0.0
        %2677 = vmatpush1.msra.mxu0 0.0
        %2678 = vmatprep.subr.mxu0 0.0
        %2679 = vmatpush1.msra.mxu0 0.0
        %2680 = vmatprep.subr.mxu0 0.0
        %2681 = vmatpush1.msra.mxu0 0.0
        %2682 = vmatprep.subr.mxu0 0.0
        %2683 = vmatpush1.msra.mxu0 0.0
        %2684 = vmatprep.subr.mxu0 0.0
        %2685 = vmatpush1.msra.mxu0 0.0
        %2686 = vmatprep.subr.mxu0 0.0
        %2687 = vmatpush1.msra.mxu0 0.0
        %2688 = vmatprep.subr.mxu0 0.0
        %2689 = vmatpush1.msra.mxu0 0.0
        %2690 = vmatprep.subr.mxu0 0.0
        %2691 = vmatpush1.msra.mxu0 0.0
        %2692 = vmatprep.subr.mxu0 0.0
        %2693 = vmatpush1.msra.mxu0 0.0
        %2694 = vmatprep.subr.mxu0 0.0
        %2695 = vmatpush1.msra.mxu0 0.0
        %2696 = vmatprep.subr.mxu0 0.0
        %2697 = vmatpush1.msra.mxu0 0.0
        %2698 = vmatprep.subr.mxu0 0.0
        %2699 = vmatpush1.msra.mxu0 0.0
        %2700 = vmatprep.subr.mxu0 0.0
        %2701 = vmatpush1.msra.mxu0 0.0
        %2702 = vmatprep.subr.mxu0 0.0
        %2703 = vmatpush1.msra.mxu0 0.0
        %2704 = vmatprep.subr.mxu0 0.0
        %2705 = vmatpush1.msra.mxu0 0.0
        %2706 = vmatprep.subr.mxu0 0.0
        %2707 = vmatpush1.msra.mxu0 0.0
        %2708 = vmatprep.subr.mxu0 0.0
        %2709 = vmatpush1.msra.mxu0 0.0
        %2710 = vmatprep.subr.mxu0 0.0
        %2711 = vmatpush1.msra.mxu0 0.0
        %2712 = vmatprep.subr.mxu0 0.0
        %2713 = vmatpush1.msra.mxu0 0.0
        %2714 = vmatprep.subr.mxu0 0.0
        %2715 = vmatpush1.msra.mxu0 0.0
        %2716 = vmatprep.subr.mxu0 0.0
        %2717 = vmatpush1.msra.mxu0 0.0
        %2718 = vmatprep.subr.mxu0 0.0
        %2719 = vmatpush1.msra.mxu0 0.0
        %2720 = vmatprep.subr.mxu0 0.0
        %2721 = vmatpush1.msra.mxu0 0.0
        %2722 = vmatprep.subr.mxu0 0.0
        %2723 = vmatpush1.msra.mxu0 0.0
        %2724 = vmatprep.subr.mxu0 0.0
        %2725 = vmatpush1.msra.mxu0 0.0
        %2726 = vmatprep.subr.mxu0 0.0
        %2727 = vmatpush1.msra.mxu0 0.0
        %2728 = vmatprep.subr.mxu0 0.0
        %2729 = vmatpush1.msra.mxu0 0.0
        %2730 = vmatprep.subr.mxu0 0.0
        %2731 = vmatpush1.msra.mxu0 0.0
        %2732 = vmatprep.subr.mxu0 0.0
        %2733 = vmatpush1.msra.mxu0 0.0
        %2734 = vmatprep.subr.mxu0 0.0
        %2735 = vmatpush1.msra.mxu0 0.0
        %2736 = vmatprep.mubr.f32.mxu0 0.0
        %2737 = vmatmul.mubr.f32.gmra.mrb[0].mxu0 %v2670
        %v2738 = vpop.f32.mrb[0].mxu0
        %v2739 = vadd.f32 0.0, %v2738
        %v2740 = vpop.f32.mrb[0].mxu0
        %2741 = vdwg.mxu0
        %v2743 = vsel %vm2304, %v2348, 0
        %2745 = vmatprep.subr.mxu0 0.0
        %2746 = vmatpush1.msra.mxu0 %v1693
        %2747 = vmatprep.subr.mxu0 0.0
        %2748 = vmatpush1.msra.mxu0 0.0
        %2749 = vmatprep.subr.mxu0 0.0
        %2750 = vmatpush1.msra.mxu0 0.0
        %2751 = vmatprep.subr.mxu0 0.0
        %2752 = vmatpush1.msra.mxu0 0.0
        %2753 = vmatprep.subr.mxu0 0.0
        %2754 = vmatpush1.msra.mxu0 0.0
        %2755 = vmatprep.subr.mxu0 0.0
        %2756 = vmatpush1.msra.mxu0 0.0
        %2757 = vmatprep.subr.mxu0 0.0
        %2758 = vmatpush1.msra.mxu0 0.0
        %2759 = vmatprep.subr.mxu0 0.0
        %2760 = vmatpush1.msra.mxu0 0.0
        %2761 = vmatprep.subr.mxu0 0.0
        %2762 = vmatpush1.msra.mxu0 0.0
        %2763 = vmatprep.subr.mxu0 0.0
        %2764 = vmatpush1.msra.mxu0 0.0
        %2765 = vmatprep.subr.mxu0 0.0
        %2766 = vmatpush1.msra.mxu0 0.0
        %2767 = vmatprep.subr.mxu0 0.0
        %2768 = vmatpush1.msra.mxu0 0.0
        %2769 = vmatprep.subr.mxu0 0.0
        %2770 = vmatpush1.msra.mxu0 0.0
        %2771 = vmatprep.subr.mxu0 0.0
        %2772 = vmatpush1.msra.mxu0 0.0
        %2773 = vmatprep.subr.mxu0 0.0
        %2774 = vmatpush1.msra.mxu0 0.0
        %2775 = vmatprep.subr.mxu0 0.0
        %2776 = vmatpush1.msra.mxu0 0.0
        %2777 = vmatprep.subr.mxu0 0.0
        %2778 = vmatpush1.msra.mxu0 0.0
        %2779 = vmatprep.subr.mxu0 0.0
        %2780 = vmatpush1.msra.mxu0 0.0
        %2781 = vmatprep.subr.mxu0 0.0
        %2782 = vmatpush1.msra.mxu0 0.0
        %2783 = vmatprep.subr.mxu0 0.0
        %2784 = vmatpush1.msra.mxu0 0.0
        %2785 = vmatprep.subr.mxu0 0.0
        %2786 = vmatpush1.msra.mxu0 0.0
        %2787 = vmatprep.subr.mxu0 0.0
        %2788 = vmatpush1.msra.mxu0 0.0
        %2789 = vmatprep.subr.mxu0 0.0
        %2790 = vmatpush1.msra.mxu0 0.0
        %2791 = vmatprep.subr.mxu0 0.0
        %2792 = vmatpush1.msra.mxu0 0.0
        %2793 = vmatprep.subr.mxu0 0.0
        %2794 = vmatpush1.msra.mxu0 0.0
        %2795 = vmatprep.subr.mxu0 0.0
        %2796 = vmatpush1.msra.mxu0 0.0
        %2797 = vmatprep.subr.mxu0 0.0
        %2798 = vmatpush1.msra.mxu0 0.0
        %2799 = vmatprep.subr.mxu0 0.0
        %2800 = vmatpush1.msra.mxu0 0.0
        %2801 = vmatprep.subr.mxu0 0.0
        %2802 = vmatpush1.msra.mxu0 0.0
        %2803 = vmatprep.subr.mxu0 0.0
        %2804 = vmatpush1.msra.mxu0 0.0
        %2805 = vmatprep.subr.mxu0 0.0
        %2806 = vmatpush1.msra.mxu0 0.0
        %2807 = vmatprep.subr.mxu0 0.0
        %2808 = vmatpush1.msra.mxu0 0.0
        %2809 = vmatprep.mubr.f32.mxu0 0.0
        %2810 = vmatmul.mubr.f32.gmra.mrb[0].mxu0 %v2743
        %v2811 = vpop.f32.mrb[0].mxu0
        %v2812 = vadd.f32 0.0, %v2811
        %v2813 = vpop.f32.mrb[0].mxu0
        %2814 = vdwg.mxu0
        %v2816 = vsel %vm2304, %v2350, 0
        %2818 = vmatprep.subr.mxu0 0.0
        %2819 = vmatpush1.msra.mxu0 %v1626
        %2820 = vmatprep.subr.mxu0 0.0
        %2821 = vmatpush1.msra.mxu0 0.0
        %2822 = vmatprep.subr.mxu0 0.0
        %2823 = vmatpush1.msra.mxu0 0.0
        %2824 = vmatprep.subr.mxu0 0.0
        %2825 = vmatpush1.msra.mxu0 0.0
        %2826 = vmatprep.subr.mxu0 0.0
        %2827 = vmatpush1.msra.mxu0 0.0
        %2828 = vmatprep.subr.mxu0 0.0
        %2829 = vmatpush1.msra.mxu0 0.0
        %2830 = vmatprep.subr.mxu0 0.0
        %2831 = vmatpush1.msra.mxu0 0.0
        %2832 = vmatprep.subr.mxu0 0.0
        %2833 = vmatpush1.msra.mxu0 0.0
        %2834 = vmatprep.subr.mxu0 0.0
        %2835 = vmatpush1.msra.mxu0 0.0
        %2836 = vmatprep.subr.mxu0 0.0
        %2837 = vmatpush1.msra.mxu0 0.0
        %2838 = vmatprep.subr.mxu0 0.0
        %2839 = vmatpush1.msra.mxu0 0.0
        %2840 = vmatprep.subr.mxu0 0.0
        %2841 = vmatpush1.msra.mxu0 0.0
        %2842 = vmatprep.subr.mxu0 0.0
        %2843 = vmatpush1.msra.mxu0 0.0
        %2844 = vmatprep.subr.mxu0 0.0
        %2845 = vmatpush1.msra.mxu0 0.0
        %2846 = vmatprep.subr.mxu0 0.0
        %2847 = vmatpush1.msra.mxu0 0.0
        %2848 = vmatprep.subr.mxu0 0.0
        %2849 = vmatpush1.msra.mxu0 0.0
        %2850 = vmatprep.subr.mxu0 0.0
        %2851 = vmatpush1.msra.mxu0 0.0
        %2852 = vmatprep.subr.mxu0 0.0
        %2853 = vmatpush1.msra.mxu0 0.0
        %2854 = vmatprep.subr.mxu0 0.0
        %2855 = vmatpush1.msra.mxu0 0.0
        %2856 = vmatprep.subr.mxu0 0.0
        %2857 = vmatpush1.msra.mxu0 0.0
        %2858 = vmatprep.subr.mxu0 0.0
        %2859 = vmatpush1.msra.mxu0 0.0
        %2860 = vmatprep.subr.mxu0 0.0
        %2861 = vmatpush1.msra.mxu0 0.0
        %2862 = vmatprep.subr.mxu0 0.0
        %2863 = vmatpush1.msra.mxu0 0.0
        %2864 = vmatprep.subr.mxu0 0.0
        %2865 = vmatpush1.msra.mxu0 0.0
        %2866 = vmatprep.subr.mxu0 0.0
        %2867 = vmatpush1.msra.mxu0 0.0
        %2868 = vmatprep.subr.mxu0 0.0
        %2869 = vmatpush1.msra.mxu0 0.0
        %2870 = vmatprep.subr.mxu0 0.0
        %2871 = vmatpush1.msra.mxu0 0.0
        %2872 = vmatprep.subr.mxu0 0.0
        %2873 = vmatpush1.msra.mxu0 0.0
        %2874 = vmatprep.subr.mxu0 0.0
        %2875 = vmatpush1.msra.mxu0 0.0
        %2876 = vmatprep.subr.mxu0 0.0
        %2877 = vmatpush1.msra.mxu0 0.0
        %2878 = vmatprep.subr.mxu0 0.0
        %2879 = vmatpush1.msra.mxu0 0.0
        %2880 = vmatprep.subr.mxu0 0.0
        %2881 = vmatpush1.msra.mxu0 0.0
        %2882 = vmatprep.mubr.f32.mxu0 0.0
        %2883 = vmatmul.mubr.f32.gmra.mrb[0].mxu0 %v2816
        %v2884 = vpop.f32.mrb[0].mxu0
        %v2885 = vadd.f32 0.0, %v2884
        %v2886 = vpop.f32.mrb[0].mxu0
        %2887 = vdwg.mxu0
        %v2889 = vsel %vm2304, %v2352, 0
        %2891 = vmatprep.subr.mxu0 0.0
        %2892 = vmatpush1.msra.mxu0 %v1694
        %2893 = vmatprep.subr.mxu0 0.0
        %2894 = vmatpush1.msra.mxu0 0.0
        %2895 = vmatprep.subr.mxu0 0.0
        %2896 = vmatpush1.msra.mxu0 0.0
        %2897 = vmatprep.subr.mxu0 0.0
        %2898 = vmatpush1.msra.mxu0 0.0
        %2899 = vmatprep.subr.mxu0 0.0
        %2900 = vmatpush1.msra.mxu0 0.0
        %2901 = vmatprep.subr.mxu0 0.0
        %2902 = vmatpush1.msra.mxu0 0.0
        %2903 = vmatprep.subr.mxu0 0.0
        %2904 = vmatpush1.msra.mxu0 0.0
        %2905 = vmatprep.subr.mxu0 0.0
        %2906 = vmatpush1.msra.mxu0 0.0
        %2907 = vmatprep.subr.mxu0 0.0
        %2908 = vmatpush1.msra.mxu0 0.0
        %2909 = vmatprep.subr.mxu0 0.0
        %2910 = vmatpush1.msra.mxu0 0.0
        %2911 = vmatprep.subr.mxu0 0.0
        %2912 = vmatpush1.msra.mxu0 0.0
        %2913 = vmatprep.subr.mxu0 0.0
        %2914 = vmatpush1.msra.mxu0 0.0
        %2915 = vmatprep.subr.mxu0 0.0
        %2916 = vmatpush1.msra.mxu0 0.0
        %2917 = vmatprep.subr.mxu0 0.0
        %2918 = vmatpush1.msra.mxu0 0.0
        %2919 = vmatprep.subr.mxu0 0.0
        %2920 = vmatpush1.msra.mxu0 0.0
        %2921 = vmatprep.subr.mxu0 0.0
        %2922 = vmatpush1.msra.mxu0 0.0
        %2923 = vmatprep.subr.mxu0 0.0
        %2924 = vmatpush1.msra.mxu0 0.0
        %2925 = vmatprep.subr.mxu0 0.0
        %2926 = vmatpush1.msra.mxu0 0.0
        %2927 = vmatprep.subr.mxu0 0.0
        %2928 = vmatpush1.msra.mxu0 0.0
        %2929 = vmatprep.subr.mxu0 0.0
        %2930 = vmatpush1.msra.mxu0 0.0
        %2931 = vmatprep.subr.mxu0 0.0
        %2932 = vmatpush1.msra.mxu0 0.0
        %2933 = vmatprep.subr.mxu0 0.0
        %2934 = vmatpush1.msra.mxu0 0.0
        %2935 = vmatprep.subr.mxu0 0.0
        %2936 = vmatpush1.msra.mxu0 0.0
        %2937 = vmatprep.subr.mxu0 0.0
        %2938 = vmatpush1.msra.mxu0 0.0
        %2939 = vmatprep.subr.mxu0 0.0
        %2940 = vmatpush1.msra.mxu0 0.0
        %2941 = vmatprep.subr.mxu0 0.0
        %2942 = vmatpush1.msra.mxu0 0.0
        %2943 = vmatprep.subr.mxu0 0.0
        %2944 = vmatpush1.msra.mxu0 0.0
        %2945 = vmatprep.subr.mxu0 0.0
        %2946 = vmatpush1.msra.mxu0 0.0
        %2947 = vmatprep.subr.mxu0 0.0
        %2948 = vmatpush1.msra.mxu0 0.0
        %2949 = vmatprep.subr.mxu0 0.0
        %2950 = vmatpush1.msra.mxu0 0.0
        %2951 = vmatprep.subr.mxu0 0.0
        %2952 = vmatpush1.msra.mxu0 0.0
        %2953 = vmatprep.subr.mxu0 0.0
        %2954 = vmatpush1.msra.mxu0 0.0
        %2955 = vmatprep.mubr.f32.mxu0 0.0
        %2956 = vmatmul.mubr.f32.gmra.mrb[0].mxu0 %v2889
        %v2957 = vpop.f32.mrb[0].mxu0
        %v2958 = vadd.f32 0.0, %v2957
        %v2959 = vpop.f32.mrb[0].mxu0
        %2960 = vdwg.mxu0
        %v2961 = vrcp.pop %v2355
        %v2962 = vrcp.pop %v2358
        %v2963 = vrcp.pop %v2361
        %v2964 = vrcp.pop %v2364
        %v2965 = vrcp.pop %v2367
        %v2966 = vrcp.pop %v2370
        %v2967 = vrcp.pop %v2373
        %v2968 = vrcp.pop %v2376
        %v2969 = vmul.f32 %v2447, %v2961
        %v2970 = vmul.f32 %v2520, %v2962
        %v2971 = vmul.f32 %v2593, %v2963
        %v2972 = vmul.f32 %v2666, %v2964
        %v2973 = vmul.f32 %v2739, %v2965
        %v2974 = vmul.f32 %v2812, %v2966
        %v2975 = vmul.f32 %v2885, %v2967
        %v2976 = vmul.f32 %v2958, %v2968
        %v2977 = vcombine.low %v2969, %v2973
        %v2978 = vcombine.high %v2969, %v2973
        %v2980 = vunpack.c.l.s4 1983009808
        %v2981 = vunpack.c.0.s8 %v2980
        %v2982 = vlaneseq
        %v2983 = vshrl.u32 %v2982, 7
        %v2984 = vsub.s32 %v2981, %v2983
        %v2985 = vrot.slane %v2977, %v2984
        %v2987 = vunpack.c.l.s4 1983009808
        %v2988 = vunpack.c.0.s8 %v2987
        %v2989 = vlaneseq
        %v2990 = vshrl.u32 %v2989, 7
        %v2991 = vsub.s32 %v2988, %v2990
        %v2992 = vrot.slane %v2978, %v2991
        %v2993 = vcombine.low %v2971, %v2975
        %v2994 = vcombine.high %v2971, %v2975
        %v2996 = vunpack.c.l.s4 1983009808
        %v2997 = vunpack.c.0.s8 %v2996
        %v2998 = vlaneseq
        %v2999 = vshrl.u32 %v2998, 7
        %v3000 = vsub.s32 %v2997, %v2999
        %v3001 = vrot.slane %v2993, %v3000
        %v3003 = vunpack.c.l.s4 1983009808
        %v3004 = vunpack.c.0.s8 %v3003
        %v3005 = vlaneseq
        %v3006 = vshrl.u32 %v3005, 7
        %v3007 = vsub.s32 %v3004, %v3006
        %v3008 = vrot.slane %v2994, %v3007
        %v3009 = vcombine.low %v2985, %v3001
        %v3010 = vcombine.high %v2985, %v3001
        %v3012 = vunpack.c.l.s4 1934713408
        %v3013 = vunpack.c.0.s8 %v3012
        %v3014 = vlaneseq
        %v3015 = vshrl.u32 %v3014, 7
        %v3016 = vsub.s32 %v3013, %v3015
        %v3017 = vrot.slane %v3009, %v3016
        %v3019 = vunpack.c.l.s4 1934713408
        %v3020 = vunpack.c.0.s8 %v3019
        %v3021 = vlaneseq
        %v3022 = vshrl.u32 %v3021, 7
        %v3023 = vsub.s32 %v3020, %v3022
        %v3024 = vrot.slane %v3010, %v3023
        %v3025 = vcombine.low %v2992, %v3008
        %v3026 = vcombine.high %v2992, %v3008
        %v3028 = vunpack.c.l.s4 1934713408
        %v3029 = vunpack.c.0.s8 %v3028
        %v3030 = vlaneseq
        %v3031 = vshrl.u32 %v3030, 7
        %v3032 = vsub.s32 %v3029, %v3031
        %v3033 = vrot.slane %v3025, %v3032
        %v3035 = vunpack.c.l.s4 1934713408
        %v3036 = vunpack.c.0.s8 %v3035
        %v3037 = vlaneseq
        %v3038 = vshrl.u32 %v3037, 7
        %v3039 = vsub.s32 %v3036, %v3038
        %v3040 = vrot.slane %v3026, %v3039
        %v3041 = vcombine.high %v3017, 0.0
        %v3042 = vcombine.high %v3024, 0.0
        %v3043 = vcombine.high %v3033, 0.0
        %v3044 = vcombine.high %v3040, 0.0
        %v3045 = vcombine.low %v2970, %v2974
        %v3046 = vcombine.high %v2970, %v2974
        %v3048 = vunpack.c.l.s4 1983009808
        %v3049 = vunpack.c.0.s8 %v3048
        %v3050 = vlaneseq
        %v3051 = vshrl.u32 %v3050, 7
        %v3052 = vsub.s32 %v3049, %v3051
        %v3053 = vrot.slane %v3045, %v3052
        %v3055 = vunpack.c.l.s4 1983009808
        %v3056 = vunpack.c.0.s8 %v3055
        %v3057 = vlaneseq
        %v3058 = vshrl.u32 %v3057, 7
        %v3059 = vsub.s32 %v3056, %v3058
        %v3060 = vrot.slane %v3046, %v3059
        %v3061 = vcombine.low %v2972, %v2976
        %v3062 = vcombine.high %v2972, %v2976
        %v3064 = vunpack.c.l.s4 1983009808
        %v3065 = vunpack.c.0.s8 %v3064
        %v3066 = vlaneseq
        %v3067 = vshrl.u32 %v3066, 7
        %v3068 = vsub.s32 %v3065, %v3067
        %v3069 = vrot.slane %v3061, %v3068
        %v3071 = vunpack.c.l.s4 1983009808
        %v3072 = vunpack.c.0.s8 %v3071
        %v3073 = vlaneseq
        %v3074 = vshrl.u32 %v3073, 7
        %v3075 = vsub.s32 %v3072, %v3074
        %v3076 = vrot.slane %v3062, %v3075
        %v3077 = vcombine.low %v3053, %v3069
        %v3078 = vcombine.high %v3053, %v3069
        %v3080 = vunpack.c.l.s4 1934713408
        %v3081 = vunpack.c.0.s8 %v3080
        %v3082 = vlaneseq
        %v3083 = vshrl.u32 %v3082, 7
        %v3084 = vsub.s32 %v3081, %v3083
        %v3085 = vrot.slane %v3077, %v3084
        %v3087 = vunpack.c.l.s4 1934713408
        %v3088 = vunpack.c.0.s8 %v3087
        %v3089 = vlaneseq
        %v3090 = vshrl.u32 %v3089, 7
        %v3091 = vsub.s32 %v3088, %v3090
        %v3092 = vrot.slane %v3078, %v3091
        %v3093 = vcombine.low %v3060, %v3076
        %v3094 = vcombine.high %v3060, %v3076
        %v3096 = vunpack.c.l.s4 1934713408
        %v3097 = vunpack.c.0.s8 %v3096
        %v3098 = vlaneseq
        %v3099 = vshrl.u32 %v3098, 7
        %v3100 = vsub.s32 %v3097, %v3099
        %v3101 = vrot.slane %v3093, %v3100
        %v3103 = vunpack.c.l.s4 1934713408
        %v3104 = vunpack.c.0.s8 %v3103
        %v3105 = vlaneseq
        %v3106 = vshrl.u32 %v3105, 7
        %v3107 = vsub.s32 %v3104, %v3106
        %v3108 = vrot.slane %v3094, %v3107
        %v3109 = vcombine.high %v3085, 0.0
        %v3110 = vcombine.high %v3092, 0.0
        %v3111 = vcombine.high %v3101, 0.0
        %v3112 = vcombine.high %v3108, 0.0
        %v3113 = vcombine.low %v3017, %v3024
        %v3115 = vunpack.c.l.s4 1983009808
        %v3116 = vunpack.c.0.s8 %v3115
        %v3117 = vlaneseq
        %v3118 = vshrl.u32 %v3117, 7
        %v3119 = vsub.s32 %v3116, %v3118
        %v3120 = vrot.slane %v3113, %v3119
        %v3121 = vcombine.low %v3041, %v3042
        %v3123 = vunpack.c.l.s4 1983009808
        %v3124 = vunpack.c.0.s8 %v3123
        %v3125 = vlaneseq
        %v3126 = vshrl.u32 %v3125, 7
        %v3127 = vsub.s32 %v3124, %v3126
        %v3128 = vrot.slane %v3121, %v3127
        %v3129 = vcombine.low %v3033, %v3040
        %v3131 = vunpack.c.l.s4 1983009808
        %v3132 = vunpack.c.0.s8 %v3131
        %v3133 = vlaneseq
        %v3134 = vshrl.u32 %v3133, 7
        %v3135 = vsub.s32 %v3132, %v3134
        %v3136 = vrot.slane %v3129, %v3135
        %v3137 = vcombine.low %v3043, %v3044
        %v3139 = vunpack.c.l.s4 1983009808
        %v3140 = vunpack.c.0.s8 %v3139
        %v3141 = vlaneseq
        %v3142 = vshrl.u32 %v3141, 7
        %v3143 = vsub.s32 %v3140, %v3142
        %v3144 = vrot.slane %v3137, %v3143
        %v3145 = vcombine.low %v3120, %v3128
        %v3146 = vcombine.high %v3120, %v3128
        %v3148 = vunpack.c.l.s4 1934713408
        %v3149 = vunpack.c.0.s8 %v3148
        %v3150 = vlaneseq
        %v3151 = vshrl.u32 %v3150, 7
        %v3152 = vsub.s32 %v3149, %v3151
        %v3153 = vrot.slane %v3145, %v3152
        %v3155 = vunpack.c.l.s4 1934713408
        %v3156 = vunpack.c.0.s8 %v3155
        %v3157 = vlaneseq
        %v3158 = vshrl.u32 %v3157, 7
        %v3159 = vsub.s32 %v3156, %v3158
        %v3160 = vrot.slane %v3146, %v3159
        %v3161 = vcombine.low %v3136, %v3144
        %v3162 = vcombine.high %v3136, %v3144
        %v3164 = vunpack.c.l.s4 1934713408
        %v3165 = vunpack.c.0.s8 %v3164
        %v3166 = vlaneseq
        %v3167 = vshrl.u32 %v3166, 7
        %v3168 = vsub.s32 %v3165, %v3167
        %v3169 = vrot.slane %v3161, %v3168
        %v3171 = vunpack.c.l.s4 1934713408
        %v3172 = vunpack.c.0.s8 %v3171
        %v3173 = vlaneseq
        %v3174 = vshrl.u32 %v3173, 7
        %v3175 = vsub.s32 %v3172, %v3174
        %v3176 = vrot.slane %v3162, %v3175
        %v3177 = vcombine.low %v3153, %v3169
        %v3178 = vcombine.high %v3153, %v3169
        %v3179 = vcombine.low %v3160, %v3176
        %v3180 = vcombine.high %v3160, %v3176
        %v3181 = vcombine.low %v3085, %v3092
        %v3183 = vunpack.c.l.s4 1983009808
        %v3184 = vunpack.c.0.s8 %v3183
        %v3185 = vlaneseq
        %v3186 = vshrl.u32 %v3185, 7
        %v3187 = vsub.s32 %v3184, %v3186
        %v3188 = vrot.slane %v3181, %v3187
        %v3189 = vcombine.low %v3109, %v3110
        %v3191 = vunpack.c.l.s4 1983009808
        %v3192 = vunpack.c.0.s8 %v3191
        %v3193 = vlaneseq
        %v3194 = vshrl.u32 %v3193, 7
        %v3195 = vsub.s32 %v3192, %v3194
        %v3196 = vrot.slane %v3189, %v3195
        %v3197 = vcombine.low %v3101, %v3108
        %v3199 = vunpack.c.l.s4 1983009808
        %v3200 = vunpack.c.0.s8 %v3199
        %v3201 = vlaneseq
        %v3202 = vshrl.u32 %v3201, 7
        %v3203 = vsub.s32 %v3200, %v3202
        %v3204 = vrot.slane %v3197, %v3203
        %v3205 = vcombine.low %v3111, %v3112
        %v3207 = vunpack.c.l.s4 1983009808
        %v3208 = vunpack.c.0.s8 %v3207
        %v3209 = vlaneseq
        %v3210 = vshrl.u32 %v3209, 7
        %v3211 = vsub.s32 %v3208, %v3210
        %v3212 = vrot.slane %v3205, %v3211
        %v3213 = vcombine.low %v3188, %v3196
        %v3214 = vcombine.high %v3188, %v3196
        %v3216 = vunpack.c.l.s4 1934713408
        %v3217 = vunpack.c.0.s8 %v3216
        %v3218 = vlaneseq
        %v3219 = vshrl.u32 %v3218, 7
        %v3220 = vsub.s32 %v3217, %v3219
        %v3221 = vrot.slane %v3213, %v3220
        %v3223 = vunpack.c.l.s4 1934713408
        %v3224 = vunpack.c.0.s8 %v3223
        %v3225 = vlaneseq
        %v3226 = vshrl.u32 %v3225, 7
        %v3227 = vsub.s32 %v3224, %v3226
        %v3228 = vrot.slane %v3214, %v3227
        %v3229 = vcombine.low %v3204, %v3212
        %v3230 = vcombine.high %v3204, %v3212
        %v3232 = vunpack.c.l.s4 1934713408
        %v3233 = vunpack.c.0.s8 %v3232
        %v3234 = vlaneseq
        %v3235 = vshrl.u32 %v3234, 7
        %v3236 = vsub.s32 %v3233, %v3235
        %v3237 = vrot.slane %v3229, %v3236
        %v3239 = vunpack.c.l.s4 1934713408
        %v3240 = vunpack.c.0.s8 %v3239
        %v3241 = vlaneseq
        %v3242 = vshrl.u32 %v3241, 7
        %v3243 = vsub.s32 %v3240, %v3242
        %v3244 = vrot.slane %v3230, %v3243
        %v3245 = vcombine.low %v3221, %v3237
        %v3246 = vcombine.high %v3221, %v3237
        %v3247 = vcombine.low %v3228, %v3244
        %v3248 = vcombine.high %v3228, %v3244
        %3251 = vrot.lane.b32.xlu0 %v3178, 16
        %v3252 = vpop.permute.xlu0 %3251
        %3253 = vrot.lane.b32.xlu0 %v3246, 16
        %v3254 = vpop.permute.xlu0 %3253
        %3259 = vrot.lane.b32.xlu0 %v3179, 32
        %v3260 = vpop.permute.xlu0 %3259
        %3261 = vrot.lane.b32.xlu0 %v3247, 32
        %v3262 = vpop.permute.xlu0 %3261
        %3267 = vrot.lane.b32.xlu0 %v3180, 48
        %v3268 = vpop.permute.xlu0 %3267
        %3269 = vrot.lane.b32.xlu0 %v3248, 48
        %v3270 = vpop.permute.xlu0 %3269
        %v3273 = vsel %vm1695, %v3177, %v3252
        %v3274 = vsel %vm1695, %v3245, %v3254
        %v3275 = vsel %vm536, %v3273, %v3260
        %v3276 = vsel %vm536, %v3274, %v3262
        %vm3277 = vcmask 392192
        %v3278 = vsel %vm3277, %v3275, %v3268
        %v3279 = vsel %vm3277, %v3276, %v3270
        %v3280 = vld [vmem:[%s505] sm:$0xff]
        %v3281 = vld [vmem:[%s505 + $0x8] sm:$0xff]
        %v3282 = vld [vmem:[%s505 + $0x10] sm:$0xff]
        %v3283 = vld [vmem:[%s505 + $0x18] sm:$0xff]
        %v3284 = vld [vmem:[%s505 + $0x20] sm:$0xff]
        %v3285 = vld [vmem:[%s505 + $0x28] sm:$0xff]
        %v3286 = vld [vmem:[%s505 + $0x30] sm:$0xff]
        %v3287 = vld [vmem:[%s505 + $0x38] sm:$0xff]
        %vm3288 = vcmask 523264
        %v3290 = vsel %vm3288, %v3278, 0
        %v3293 = vsel %vm3288, %v3279, 0
        %3295 = vmatprep.subr.mxu0 0.0
        %3296 = vmatpush1.msra.mxu0 %v3280
        %3297 = vmatprep.subr.mxu0 0.0
        %3298 = vmatpush1.msra.mxu0 %v3281
        %3299 = vmatprep.subr.mxu0 0.0
        %3300 = vmatpush1.msra.mxu0 %v3282
        %3301 = vmatprep.subr.mxu0 0.0
        %3302 = vmatpush1.msra.mxu0 %v3283
        %3303 = vmatprep.subr.mxu0 0.0
        %3304 = vmatpush1.msra.mxu0 %v3284
        %3305 = vmatprep.subr.mxu0 0.0
        %3306 = vmatpush1.msra.mxu0 %v3285
        %3307 = vmatprep.subr.mxu0 0.0
        %3308 = vmatpush1.msra.mxu0 %v3286
        %3309 = vmatprep.subr.mxu0 0.0
        %3310 = vmatpush1.msra.mxu0 %v3287
        %3311 = vmatprep.subr.mxu0 0.0
        %3312 = vmatpush1.msra.mxu0 0.0
        %3313 = vmatprep.subr.mxu0 0.0
        %3314 = vmatpush1.msra.mxu0 0.0
        %3315 = vmatprep.subr.mxu0 0.0
        %3316 = vmatpush1.msra.mxu0 0.0
        %3317 = vmatprep.subr.mxu0 0.0
        %3318 = vmatpush1.msra.mxu0 0.0
        %3319 = vmatprep.subr.mxu0 0.0
        %3320 = vmatpush1.msra.mxu0 0.0
        %3321 = vmatprep.subr.mxu0 0.0
        %3322 = vmatpush1.msra.mxu0 0.0
        %3323 = vmatprep.subr.mxu0 0.0
        %3324 = vmatpush1.msra.mxu0 0.0
        %3325 = vmatprep.subr.mxu0 0.0
        %3326 = vmatpush1.msra.mxu0 0.0
        %3327 = vmatprep.subr.mxu0 0.0
        %3328 = vmatpush1.msra.mxu0 0.0
        %3329 = vmatprep.subr.mxu0 0.0
        %3330 = vmatpush1.msra.mxu0 0.0
        %3331 = vmatprep.subr.mxu0 0.0
        %3332 = vmatpush1.msra.mxu0 0.0
        %3333 = vmatprep.subr.mxu0 0.0
        %3334 = vmatpush1.msra.mxu0 0.0
        %3335 = vmatprep.subr.mxu0 0.0
        %3336 = vmatpush1.msra.mxu0 0.0
        %3337 = vmatprep.subr.mxu0 0.0
        %3338 = vmatpush1.msra.mxu0 0.0
        %3339 = vmatprep.subr.mxu0 0.0
        %3340 = vmatpush1.msra.mxu0 0.0
        %3341 = vmatprep.subr.mxu0 0.0
        %3342 = vmatpush1.msra.mxu0 0.0
        %3343 = vmatprep.subr.mxu0 0.0
        %3344 = vmatpush1.msra.mxu0 0.0
        %3345 = vmatprep.subr.mxu0 0.0
        %3346 = vmatpush1.msra.mxu0 0.0
        %3347 = vmatprep.subr.mxu0 0.0
        %3348 = vmatpush1.msra.mxu0 0.0
        %3349 = vmatprep.subr.mxu0 0.0
        %3350 = vmatpush1.msra.mxu0 0.0
        %3351 = vmatprep.subr.mxu0 0.0
        %3352 = vmatpush1.msra.mxu0 0.0
        %3353 = vmatprep.subr.mxu0 0.0
        %3354 = vmatpush1.msra.mxu0 0.0
        %3355 = vmatprep.subr.mxu0 0.0
        %3356 = vmatpush1.msra.mxu0 0.0
        %3357 = vmatprep.subr.mxu0 0.0
        %3358 = vmatpush1.msra.mxu0 0.0
        %3359 = vmatprep.mubr.f32.mxu0 0.0
        %3360 = vmatmul.mubr.f32.gmra.mrb[0].mxu0 %v3290
        %v3361 = vpop.f32.mrb[0].mxu0
        %v3362 = vadd.f32 0.0, %v3361
        %v3363 = vpop.f32.mrb[0].mxu0
        %3364 = vmatprep.mubr.f32.mxu0 0.0
        %3365 = vmatmul.mubr.f32.gmra.mrb[0].mxu0 %v3293
        %v3366 = vpop.f32.mrb[0].mxu0
        %v3367 = vadd.f32 0.0, %v3366
        %v3368 = vpop.f32.mrb[0].mxu0
        %3369 = vdwg.mxu0
        %v3370 = vadd.f32 %v533, %v3362
        %v3371 = vadd.f32 %v534, %v3367
        %v3372 = vlaneseq
        %v3373 = vshrl.u32 %v3372, 7
        %v3374 = vsub.s32 2, %v3373
        %v3375 = vrot.slane %v535, %v3374
        %v3376 = vadd.f32 %v3370, %v3375
        %v3377 = vadd.f32 %v3371, %v3375
        %v3378 = vsel %vm536, %v3376, 0.0
        %3379 = vadd.xlane.f32.xlu0 %v3378
        %v3380 = vpop.xlane.xlu0 %3379
        %v3381 = vsel %vm536, %v3377, 0.0
        %3382 = vadd.xlane.f32.xlu0 %v3381
        %v3383 = vpop.xlane.xlu0 %3382
        %v3384 = vmul.f32 %v3380, %v543
        %v3385 = vmul.f32 %v3383, %v543
        %v3386 = vsub.f32 %v3376, %v3384
        %v3387 = vsub.f32 %v3377, %v3385
        %v3388 = vmul.f32 %v3386, %v3386
        %v3389 = vmul.f32 %v3387, %v3387
        %v3390 = vsel %vm536, %v3388, 0.0
        %3391 = vadd.xlane.f32.xlu0 %v3390
        %v3392 = vpop.xlane.xlu0 %3391
        %v3393 = vsel %vm536, %v3389, 0.0
        %3394 = vadd.xlane.f32.xlu0 %v3393
        %v3395 = vpop.xlane.xlu0 %3394
        %v3396 = vmul.f32 %v3392, %v543
        %v3397 = vmul.f32 %v3395, %v543
        %v3398 = vadd.f32 %v3396, 1e-05
        %v3399 = vadd.f32 %v3397, 1e-05
        %v3400 = vrsqrt.pop %v3398
        %v3401 = vrsqrt.pop %v3399
        %v3402 = vmul.f32 %v3386, %v3400
        %v3403 = vmul.f32 %v3387, %v3401
        %v3404 = vlaneseq
        %v3405 = vshrl.u32 %v3404, 7
        %v3406 = vsub.s32 3, %v3405
        %v3407 = vrot.slane %v535, %v3406
        %v3408 = vmul.f32 %v3402, %v3407
        %v3409 = vmul.f32 %v3403, %v3407
        %v3410 = vlaneseq
        %v3411 = vshrl.u32 %v3410, 7
        %v3412 = vsub.s32 4, %v3411
        %v3413 = vrot.slane %v535, %v3412
        %v3414 = vadd.f32 %v3408, %v3413
        %v3415 = vadd.f32 %v3409, %v3413
        %v3416 = vld [vmem:[%s510] sm:$0xff]
        %v3417 = vld [vmem:[%s510 + $0x8] sm:$0xff]
        %v3418 = vld [vmem:[%s510 + $0x10] sm:$0xff]
        %v3419 = vld [vmem:[%s510 + $0x18] sm:$0xff]
        %v3420 = vld [vmem:[%s513] sm:$0x1]
        %v3422 = vlaneseq
        %v3423 = vshrl.u32 %v3422, 7
        %v3424 = vsub.s32 0, %v3423
        %v3425 = vrot.slane %v3420, %v3424
        %v3428 = vsel %vm536, %v3414, 0
        %v3431 = vsel %vm536, %v3415, 0
        %3433 = vmatprep.subr.mxu0 0.0
        %3434 = vmatpush1.msra.mxu0 %v3416
        %3435 = vmatprep.subr.mxu0 0.0
        %3436 = vmatpush1.msra.mxu0 %v3417
        %3437 = vmatprep.subr.mxu0 0.0
        %3438 = vmatpush1.msra.mxu0 %v3418
        %3439 = vmatprep.subr.mxu0 0.0
        %3440 = vmatpush1.msra.mxu0 %v3419
        %3441 = vmatprep.subr.mxu0 0.0
        %3442 = vmatpush1.msra.mxu0 0.0
        %3443 = vmatprep.subr.mxu0 0.0
        %3444 = vmatpush1.msra.mxu0 0.0
        %3445 = vmatprep.subr.mxu0 0.0
        %3446 = vmatpush1.msra.mxu0 0.0
        %3447 = vmatprep.subr.mxu0 0.0
        %3448 = vmatpush1.msra.mxu0 0.0
        %3449 = vmatprep.subr.mxu0 0.0
        %3450 = vmatpush1.msra.mxu0 0.0
        %3451 = vmatprep.subr.mxu0 0.0
        %3452 = vmatpush1.msra.mxu0 0.0
        %3453 = vmatprep.subr.mxu0 0.0
        %3454 = vmatpush1.msra.mxu0 0.0
        %3455 = vmatprep.subr.mxu0 0.0
        %3456 = vmatpush1.msra.mxu0 0.0
        %3457 = vmatprep.subr.mxu0 0.0
        %3458 = vmatpush1.msra.mxu0 0.0
        %3459 = vmatprep.subr.mxu0 0.0
        %3460 = vmatpush1.msra.mxu0 0.0
        %3461 = vmatprep.subr.mxu0 0.0
        %3462 = vmatpush1.msra.mxu0 0.0
        %3463 = vmatprep.subr.mxu0 0.0
        %3464 = vmatpush1.msra.mxu0 0.0
        %3465 = vmatprep.subr.mxu0 0.0
        %3466 = vmatpush1.msra.mxu0 0.0
        %3467 = vmatprep.subr.mxu0 0.0
        %3468 = vmatpush1.msra.mxu0 0.0
        %3469 = vmatprep.subr.mxu0 0.0
        %3470 = vmatpush1.msra.mxu0 0.0
        %3471 = vmatprep.subr.mxu0 0.0
        %3472 = vmatpush1.msra.mxu0 0.0
        %3473 = vmatprep.subr.mxu0 0.0
        %3474 = vmatpush1.msra.mxu0 0.0
        %3475 = vmatprep.subr.mxu0 0.0
        %3476 = vmatpush1.msra.mxu0 0.0
        %3477 = vmatprep.subr.mxu0 0.0
        %3478 = vmatpush1.msra.mxu0 0.0
        %3479 = vmatprep.subr.mxu0 0.0
        %3480 = vmatpush1.msra.mxu0 0.0
        %3481 = vmatprep.subr.mxu0 0.0
        %3482 = vmatpush1.msra.mxu0 0.0
        %3483 = vmatprep.subr.mxu0 0.0
        %3484 = vmatpush1.msra.mxu0 0.0
        %3485 = vmatprep.subr.mxu0 0.0
        %3486 = vmatpush1.msra.mxu0 0.0
        %3487 = vmatprep.subr.mxu0 0.0
        %3488 = vmatpush1.msra.mxu0 0.0
        %3489 = vmatprep.subr.mxu0 0.0
        %3490 = vmatpush1.msra.mxu0 0.0
        %3491 = vmatprep.subr.mxu0 0.0
        %3492 = vmatpush1.msra.mxu0 0.0
        %3493 = vmatprep.subr.mxu0 0.0
        %3494 = vmatpush1.msra.mxu0 0.0
        %3495 = vmatprep.subr.mxu0 0.0
        %3496 = vmatpush1.msra.mxu0 0.0
        %3497 = vmatprep.mubr.f32.mxu0 0.0
        %3498 = vmatmul.mubr.f32.gmra.mrb[0].mxu0 %v3428
        %v3499 = vpop.f32.mrb[0].mxu0
        %v3500 = vadd.f32 %v3425, %v3499
        %v3501 = vpop.f32.mrb[0].mxu0
        %3502 = vmatprep.mubr.f32.mxu0 0.0
        %3503 = vmatmul.mubr.f32.gmra.mrb[0].mxu0 %v3431
        %v3504 = vpop.f32.mrb[0].mxu0
        %v3505 = vadd.f32 %v3425, %v3504
        %v3506 = vpop.f32.mrb[0].mxu0
        %3507 = vdwg.mxu0
        %v3508 = vmul.f32 %v3500, 0.5
        %v3509 = vmul.f32 %v3505, 0.5
        %v3510 = vmul.f32 %v3500, 0.70710677
        %v3511 = vmul.f32 %v3505, 0.70710677
        %v3512 = verf.f32.pop %v3510
        %v3513 = verf.f32.pop %v3511
        %v3514 = vadd.f32 %v3512, 1.0
        %v3515 = vadd.f32 %v3513, 1.0
        %v3516 = vmul.f32 %v3508, %v3514
        %v3517 = vmul.f32 %v3509, %v3515
        %v3518 = vld [vmem:[%s518] sm:$0xff]
        %v3519 = vld [vmem:[%s518 + $0x8] sm:$0xff]
        %v3520 = vld [vmem:[%s518 + $0x10] sm:$0xff]
        %v3521 = vld [vmem:[%s518 + $0x18] sm:$0xff]
        %v3522 = vld [vmem:[%s518 + $0x20] sm:$0xff]
        %v3523 = vld [vmem:[%s518 + $0x28] sm:$0xff]
        %v3524 = vld [vmem:[%s518 + $0x30] sm:$0xff]
        %v3525 = vld [vmem:[%s518 + $0x38] sm:$0xff]
        %v3526 = vlaneseq
        %v3527 = vshrl.u32 %v3526, 7
        %v3528 = vsub.s32 5, %v3527
        %v3529 = vrot.slane %v535, %v3528
        %v3531 = vsel %vm3288, %v3516, 0
        %v3534 = vsel %vm3288, %v3517, 0
        %3536 = vmatprep.subr.mxu0 0.0
        %3537 = vmatpush1.msra.mxu0 %v3518
        %3538 = vmatprep.subr.mxu0 0.0
        %3539 = vmatpush1.msra.mxu0 %v3519
        %3540 = vmatprep.subr.mxu0 0.0
        %3541 = vmatpush1.msra.mxu0 %v3520
        %3542 = vmatprep.subr.mxu0 0.0
        %3543 = vmatpush1.msra.mxu0 %v3521
        %3544 = vmatprep.subr.mxu0 0.0
        %3545 = vmatpush1.msra.mxu0 %v3522
        %3546 = vmatprep.subr.mxu0 0.0
        %3547 = vmatpush1.msra.mxu0 %v3523
        %3548 = vmatprep.subr.mxu0 0.0
        %3549 = vmatpush1.msra.mxu0 %v3524
        %3550 = vmatprep.subr.mxu0 0.0
        %3551 = vmatpush1.msra.mxu0 %v3525
        %3552 = vmatprep.subr.mxu0 0.0
        %3553 = vmatpush1.msra.mxu0 0.0
        %3554 = vmatprep.subr.mxu0 0.0
        %3555 = vmatpush1.msra.mxu0 0.0
        %3556 = vmatprep.subr.mxu0 0.0
        %3557 = vmatpush1.msra.mxu0 0.0
        %3558 = vmatprep.subr.mxu0 0.0
        %3559 = vmatpush1.msra.mxu0 0.0
        %3560 = vmatprep.subr.mxu0 0.0
        %3561 = vmatpush1.msra.mxu0 0.0
        %3562 = vmatprep.subr.mxu0 0.0
        %3563 = vmatpush1.msra.mxu0 0.0
        %3564 = vmatprep.subr.mxu0 0.0
        %3565 = vmatpush1.msra.mxu0 0.0
        %3566 = vmatprep.subr.mxu0 0.0
        %3567 = vmatpush1.msra.mxu0 0.0
        %3568 = vmatprep.subr.mxu0 0.0
        %3569 = vmatpush1.msra.mxu0 0.0
        %3570 = vmatprep.subr.mxu0 0.0
        %3571 = vmatpush1.msra.mxu0 0.0
        %3572 = vmatprep.subr.mxu0 0.0
        %3573 = vmatpush1.msra.mxu0 0.0
        %3574 = vmatprep.subr.mxu0 0.0
        %3575 = vmatpush1.msra.mxu0 0.0
        %3576 = vmatprep.subr.mxu0 0.0
        %3577 = vmatpush1.msra.mxu0 0.0
        %3578 = vmatprep.subr.mxu0 0.0
        %3579 = vmatpush1.msra.mxu0 0.0
        %3580 = vmatprep.subr.mxu0 0.0
        %3581 = vmatpush1.msra.mxu0 0.0
        %3582 = vmatprep.subr.mxu0 0.0
        %3583 = vmatpush1.msra.mxu0 0.0
        %3584 = vmatprep.subr.mxu0 0.0
        %3585 = vmatpush1.msra.mxu0 0.0
        %3586 = vmatprep.subr.mxu0 0.0
        %3587 = vmatpush1.msra.mxu0 0.0
        %3588 = vmatprep.subr.mxu0 0.0
        %3589 = vmatpush1.msra.mxu0 0.0
        %3590 = vmatprep.subr.mxu0 0.0
        %3591 = vmatpush1.msra.mxu0 0.0
        %3592 = vmatprep.subr.mxu0 0.0
        %3593 = vmatpush1.msra.mxu0 0.0
        %3594 = vmatprep.subr.mxu0 0.0
        %3595 = vmatpush1.msra.mxu0 0.0
        %3596 = vmatprep.subr.mxu0 0.0
        %3597 = vmatpush1.msra.mxu0 0.0
        %3598 = vmatprep.subr.mxu0 0.0
        %3599 = vmatpush1.msra.mxu0 0.0
        %3600 = vmatprep.mubr.f32.mxu0 0.0
        %3601 = vmatmul.mubr.f32.gmra.mrb[0].mxu0 %v3531
        %v3602 = vpop.f32.mrb[0].mxu0
        %v3603 = vadd.f32 %v3529, %v3602
        %v3604 = vpop.f32.mrb[0].mxu0
        %3605 = vmatprep.mubr.f32.mxu0 0.0
        %3606 = vmatmul.mubr.f32.gmra.mrb[0].mxu0 %v3534
        %v3607 = vpop.f32.mrb[0].mxu0
        %v3608 = vadd.f32 %v3529, %v3607
        %v3609 = vpop.f32.mrb[0].mxu0
        %3610 = vdwg.mxu0
        %v3611 = vadd.f32 %v3376, %v3603
        %v3612 = vadd.f32 %v3377, %v3608
        %3613 = vst.msk [vmem:[#allocation2] sm:$0xff] %vm536, %v3611
        %3614 = vst.msk [vmem:[#allocation2 + $0x8] sm:$0xff] %vm536, %v3612
        %p3615 = scmp.eq.s32.totalorder %s29, 1
        // Predicated region
        $region65: #{transformer_forward.1} parent=59 // pred_check
          %p3616 = pneg %p3615
        $region66: #{transformer_forward.1} parent=59 // pred_check_branch
          %3618 = sbr.rel (%p3616) target = $region68
        $region67: #{transformer_forward.1} parent=59 // pred_region
          %v3619 = vld [vmem:[%s9] sm:$0x1]
          %v3620 = vld [vmem:[%s9 + $0x1] sm:$0x1]
          %v3621 = vsel %vm536, %v3611, 0.0
          %3622 = vadd.xlane.f32.xlu0 %v3621
          %v3623 = vpop.xlane.xlu0 %3622
          %v3624 = vsel %vm536, %v3612, 0.0
          %3625 = vadd.xlane.f32.xlu0 %v3624
          %v3626 = vpop.xlane.xlu0 %3625
          %v3627 = vmul.f32 %v3623, %v543
          %v3628 = vmul.f32 %v3626, %v543
          %v3629 = vsub.f32 %v3611, %v3627
          %v3630 = vsub.f32 %v3612, %v3628
          %v3631 = vmul.f32 %v3629, %v3629
          %v3632 = vmul.f32 %v3630, %v3630
          %v3633 = vsel %vm536, %v3631, 0.0
          %3634 = vadd.xlane.f32.xlu0 %v3633
          %v3635 = vpop.xlane.xlu0 %3634
          %v3636 = vsel %vm536, %v3632, 0.0
          %3637 = vadd.xlane.f32.xlu0 %v3636
          %v3638 = vpop.xlane.xlu0 %3637
          %v3639 = vmul.f32 %v3635, %v543
          %v3640 = vmul.f32 %v3638, %v543
          %v3641 = vadd.f32 %v3639, 1e-05
          %v3642 = vadd.f32 %v3640, 1e-05
          %v3643 = vrsqrt.pop %v3641
          %v3644 = vrsqrt.pop %v3642
          %v3645 = vmul.f32 %v3629, %v3643
          %v3646 = vmul.f32 %v3630, %v3644
          %v3647 = vlaneseq
          %v3648 = vshrl.u32 %v3647, 7
          %v3649 = vsub.s32 0, %v3648
          %v3650 = vrot.slane %v3619, %v3649
          %v3651 = vmul.f32 %v3645, %v3650
          %v3652 = vmul.f32 %v3646, %v3650
          %v3653 = vlaneseq
          %v3654 = vshrl.u32 %v3653, 7
          %v3655 = vsub.s32 0, %v3654
          %v3656 = vrot.slane %v3620, %v3655
          %v3657 = vadd.f32 %v3651, %v3656
          %v3658 = vadd.f32 %v3652, %v3656
          %3659 = vst.msk [vmem:[%s479] sm:$0xff] %vm536, %v3657
          %3660 = vst.msk [vmem:[%s479 + $0x8] sm:$0xff] %vm536, %v3658
        $region68: #{transformer_forward.1} parent=59 // pred_fallthru
          _
        %s3661 = sand.u32 %s299, 1
        %s3662 = scalar_lea.sflag [#allocation4], %s3661
        %s3663 = sand.u32 %s299, 1
        %s3664 = smul.addr %s3663, 16
        %s3665 = scalar_lea.vmem [#allocation3], %s3664
        // Predicated region
        $region69: #{transformer_forward.1} parent=59 // pred_check
          %p3666 = pneg %p309
        $region70: #{transformer_forward.1} parent=59 // pred_check_branch
          %3668 = sbr.rel (%p3666) target = $region72
        $region71: #{transformer_forward.1} parent=59 // pred_region
          %s3669 = smul.u32 2, %s28
          %s3671 = ssub.s32 256, 256
          %3672 = vsyncadd %s3662, %s3671
          %s3673 = smul.addr %s3669, 128
          %s3674 = scalar_lea.hbm %s10, %s3673
          %s3675 = sshll.u32 %s3665, 4
          %s3676 = int_to_ptr.vmem [resolvable:$true] %s3675
          %3681 = dma.vmem_to_hbm [thread:$0]  %s3676, 256, %s3674, %s3662, 128, 128, 8
        $region72: #{transformer_forward.1} parent=59 // pred_fallthru
          _
      $region60: #{transformer_forward.1} parent=5 // pred_fallthru
        _
      %p3682 = scmp.le.s32.totalorder 2, %s19
      // Predicated region
      $region73: #{transformer_forward.1} parent=5 // pred_check
        %p3683 = pneg %p3682
      $region74: #{transformer_forward.1} parent=5 // pred_check_branch
        %3685 = sbr.rel (%p3683) target = $region76
      $region75: #{transformer_forward.1} parent=5 // pred_region
        %s3686 = ssub.s32 %s19, 2
        // Predicated region
        $region77: #{transformer_forward.1} parent=75 // pred_check
          %p3687 = pneg %p315
        $region78: #{transformer_forward.1} parent=75 // pred_check_branch
          %3689 = sbr.rel (%p3687) target = $region80
        $region79: #{transformer_forward.1} parent=75 // pred_region
          %s3690 = sand.u32 %s300, 1
          %s3691 = scalar_lea.sflag [#allocation4], %s3690
          %s3692 = sand.u32 %s300, 1
          %s3693 = smul.addr %s3692, 16
          %s3694 = scalar_lea.vmem [#allocation3], %s3693
          %3695 = dma.done %s3691, 256
        $region80: #{transformer_forward.1} parent=75 // pred_fallthru
          _
      $region76: #{transformer_forward.1} parent=5 // pred_fallthru
        _
    $region6: #{transformer_forward.1} parent=1 // loop_footer
      %s23 = sadd.s32 1, %s19
    $region7: #{transformer_forward.1} parent=1 // loop_footer_branch
      %18 = sbr.rel target = $region3
    $region8: #{transformer_forward.1} parent=1 // loop_exit
      _
    %3696 = vsyncpa [#allocation4], 1
    %s3697 = scalar_lea.sflag [#allocation4], 1
    %3698 = vsyncpa %s3697, 1

</llo_original>
